<compile_context>
chip_gen: v6e
topology: v6e:2x2x1
jax: 0.10.0
libtpu: 0.0.40
codegen_flags: <defaults>
</compile_context>

<pallas_src>
import functools
import math

import jax
import jax.numpy as jnp
from jax.experimental import pallas as pl
from jax.experimental.pallas import tpu as pltpu


# ----------------------------------------------------------------------------
# Fused multi-layer TransformerEncoder kernel.
# Grid: (batch_tiles, num_layers); layer axis innermost.  The activation tile is
# carried across the layer axis in the output block (index_map ignores `l`).
# ----------------------------------------------------------------------------
def _encoder_stack_kernel(x_ref, pos_ref,
                          wqkv_ref, bqkv_ref, wo_ref, bo_ref,
                          g1_ref, be1_ref, w1_ref, b1_ref, w2_ref, b2_ref,
                          g2_ref, be2_ref,
                          o_ref, *, nhead):
    layer = pl.program_id(1)

    BB, T, C = o_ref.shape
    rows = BB * T
    dh = C // nhead
    eps = 1e-5
    mm_dtype = wqkv_ref.dtype          # f32, or bf16 on the v6e/v7x fast path

    # ---- layer 0: load the input tile and fold in the positional embedding ----
    @pl.when(layer == 0)
    def _():
        o_ref[...] = (x_ref[...] + pos_ref[...]).astype(o_ref.dtype)

    # resident f32 activation (output dtype is f32; see wrapper assert)
    x = o_ref[...].reshape(rows, C)

    # ---- QKV projection (1/sqrt(dh) pre-folded into the q columns) -----------
    qkv = jnp.dot(x.astype(mm_dtype), wqkv_ref[0],
                  preferred_element_type=jnp.float32) + bqkv_ref[0]
    qkv = qkv.astype(mm_dtype)         # single cast (bf16 path): halves temp VMEM

    # ---- multi-head attention: per head, batched over the BB batch dim -------
    heads = []
    for h in range(nhead):             # static unroll; nhead is small
        lo = h * dh
        qh = qkv[:, lo:lo + dh].reshape(BB, T, dh)
        kh = qkv[:, C + lo:C + lo + dh].reshape(BB, T, dh)
        vh = qkv[:, 2 * C + lo:2 * C + lo + dh].reshape(BB, T, dh)
        s = jax.lax.dot_general(qh, kh, (((2,), (2,)), ((0,), (0,))),
                                preferred_element_type=jnp.float32)   # (BB,T,T)
        s = s - jnp.max(s, axis=-1, keepdims=True)
        p = jnp.exp(s)
        p = p / jnp.sum(p, axis=-1, keepdims=True)        # exact softmax
        heads.append(jax.lax.dot_general(p.astype(mm_dtype), vh,
                                         (((2,), (1,)), ((0,), (0,))),
                                         preferred_element_type=jnp.float32))
    # assemble heads once, then a single full-depth out-projection (K = C)
    attn = jnp.concatenate(heads, axis=-1).reshape(rows, C)
    attn = jnp.dot(attn.astype(mm_dtype), wo_ref[0],
                   preferred_element_type=jnp.float32) + bo_ref[0]

    # ---- residual + LayerNorm1 (fused single-pass statistics, f32) -----------
    y = x + attn
    mu = jnp.mean(y, axis=-1, keepdims=True)
    var = jnp.mean(y * y, axis=-1, keepdims=True) - mu * mu
    y = (y - mu) * jax.lax.rsqrt(var + eps) * g1_ref[0] + be1_ref[0]

    # ---- feed-forward: Linear -> ReLU -> Linear -------------------------------
    h1 = jnp.maximum(jnp.dot(y.astype(mm_dtype), w1_ref[0],
                             preferred_element_type=jnp.float32) + b1_ref[0], 0.0)
    h2 = jnp.dot(h1.astype(mm_dtype), w2_ref[0],
                 preferred_element_type=jnp.float32) + b2_ref[0]

    # ---- residual + LayerNorm2 -------------------------------------------------
    z = y + h2
    mu2 = jnp.mean(z, axis=-1, keepdims=True)
    var2 = jnp.mean(z * z, axis=-1, keepdims=True) - mu2 * mu2
    z = (z - mu2) * jax.lax.rsqrt(var2 + eps) * g2_ref[0] + be2_ref[0]

    # carry the activation for the next layer / final HBM writeback
    o_ref[...] = z.reshape(BB, T, C).astype(o_ref.dtype)


# ----------------------------------------------------------------------------
# Tile-size selection & VMEM budgeting.
# ----------------------------------------------------------------------------
def _ceil_to(x, m):
    return -(-x // m) * m


def _vmem_bytes_estimate(block_b, T, C, FF, w_bytes):
    """Rough VMEM footprint: double-buffered in/out/pos tiles, double-buffered
    per-layer weight set, plus the live f32 temporaries of one layer step
    (qkv and h1 dominate).  Padded to (8, 128) tiles."""
    rows = _ceil_to(block_b * T, 8)
    cl, ffl, c3l = _ceil_to(C, 128), _ceil_to(FF, 128), _ceil_to(3 * C, 128)
    act = block_b * _ceil_to(T, 8) * cl * 4
    tiles = 2 * act + 2 * act + 2 * _ceil_to(T, 8) * cl * 4
    wset = (C * c3l + C * cl + C * ffl + FF * cl) * w_bytes \
         + 8 * (c3l + 6 * cl + ffl) * 4                      # biases / LN params
    temps = rows * (c3l + ffl + 6 * cl) * 4                  # qkv, h1, x/attn/y/z
    return tiles + 2 * wset + temps


def _pick_block_b(B, T, C, FF, w_bytes, *, target_rows=512, vmem_budget=40 << 20):
    """Largest divisor of B whose row tile reaches target_rows, subject to the VMEM
    budget (kept well under v7x's 64 MiB physical VMEM), and keeping >= 2 batch
    tiles when B > 1 so the parallel axis can shard across v7x's two TensorCores.
    Use target_rows=256 on v5e (4x128^2 MXU), 512-1024 on v6e/v7x (2x256^2)."""
    best = 1
    for d in range(1, B + 1):
        if B % d:
            continue
        if B > 1 and d == B:
            break                                   # keep >= 2 parallel tiles
        if _vmem_bytes_estimate(d, T, C, FF, w_bytes) > vmem_budget:
            break
        best = d
        if d * T >= target_rows:
            break
    return best


def transformer_encoder(xb, pos_embedding, params, nhead, *, block_b=None,
                        target_rows=512):
    """xb: (B, T, C) float32.  params: dict of layer-stacked, pre-transposed weights."""
    B, T, C = xb.shape
    assert xb.dtype == jnp.float32, "activation is carried across layers in f32"
    assert C % nhead == 0
    num_layers = params["wqkv"].shape[0]
    FF = params["w1"].shape[-1]
    w_bytes = jnp.dtype(params["wqkv"].dtype).itemsize
    if block_b is None:
        block_b = _pick_block_b(B, T, C, FF, w_bytes, target_rows=target_rows)
    assert B % block_b == 0

    names = ("wqkv", "bqkv", "wo", "bo", "g1", "be1",
             "w1", "b1", "w2", "b2", "g2", "be2")
    weights = [params[k] for k in names]

    kernel = functools.partial(_encoder_stack_kernel, nhead=nhead)

    in_specs = [
        pl.BlockSpec((block_b, T, C), lambda b, l: (b, 0, 0)),   # x (layer-0 only)
        pl.BlockSpec((1, T, C), lambda b, l: (0, 0, 0)),         # pos embedding
    ]
    # one layer's weights per grid step (pipelined along the inner layer axis)
    # TODO(synk): if profiling on v5e shows exposed weight DMA, load the full
    # stacked weight set once (constant index_map) or use pipeline_mode=pl.Buffered(3).
    in_specs += [pl.BlockSpec((1,) + w.shape[1:], lambda b, l: (l, 0, 0))
                 for w in weights]

    # Explicit scoped-VMEM limit (defaults: 16 MiB v5e / 32 MiB v6e,v7x).
    vmem_est = _vmem_bytes_estimate(block_b, T, C, FF, w_bytes)
    vmem_limit = int(min(max(2 * vmem_est + (8 << 20), 32 << 20), 64 << 20))

    return pl.pallas_call(
        kernel,
        out_shape=jax.ShapeDtypeStruct((B, T, C), xb.dtype),
        grid_spec=pltpu.PrefetchScalarGridSpec(
            num_scalar_prefetch=0,
            grid=(B // block_b, num_layers),
            in_specs=in_specs,
            # index_map ignores `l` -> block resident across the layer axis,
            # written back to HBM once per batch tile (carries the activation).
            out_specs=pl.BlockSpec((block_b, T, C), lambda b, l: (b, 0, 0)),
        ),
        compiler_params=pltpu.CompilerParams(
            dimension_semantics=("parallel", "arbitrary"),
            vmem_limit_bytes=vmem_limit),
    )(xb, pos_embedding, *weights)


# ----------------------------------------------------------------------------
# TemporalTransformer forward (cheap layout glue in plain JAX).
# ----------------------------------------------------------------------------
def temporal_transformer(x, pos_embedding, params, nhead, *, block_b=None):
    n, c, t, v = x.shape
    # (n, c, t, v) -> (n, v, t, c) -> (n*v, t, c) = (B, T, C)
    xb = jnp.transpose(x, (0, 3, 2, 1)).reshape(n * v, t, c)
    out = transformer_encoder(xb, pos_embedding, params, nhead, block_b=block_b)
    # (B, T, C) -> (n, v, t, c) -> (n, c, t, v)
    return jnp.transpose(out.reshape(n, v, t, c), (0, 3, 2, 1))


# ----------------------------------------------------------------------------
# Parameter construction (PyTorch-layout) and kernel-side packing.
# ----------------------------------------------------------------------------
def make_params(key, feature_dim_size, nhead, ff_hidden_size,
                num_self_att_layers, num_nodes):
    C, FF = feature_dim_size, ff_hidden_size
    keys = jax.random.split(key, 1 + num_self_att_layers)
    pos = 0.1 * jax.random.normal(keys[0], (1, num_nodes, C), jnp.float32)
    layers = []
    for li in range(num_self_att_layers):
        ks = jax.random.split(keys[1 + li], 6)
        layers.append({
            "in_proj_weight": 0.1 * jax.random.normal(ks[0], (3 * C, C), jnp.float32),
            "in_proj_bias": 0.1 * jax.random.normal(ks[1], (3 * C,), jnp.float32),
            "out_proj_weight": 0.1 * jax.random.normal(ks[2], (C, C), jnp.float32),
            "out_proj_bias": 0.1 * jax.random.normal(ks[3], (C,), jnp.float32),
            "ln1_gamma": jnp.ones((C,), jnp.float32),
            "ln1_beta": jnp.zeros((C,), jnp.float32),
            "linear1_weight": 0.1 * jax.random.normal(ks[4], (FF, C), jnp.float32),
            "linear1_bias": jnp.zeros((FF,), jnp.float32),
            "linear2_weight": 0.1 * jax.random.normal(ks[5], (C, FF), jnp.float32),
            "linear2_bias": jnp.zeros((C,), jnp.float32),
            "ln2_gamma": jnp.ones((C,), jnp.float32),
            "ln2_beta": jnp.zeros((C,), jnp.float32),
        })
    return pos, layers


def prep_params(layer_params, nhead, matmul_dtype=jnp.float32):
    """Stack per-layer PyTorch-layout params along a leading layer axis, transpose
    weights to (in, out), fold 1/sqrt(dh) into the q columns, lift 1-D params to
    (1, d).  Matmul weights optionally cast to bf16 (v6e/v7x); biases/LN stay f32."""
    C = layer_params[0]["in_proj_weight"].shape[1]
    dh = C // nhead
    qscale = jnp.concatenate(
        [jnp.full((C,), 1.0 / math.sqrt(dh), jnp.float32),
         jnp.ones((2 * C,), jnp.float32)])

    def stack(fn):
        return jnp.stack([fn(p) for p in layer_params], axis=0)

    wqkv = stack(lambda p: p["in_proj_weight"].T) * qscale[None, None, :]
    bqkv = stack(lambda p: p["in_proj_bias"].reshape(1, -1)) * qscale[None, None, :]
    return {
        "wqkv": wqkv.astype(matmul_dtype),                               # (L, C, 3C)
        "bqkv": bqkv,                                                    # (L, 1, 3C)
        "wo": stack(lambda p: p["out_proj_weight"].T).astype(matmul_dtype),
        "bo": stack(lambda p: p["out_proj_bias"].reshape(1, -1)),
        "g1": stack(lambda p: p["ln1_gamma"].reshape(1, -1)),
        "be1": stack(lambda p: p["ln1_beta"].reshape(1, -1)),
        "w1": stack(lambda p: p["linear1_weight"].T).astype(matmul_dtype),
        "b1": stack(lambda p: p["linear1_bias"].reshape(1, -1)),
        "w2": stack(lambda p: p["linear2_weight"].T).astype(matmul_dtype),
        "b2": stack(lambda p: p["linear2_bias"].reshape(1, -1)),
        "g2": stack(lambda p: p["ln2_gamma"].reshape(1, -1)),
        "be2": stack(lambda p: p["ln2_beta"].reshape(1, -1)),
    }


# ----------------------------------------------------------------------------
# Pure-JAX reference (PyTorch semantics) for correctness check.
# ----------------------------------------------------------------------------
def _layer_ref(x, p, nhead):
    B, T, C = x.shape
    dh = C // nhead
    eps = 1e-5
    qkv = x @ p["in_proj_weight"].T + p["in_proj_bias"]
    q, k, v = qkv[..., :C], qkv[..., C:2 * C], qkv[..., 2 * C:]
    q = q.reshape(B, T, nhead, dh) / math.sqrt(dh)
    k = k.reshape(B, T, nhead, dh)
    v = v.reshape(B, T, nhead, dh)
    s = jnp.einsum("bthd,bshd->bhts", q, k)
    a = jnp.einsum("bhts,bshd->bthd", jax.nn.softmax(s, axis=-1), v).reshape(B, T, C)
    a = a @ p["out_proj_weight"].T + p["out_proj_bias"]
    y = x + a
    y = (y - y.mean(-1, keepdims=True)) * jax.lax.rsqrt(y.var(-1, keepdims=True) + eps)
    y = y * p["ln1_gamma"] + p["ln1_beta"]
    h = jnp.maximum(y @ p["linear1_weight"].T + p["linear1_bias"], 0.0)
    h = h @ p["linear2_weight"].T + p["linear2_bias"]
    z = y + h
    z = (z - z.mean(-1, keepdims=True)) * jax.lax.rsqrt(z.var(-1, keepdims=True) + eps)
    return z * p["ln2_gamma"] + p["ln2_beta"]


def reference(x, pos_embedding, layer_params, nhead):
    n, c, t, v = x.shape
    xb = jnp.transpose(x, (0, 3, 2, 1)).reshape(n * v, t, c) + pos_embedding
    for p in layer_params:
        xb = _layer_ref(xb, p, nhead)
    return jnp.transpose(xb.reshape(n, v, t, c), (0, 3, 2, 1))


if __name__ == "__main__":
    # Small shapes consistent with the module: x (n, c, t, v), d_model = c,
    # seq_len = num_nodes = t, batch = n*v.
    n, c, t, v = 2, 32, 8, 4
    nhead = 4
    ff_hidden_size = 64
    num_self_att_layers = 2

    key = jax.random.PRNGKey(0)
    kx, kp = jax.random.split(key)
    x = jax.random.normal(kx, (n, c, t, v), jnp.float32)
    pos, layers = make_params(kp, c, nhead, ff_hidden_size,
                              num_self_att_layers, num_nodes=t)

    ref = jax.block_until_ready(reference(x, pos, layers, nhead))

    # f32 matmul path (v5e-friendly)
    params_f32 = prep_params(layers, nhead, jnp.float32)
    out = jax.block_until_ready(temporal_transformer(x, pos, params_f32, nhead))
    assert out.shape == (n, c, t, v), out.shape
    err = float(jnp.max(jnp.abs(out - ref)))
    assert err < 2e-2, f"f32 path max error {err}"

    # bf16 matmul path (v6e/v7x): bf16 MXU inputs, f32 accumulation/statistics
    params_bf16 = prep_params(layers, nhead, jnp.bfloat16)
    out_bf = jax.block_until_ready(temporal_transformer(x, pos, params_bf16, nhead))
    err_bf = float(jnp.max(jnp.abs(out_bf - ref)))
    assert err_bf < 2.5e-1, f"bf16 path max error {err_bf}"

    print("KERNEL_OK")
</pallas_src>

<mosaic_0001>
module attributes {stable_mosaic.version = 11 : i64} {
  func.func @_encoder_stack_kernel(%arg0: i32, %arg1: i32, %arg2: memref<4x8x32xf32, #tpu.memory_space<vmem>>, %arg3: memref<1x8x32xf32, #tpu.memory_space<vmem>>, %arg4: memref<1x32x96xf32, #tpu.memory_space<vmem>>, %arg5: memref<1x1x96xf32, #tpu.memory_space<vmem>>, %arg6: memref<1x32x32xf32, #tpu.memory_space<vmem>>, %arg7: memref<1x1x32xf32, #tpu.memory_space<vmem>>, %arg8: memref<1x1x32xf32, #tpu.memory_space<vmem>>, %arg9: memref<1x1x32xf32, #tpu.memory_space<vmem>>, %arg10: memref<1x32x64xf32, #tpu.memory_space<vmem>>, %arg11: memref<1x1x64xf32, #tpu.memory_space<vmem>>, %arg12: memref<1x64x32xf32, #tpu.memory_space<vmem>>, %arg13: memref<1x1x32xf32, #tpu.memory_space<vmem>>, %arg14: memref<1x1x32xf32, #tpu.memory_space<vmem>>, %arg15: memref<1x1x32xf32, #tpu.memory_space<vmem>>, %arg16: memref<4x8x32xf32, #tpu.memory_space<vmem>>) attributes {dimension_semantics = [#tpu.dimension_semantics<parallel>, #tpu.dimension_semantics<arbitrary>], iteration_bounds = array<i64: 2, 2>, scalar_prefetch = 0 : i64, scratch_operands = 0 : i64, tpu.core_type = #tpu.core_type<tc>, window_params = [{transform_indices = @transform_0, window_bounds = array<i64: 4, 8, 32>}, {pipeline_mode = #tpu.pipeline_mode<synchronous>, transform_indices = @transform_1, window_bounds = array<i64: 1, 8, 32>}, {transform_indices = @transform_2, window_bounds = array<i64: 1, 32, 96>}, {transform_indices = @transform_3, window_bounds = array<i64: 1, 1, 96>}, {transform_indices = @transform_4, window_bounds = array<i64: 1, 32, 32>}, {transform_indices = @transform_5, window_bounds = array<i64: 1, 1, 32>}, {transform_indices = @transform_6, window_bounds = array<i64: 1, 1, 32>}, {transform_indices = @transform_7, window_bounds = array<i64: 1, 1, 32>}, {transform_indices = @transform_8, window_bounds = array<i64: 1, 32, 64>}, {transform_indices = @transform_9, window_bounds = array<i64: 1, 1, 64>}, {transform_indices = @transform_10, window_bounds = array<i64: 1, 64, 32>}, {transform_indices = @transform_11, window_bounds = array<i64: 1, 1, 32>}, {transform_indices = @transform_12, window_bounds = array<i64: 1, 1, 32>}, {transform_indices = @transform_13, window_bounds = array<i64: 1, 1, 32>}, {transform_indices = @transform_14, window_bounds = array<i64: 4, 8, 32>}]} {
    %c0_i32 = arith.constant 0 : i32
    %0 = arith.cmpi eq, %arg1, %c0_i32 : i32
    %1 = arith.extui %0 : i1 to i32
    %c0_i32_0 = arith.constant 0 : i32
    %2 = arith.cmpi ne, %1, %c0_i32_0 : i32
    scf.if %2 {
      %c0_72 = arith.constant 0 : index
      %c0_73 = arith.constant 0 : index
      %c0_74 = arith.constant 0 : index
      %161 = vector.load %arg2[%c0_72, %c0_73, %c0_74] : memref<4x8x32xf32, #tpu.memory_space<vmem>>, vector<4x8x32xf32>
      %c0_75 = arith.constant 0 : index
      %c0_76 = arith.constant 0 : index
      %c0_77 = arith.constant 0 : index
      %162 = vector.load %arg3[%c0_75, %c0_76, %c0_77] : memref<1x8x32xf32, #tpu.memory_space<vmem>>, vector<1x8x32xf32>
      %163 = vector.broadcast %162 : vector<1x8x32xf32> to vector<4x8x32xf32>
      %164 = arith.addf %161, %163 : vector<4x8x32xf32>
      %c0_78 = arith.constant 0 : index
      %c0_79 = arith.constant 0 : index
      %c0_80 = arith.constant 0 : index
      %165 = vector.load %arg16[%c0_78, %c0_79, %c0_80] : memref<4x8x32xf32, #tpu.memory_space<vmem>>, vector<4x8x32xf32>
      tpu.vector_store %arg16[%c0_78, %c0_79, %c0_80], %164 {strides = array<i32>} : memref<4x8x32xf32, #tpu.memory_space<vmem>>, vector<4x8x32xf32>,
    } else {
    }
    %c0 = arith.constant 0 : index
    %c0_1 = arith.constant 0 : index
    %c0_2 = arith.constant 0 : index
    %3 = vector.load %arg16[%c0, %c0_1, %c0_2] : memref<4x8x32xf32, #tpu.memory_space<vmem>>, vector<4x8x32xf32>
    %4 = vector.shape_cast %3 : vector<4x8x32xf32> to vector<32x32xf32>
    %c0_3 = arith.constant 0 : index
    %c0_4 = arith.constant 0 : index
    %c0_5 = arith.constant 0 : index
    %5 = vector.load %arg4[%c0_3, %c0_4, %c0_5] : memref<1x32x96xf32, #tpu.memory_space<vmem>>, vector<1x32x96xf32>
    %6 = vector.shape_cast %5 : vector<1x32x96xf32> to vector<32x96xf32>
    %cst = arith.constant dense<0.000000e+00> : vector<32x96xf32>
    %7 = tpu.matmul %4, %6, %cst {dimension_numbers = #tpu.dot_dimension_numbers<[1], [0], [0], [1], [0, 0, 1, 1], [], []>} : vector<32x32xf32>, vector<32x96xf32>, vector<32x96xf32> -> vector<32x96xf32>
    %c0_6 = arith.constant 0 : index
    %c0_7 = arith.constant 0 : index
    %c0_8 = arith.constant 0 : index
    %8 = vector.load %arg5[%c0_6, %c0_7, %c0_8] : memref<1x1x96xf32, #tpu.memory_space<vmem>>, vector<1x1x96xf32>
    %9 = vector.shape_cast %8 : vector<1x1x96xf32> to vector<1x96xf32>
    %10 = vector.broadcast %9 : vector<1x96xf32> to vector<32x96xf32>
    %11 = arith.addf %7, %10 : vector<32x96xf32>
    %12 = vector.extract_strided_slice %11 {offsets = [0, 0], sizes = [32, 8], strides = [1, 1]} : vector<32x96xf32> to vector<32x8xf32>
    %13 = vector.shape_cast %12 : vector<32x8xf32> to vector<4x8x8xf32>
    %14 = vector.extract_strided_slice %11 {offsets = [0, 32], sizes = [32, 8], strides = [1, 1]} : vector<32x96xf32> to vector<32x8xf32>
    %15 = vector.shape_cast %14 : vector<32x8xf32> to vector<4x8x8xf32>
    %16 = vector.extract_strided_slice %11 {offsets = [0, 64], sizes = [32, 8], strides = [1, 1]} : vector<32x96xf32> to vector<32x8xf32>
    %17 = vector.shape_cast %16 : vector<32x8xf32> to vector<4x8x8xf32>
    %cst_9 = arith.constant dense<0.000000e+00> : vector<4x8x8xf32>
    %18 = tpu.matmul %13, %15, %cst_9 {dimension_numbers = #tpu.dot_dimension_numbers<[2], [2], [1], [1], [0, 0, 0, 1, 1, 1], [0], [0]>} : vector<4x8x8xf32>, vector<4x8x8xf32>, vector<4x8x8xf32> -> vector<4x8x8xf32>
    %cst_10 = arith.constant dense<0xFF800000> : vector<4x8xf32>
    %19 = vector.multi_reduction <maximumf>, %18, %cst_10 [2] : vector<4x8x8xf32> to vector<4x8xf32>
    %20 = vector.shape_cast %19 : vector<4x8xf32> to vector<4x8x1xf32>
    %21 = vector.broadcast %20 : vector<4x8x1xf32> to vector<4x8x8xf32>
    %22 = arith.subf %18, %21 : vector<4x8x8xf32>
    %23 = math.exp %22 : vector<4x8x8xf32>
    %cst_11 = arith.constant dense<0.000000e+00> : vector<4x8xf32>
    %24 = vector.multi_reduction <add>, %23, %cst_11 [2] : vector<4x8x8xf32> to vector<4x8xf32>
    %25 = vector.shape_cast %24 : vector<4x8xf32> to vector<4x8x1xf32>
    %26 = vector.broadcast %25 : vector<4x8x1xf32> to vector<4x8x8xf32>
    %27 = arith.divf %23, %26 : vector<4x8x8xf32>
    %cst_12 = arith.constant dense<0.000000e+00> : vector<4x8x8xf32>
    %28 = tpu.matmul %27, %17, %cst_12 {dimension_numbers = #tpu.dot_dimension_numbers<[2], [1], [1], [2], [0, 0, 0, 1, 1, 2], [0], [0]>} : vector<4x8x8xf32>, vector<4x8x8xf32>, vector<4x8x8xf32> -> vector<4x8x8xf32>
    %29 = vector.extract_strided_slice %11 {offsets = [0, 8], sizes = [32, 8], strides = [1, 1]} : vector<32x96xf32> to vector<32x8xf32>
    %30 = vector.shape_cast %29 : vector<32x8xf32> to vector<4x8x8xf32>
    %31 = vector.extract_strided_slice %11 {offsets = [0, 40], sizes = [32, 8], strides = [1, 1]} : vector<32x96xf32> to vector<32x8xf32>
    %32 = vector.shape_cast %31 : vector<32x8xf32> to vector<4x8x8xf32>
    %33 = vector.extract_strided_slice %11 {offsets = [0, 72], sizes = [32, 8], strides = [1, 1]} : vector<32x96xf32> to vector<32x8xf32>
    %34 = vector.shape_cast %33 : vector<32x8xf32> to vector<4x8x8xf32>
    %cst_13 = arith.constant dense<0.000000e+00> : vector<4x8x8xf32>
    %35 = tpu.matmul %30, %32, %cst_13 {dimension_numbers = #tpu.dot_dimension_numbers<[2], [2], [1], [1], [0, 0, 0, 1, 1, 1], [0], [0]>} : vector<4x8x8xf32>, vector<4x8x8xf32>, vector<4x8x8xf32> -> vector<4x8x8xf32>
    %cst_14 = arith.constant dense<0xFF800000> : vector<4x8xf32>
    %36 = vector.multi_reduction <maximumf>, %35, %cst_14 [2] : vector<4x8x8xf32> to vector<4x8xf32>
    %37 = vector.shape_cast %36 : vector<4x8xf32> to vector<4x8x1xf32>
    %38 = vector.broadcast %37 : vector<4x8x1xf32> to vector<4x8x8xf32>
    %39 = arith.subf %35, %38 : vector<4x8x8xf32>
    %40 = math.exp %39 : vector<4x8x8xf32>
    %cst_15 = arith.constant dense<0.000000e+00> : vector<4x8xf32>
    %41 = vector.multi_reduction <add>, %40, %cst_15 [2] : vector<4x8x8xf32> to vector<4x8xf32>
    %42 = vector.shape_cast %41 : vector<4x8xf32> to vector<4x8x1xf32>
    %43 = vector.broadcast %42 : vector<4x8x1xf32> to vector<4x8x8xf32>
    %44 = arith.divf %40, %43 : vector<4x8x8xf32>
    %cst_16 = arith.constant dense<0.000000e+00> : vector<4x8x8xf32>
    %45 = tpu.matmul %44, %34, %cst_16 {dimension_numbers = #tpu.dot_dimension_numbers<[2], [1], [1], [2], [0, 0, 0, 1, 1, 2], [0], [0]>} : vector<4x8x8xf32>, vector<4x8x8xf32>, vector<4x8x8xf32> -> vector<4x8x8xf32>
    %46 = vector.extract_strided_slice %11 {offsets = [0, 16], sizes = [32, 8], strides = [1, 1]} : vector<32x96xf32> to vector<32x8xf32>
    %47 = vector.shape_cast %46 : vector<32x8xf32> to vector<4x8x8xf32>
    %48 = vector.extract_strided_slice %11 {offsets = [0, 48], sizes = [32, 8], strides = [1, 1]} : vector<32x96xf32> to vector<32x8xf32>
    %49 = vector.shape_cast %48 : vector<32x8xf32> to vector<4x8x8xf32>
    %50 = vector.extract_strided_slice %11 {offsets = [0, 80], sizes = [32, 8], strides = [1, 1]} : vector<32x96xf32> to vector<32x8xf32>
    %51 = vector.shape_cast %50 : vector<32x8xf32> to vector<4x8x8xf32>
    %cst_17 = arith.constant dense<0.000000e+00> : vector<4x8x8xf32>
    %52 = tpu.matmul %47, %49, %cst_17 {dimension_numbers = #tpu.dot_dimension_numbers<[2], [2], [1], [1], [0, 0, 0, 1, 1, 1], [0], [0]>} : vector<4x8x8xf32>, vector<4x8x8xf32>, vector<4x8x8xf32> -> vector<4x8x8xf32>
    %cst_18 = arith.constant dense<0xFF800000> : vector<4x8xf32>
    %53 = vector.multi_reduction <maximumf>, %52, %cst_18 [2] : vector<4x8x8xf32> to vector<4x8xf32>
    %54 = vector.shape_cast %53 : vector<4x8xf32> to vector<4x8x1xf32>
    %55 = vector.broadcast %54 : vector<4x8x1xf32> to vector<4x8x8xf32>
    %56 = arith.subf %52, %55 : vector<4x8x8xf32>
    %57 = math.exp %56 : vector<4x8x8xf32>
    %cst_19 = arith.constant dense<0.000000e+00> : vector<4x8xf32>
    %58 = vector.multi_reduction <add>, %57, %cst_19 [2] : vector<4x8x8xf32> to vector<4x8xf32>
    %59 = vector.shape_cast %58 : vector<4x8xf32> to vector<4x8x1xf32>
    %60 = vector.broadcast %59 : vector<4x8x1xf32> to vector<4x8x8xf32>
    %61 = arith.divf %57, %60 : vector<4x8x8xf32>
    %cst_20 = arith.constant dense<0.000000e+00> : vector<4x8x8xf32>
    %62 = tpu.matmul %61, %51, %cst_20 {dimension_numbers = #tpu.dot_dimension_numbers<[2], [1], [1], [2], [0, 0, 0, 1, 1, 2], [0], [0]>} : vector<4x8x8xf32>, vector<4x8x8xf32>, vector<4x8x8xf32> -> vector<4x8x8xf32>
    %63 = vector.extract_strided_slice %11 {offsets = [0, 24], sizes = [32, 8], strides = [1, 1]} : vector<32x96xf32> to vector<32x8xf32>
    %64 = vector.shape_cast %63 : vector<32x8xf32> to vector<4x8x8xf32>
    %65 = vector.extract_strided_slice %11 {offsets = [0, 56], sizes = [32, 8], strides = [1, 1]} : vector<32x96xf32> to vector<32x8xf32>
    %66 = vector.shape_cast %65 : vector<32x8xf32> to vector<4x8x8xf32>
    %67 = vector.extract_strided_slice %11 {offsets = [0, 88], sizes = [32, 8], strides = [1, 1]} : vector<32x96xf32> to vector<32x8xf32>
    %68 = vector.shape_cast %67 : vector<32x8xf32> to vector<4x8x8xf32>
    %cst_21 = arith.constant dense<0.000000e+00> : vector<4x8x8xf32>
    %69 = tpu.matmul %64, %66, %cst_21 {dimension_numbers = #tpu.dot_dimension_numbers<[2], [2], [1], [1], [0, 0, 0, 1, 1, 1], [0], [0]>} : vector<4x8x8xf32>, vector<4x8x8xf32>, vector<4x8x8xf32> -> vector<4x8x8xf32>
    %cst_22 = arith.constant dense<0xFF800000> : vector<4x8xf32>
    %70 = vector.multi_reduction <maximumf>, %69, %cst_22 [2] : vector<4x8x8xf32> to vector<4x8xf32>
    %71 = vector.shape_cast %70 : vector<4x8xf32> to vector<4x8x1xf32>
    %72 = vector.broadcast %71 : vector<4x8x1xf32> to vector<4x8x8xf32>
    %73 = arith.subf %69, %72 : vector<4x8x8xf32>
    %74 = math.exp %73 : vector<4x8x8xf32>
    %cst_23 = arith.constant dense<0.000000e+00> : vector<4x8xf32>
    %75 = vector.multi_reduction <add>, %74, %cst_23 [2] : vector<4x8x8xf32> to vector<4x8xf32>
    %76 = vector.shape_cast %75 : vector<4x8xf32> to vector<4x8x1xf32>
    %77 = vector.broadcast %76 : vector<4x8x1xf32> to vector<4x8x8xf32>
    %78 = arith.divf %74, %77 : vector<4x8x8xf32>
    %cst_24 = arith.constant dense<0.000000e+00> : vector<4x8x8xf32>
    %79 = tpu.matmul %78, %68, %cst_24 {dimension_numbers = #tpu.dot_dimension_numbers<[2], [1], [1], [2], [0, 0, 0, 1, 1, 2], [0], [0]>} : vector<4x8x8xf32>, vector<4x8x8xf32>, vector<4x8x8xf32> -> vector<4x8x8xf32>
    %80 = tpu.concatenate %28, %45, %62, %79 in 2 : vector<4x8x8xf32>, vector<4x8x8xf32>, vector<4x8x8xf32>, vector<4x8x8xf32> -> vector<4x8x32xf32>
    %81 = vector.shape_cast %80 : vector<4x8x32xf32> to vector<32x32xf32>
    %c0_25 = arith.constant 0 : index
    %c0_26 = arith.constant 0 : index
    %c0_27 = arith.constant 0 : index
    %82 = vector.load %arg6[%c0_25, %c0_26, %c0_27] : memref<1x32x32xf32, #tpu.memory_space<vmem>>, vector<1x32x32xf32>
    %83 = vector.shape_cast %82 : vector<1x32x32xf32> to vector<32x32xf32>
    %cst_28 = arith.constant dense<0.000000e+00> : vector<32x32xf32>
    %84 = tpu.matmul %81, %83, %cst_28 {dimension_numbers = #tpu.dot_dimension_numbers<[1], [0], [0], [1], [0, 0, 1, 1], [], []>} : vector<32x32xf32>, vector<32x32xf32>, vector<32x32xf32> -> vector<32x32xf32>
    %c0_29 = arith.constant 0 : index
    %c0_30 = arith.constant 0 : index
    %c0_31 = arith.constant 0 : index
    %85 = vector.load %arg7[%c0_29, %c0_30, %c0_31] : memref<1x1x32xf32, #tpu.memory_space<vmem>>, vector<1x1x32xf32>
    %86 = vector.shape_cast %85 : vector<1x1x32xf32> to vector<1x32xf32>
    %87 = vector.broadcast %86 : vector<1x32xf32> to vector<32x32xf32>
    %88 = arith.addf %84, %87 : vector<32x32xf32>
    %89 = arith.addf %4, %88 : vector<32x32xf32>
    %cst_32 = arith.constant dense<0.000000e+00> : vector<32xf32>
    %90 = vector.multi_reduction <add>, %89, %cst_32 [1] : vector<32x32xf32> to vector<32xf32>
    %91 = vector.shape_cast %90 : vector<32xf32> to vector<32x1xf32>
    %cst_33 = arith.constant 3.200000e+01 : f32
    %92 = vector.broadcast %cst_33 : f32 to vector<32x1xf32>
    %93 = arith.divf %91, %92 : vector<32x1xf32>
    %94 = arith.mulf %89, %89 : vector<32x32xf32>
    %cst_34 = arith.constant dense<0.000000e+00> : vector<32xf32>
    %95 = vector.multi_reduction <add>, %94, %cst_34 [1] : vector<32x32xf32> to vector<32xf32>
    %96 = vector.shape_cast %95 : vector<32xf32> to vector<32x1xf32>
    %cst_35 = arith.constant 3.200000e+01 : f32
    %97 = vector.broadcast %cst_35 : f32 to vector<32x1xf32>
    %98 = arith.divf %96, %97 : vector<32x1xf32>
    %99 = arith.mulf %93, %93 : vector<32x1xf32>
    %100 = arith.subf %98, %99 : vector<32x1xf32>
    %101 = vector.broadcast %93 : vector<32x1xf32> to vector<32x32xf32>
    %102 = arith.subf %89, %101 : vector<32x32xf32>
    %cst_36 = arith.constant 9.99999974E-6 : f32
    %103 = vector.broadcast %cst_36 : f32 to vector<32x1xf32>
    %104 = arith.addf %100, %103 : vector<32x1xf32>
    %105 = math.rsqrt %104 : vector<32x1xf32>
    %106 = vector.broadcast %105 : vector<32x1xf32> to vector<32x32xf32>
    %107 = arith.mulf %102, %106 : vector<32x32xf32>
    %c0_37 = arith.constant 0 : index
    %c0_38 = arith.constant 0 : index
    %c0_39 = arith.constant 0 : index
    %108 = vector.load %arg8[%c0_37, %c0_38, %c0_39] : memref<1x1x32xf32, #tpu.memory_space<vmem>>, vector<1x1x32xf32>
    %109 = vector.shape_cast %108 : vector<1x1x32xf32> to vector<1x32xf32>
    %110 = vector.broadcast %109 : vector<1x32xf32> to vector<32x32xf32>
    %111 = arith.mulf %107, %110 : vector<32x32xf32>
    %c0_40 = arith.constant 0 : index
    %c0_41 = arith.constant 0 : index
    %c0_42 = arith.constant 0 : index
    %112 = vector.load %arg9[%c0_40, %c0_41, %c0_42] : memref<1x1x32xf32, #tpu.memory_space<vmem>>, vector<1x1x32xf32>
    %113 = vector.shape_cast %112 : vector<1x1x32xf32> to vector<1x32xf32>
    %114 = vector.broadcast %113 : vector<1x32xf32> to vector<32x32xf32>
    %115 = arith.addf %111, %114 : vector<32x32xf32>
    %c0_43 = arith.constant 0 : index
    %c0_44 = arith.constant 0 : index
    %c0_45 = arith.constant 0 : index
    %116 = vector.load %arg10[%c0_43, %c0_44, %c0_45] : memref<1x32x64xf32, #tpu.memory_space<vmem>>, vector<1x32x64xf32>
    %117 = vector.shape_cast %116 : vector<1x32x64xf32> to vector<32x64xf32>
    %cst_46 = arith.constant dense<0.000000e+00> : vector<32x64xf32>
    %118 = tpu.matmul %115, %117, %cst_46 {dimension_numbers = #tpu.dot_dimension_numbers<[1], [0], [0], [1], [0, 0, 1, 1], [], []>} : vector<32x32xf32>, vector<32x64xf32>, vector<32x64xf32> -> vector<32x64xf32>
    %c0_47 = arith.constant 0 : index
    %c0_48 = arith.constant 0 : index
    %c0_49 = arith.constant 0 : index
    %119 = vector.load %arg11[%c0_47, %c0_48, %c0_49] : memref<1x1x64xf32, #tpu.memory_space<vmem>>, vector<1x1x64xf32>
    %120 = vector.shape_cast %119 : vector<1x1x64xf32> to vector<1x64xf32>
    %121 = vector.broadcast %120 : vector<1x64xf32> to vector<32x64xf32>
    %122 = arith.addf %118, %121 : vector<32x64xf32>
    %cst_50 = arith.constant 0.000000e+00 : f32
    %123 = vector.broadcast %cst_50 : f32 to vector<32x64xf32>
    %124 = arith.maximumf %122, %123 : vector<32x64xf32>
    %c0_51 = arith.constant 0 : index
    %c0_52 = arith.constant 0 : index
    %c0_53 = arith.constant 0 : index
    %125 = vector.load %arg12[%c0_51, %c0_52, %c0_53] : memref<1x64x32xf32, #tpu.memory_space<vmem>>, vector<1x64x32xf32>
    %126 = vector.shape_cast %125 : vector<1x64x32xf32> to vector<64x32xf32>
    %cst_54 = arith.constant dense<0.000000e+00> : vector<32x32xf32>
    %127 = tpu.matmul %124, %126, %cst_54 {dimension_numbers = #tpu.dot_dimension_numbers<[1], [0], [0], [1], [0, 0, 1, 1], [], []>} : vector<32x64xf32>, vector<64x32xf32>, vector<32x32xf32> -> vector<32x32xf32>
    %c0_55 = arith.constant 0 : index
    %c0_56 = arith.constant 0 : index
    %c0_57 = arith.constant 0 : index
    %128 = vector.load %arg13[%c0_55, %c0_56, %c0_57] : memref<1x1x32xf32, #tpu.memory_space<vmem>>, vector<1x1x32xf32>
    %129 = vector.shape_cast %128 : vector<1x1x32xf32> to vector<1x32xf32>
    %130 = vector.broadcast %129 : vector<1x32xf32> to vector<32x32xf32>
    %131 = arith.addf %127, %130 : vector<32x32xf32>
    %132 = arith.addf %115, %131 : vector<32x32xf32>
    %cst_58 = arith.constant dense<0.000000e+00> : vector<32xf32>
    %133 = vector.multi_reduction <add>, %132, %cst_58 [1] : vector<32x32xf32> to vector<32xf32>
    %134 = vector.shape_cast %133 : vector<32xf32> to vector<32x1xf32>
    %cst_59 = arith.constant 3.200000e+01 : f32
    %135 = vector.broadcast %cst_59 : f32 to vector<32x1xf32>
    %136 = arith.divf %134, %135 : vector<32x1xf32>
    %137 = arith.mulf %132, %132 : vector<32x32xf32>
    %cst_60 = arith.constant dense<0.000000e+00> : vector<32xf32>
    %138 = vector.multi_reduction <add>, %137, %cst_60 [1] : vector<32x32xf32> to vector<32xf32>
    %139 = vector.shape_cast %138 : vector<32xf32> to vector<32x1xf32>
    %cst_61 = arith.constant 3.200000e+01 : f32
    %140 = vector.broadcast %cst_61 : f32 to vector<32x1xf32>
    %141 = arith.divf %139, %140 : vector<32x1xf32>
    %142 = arith.mulf %136, %136 : vector<32x1xf32>
    %143 = arith.subf %141, %142 : vector<32x1xf32>
    %144 = vector.broadcast %136 : vector<32x1xf32> to vector<32x32xf32>
    %145 = arith.subf %132, %144 : vector<32x32xf32>
    %cst_62 = arith.constant 9.99999974E-6 : f32
    %146 = vector.broadcast %cst_62 : f32 to vector<32x1xf32>
    %147 = arith.addf %143, %146 : vector<32x1xf32>
    %148 = math.rsqrt %147 : vector<32x1xf32>
    %149 = vector.broadcast %148 : vector<32x1xf32> to vector<32x32xf32>
    %150 = arith.mulf %145, %149 : vector<32x32xf32>
    %c0_63 = arith.constant 0 : index
    %c0_64 = arith.constant 0 : index
    %c0_65 = arith.constant 0 : index
    %151 = vector.load %arg14[%c0_63, %c0_64, %c0_65] : memref<1x1x32xf32, #tpu.memory_space<vmem>>, vector<1x1x32xf32>
    %152 = vector.shape_cast %151 : vector<1x1x32xf32> to vector<1x32xf32>
    %153 = vector.broadcast %152 : vector<1x32xf32> to vector<32x32xf32>
    %154 = arith.mulf %150, %153 : vector<32x32xf32>
    %c0_66 = arith.constant 0 : index
    %c0_67 = arith.constant 0 : index
    %c0_68 = arith.constant 0 : index
    %155 = vector.load %arg15[%c0_66, %c0_67, %c0_68] : memref<1x1x32xf32, #tpu.memory_space<vmem>>, vector<1x1x32xf32>
    %156 = vector.shape_cast %155 : vector<1x1x32xf32> to vector<1x32xf32>
    %157 = vector.broadcast %156 : vector<1x32xf32> to vector<32x32xf32>
    %158 = arith.addf %154, %157 : vector<32x32xf32>
    %159 = vector.shape_cast %158 : vector<32x32xf32> to vector<4x8x32xf32>
    %c0_69 = arith.constant 0 : index
    %c0_70 = arith.constant 0 : index
    %c0_71 = arith.constant 0 : index
    %160 = vector.load %arg16[%c0_69, %c0_70, %c0_71] : memref<4x8x32xf32, #tpu.memory_space<vmem>>, vector<4x8x32xf32>
    tpu.vector_store %arg16[%c0_69, %c0_70, %c0_71], %159 {strides = array<i32>} : memref<4x8x32xf32, #tpu.memory_space<vmem>>, vector<4x8x32xf32>,
    return
  }
  func.func @transform_0(%arg0: i32, %arg1: i32) -> (i32, i32, i32) {
    %c0_i32 = arith.constant 0 : i32
    %c0_i32_0 = arith.constant 0 : i32
    %c0_i32_1 = arith.constant 0 : i32
    return %arg0, %c0_i32, %c0_i32_0 : i32, i32, i32
  }
  func.func @transform_1(%arg0: i32, %arg1: i32) -> (i32, i32, i32) {
    %c0_i32 = arith.constant 0 : i32
    %c0_i32_0 = arith.constant 0 : i32
    %c0_i32_1 = arith.constant 0 : i32
    %c0_i32_2 = arith.constant 0 : i32
    return %c0_i32, %c0_i32_0, %c0_i32_1 : i32, i32, i32
  }
  func.func @transform_2(%arg0: i32, %arg1: i32) -> (i32, i32, i32) {
    %c0_i32 = arith.constant 0 : i32
    %c0_i32_0 = arith.constant 0 : i32
    %c0_i32_1 = arith.constant 0 : i32
    return %arg1, %c0_i32, %c0_i32_0 : i32, i32, i32
  }
  func.func @transform_3(%arg0: i32, %arg1: i32) -> (i32, i32, i32) {
    %c0_i32 = arith.constant 0 : i32
    %c0_i32_0 = arith.constant 0 : i32
    %c0_i32_1 = arith.constant 0 : i32
    return %arg1, %c0_i32, %c0_i32_0 : i32, i32, i32
  }
  func.func @transform_4(%arg0: i32, %arg1: i32) -> (i32, i32, i32) {
    %c0_i32 = arith.constant 0 : i32
    %c0_i32_0 = arith.constant 0 : i32
    %c0_i32_1 = arith.constant 0 : i32
    return %arg1, %c0_i32, %c0_i32_0 : i32, i32, i32
  }
  func.func @transform_5(%arg0: i32, %arg1: i32) -> (i32, i32, i32) {
    %c0_i32 = arith.constant 0 : i32
    %c0_i32_0 = arith.constant 0 : i32
    %c0_i32_1 = arith.constant 0 : i32
    return %arg1, %c0_i32, %c0_i32_0 : i32, i32, i32
  }
  func.func @transform_6(%arg0: i32, %arg1: i32) -> (i32, i32, i32) {
    %c0_i32 = arith.constant 0 : i32
    %c0_i32_0 = arith.constant 0 : i32
    %c0_i32_1 = arith.constant 0 : i32
    return %arg1, %c0_i32, %c0_i32_0 : i32, i32, i32
  }
  func.func @transform_7(%arg0: i32, %arg1: i32) -> (i32, i32, i32) {
    %c0_i32 = arith.constant 0 : i32
    %c0_i32_0 = arith.constant 0 : i32
    %c0_i32_1 = arith.constant 0 : i32
    return %arg1, %c0_i32, %c0_i32_0 : i32, i32, i32
  }
  func.func @transform_8(%arg0: i32, %arg1: i32) -> (i32, i32, i32) {
    %c0_i32 = arith.constant 0 : i32
    %c0_i32_0 = arith.constant 0 : i32
    %c0_i32_1 = arith.constant 0 : i32
    return %arg1, %c0_i32, %c0_i32_0 : i32, i32, i32
  }
  func.func @transform_9(%arg0: i32, %arg1: i32) -> (i32, i32, i32) {
    %c0_i32 = arith.constant 0 : i32
    %c0_i32_0 = arith.constant 0 : i32
    %c0_i32_1 = arith.constant 0 : i32
    return %arg1, %c0_i32, %c0_i32_0 : i32, i32, i32
  }
  func.func @transform_10(%arg0: i32, %arg1: i32) -> (i32, i32, i32) {
    %c0_i32 = arith.constant 0 : i32
    %c0_i32_0 = arith.constant 0 : i32
    %c0_i32_1 = arith.constant 0 : i32
    return %arg1, %c0_i32, %c0_i32_0 : i32, i32, i32
  }
  func.func @transform_11(%arg0: i32, %arg1: i32) -> (i32, i32, i32) {
    %c0_i32 = arith.constant 0 : i32
    %c0_i32_0 = arith.constant 0 : i32
    %c0_i32_1 = arith.constant 0 : i32
    return %arg1, %c0_i32, %c0_i32_0 : i32, i32, i32
  }
  func.func @transform_12(%arg0: i32, %arg1: i32) -> (i32, i32, i32) {
    %c0_i32 = arith.constant 0 : i32
    %c0_i32_0 = arith.constant 0 : i32
    %c0_i32_1 = arith.constant 0 : i32
    return %arg1, %c0_i32, %c0_i32_0 : i32, i32, i32
  }
  func.func @transform_13(%arg0: i32, %arg1: i32) -> (i32, i32, i32) {
    %c0_i32 = arith.constant 0 : i32
    %c0_i32_0 = arith.constant 0 : i32
    %c0_i32_1 = arith.constant 0 : i32
    return %arg1, %c0_i32, %c0_i32_0 : i32, i32, i32
  }
  func.func @transform_14(%arg0: i32, %arg1: i32) -> (i32, i32, i32) {
    %c0_i32 = arith.constant 0 : i32
    %c0_i32_0 = arith.constant 0 : i32
    %c0_i32_1 = arith.constant 0 : i32
    return %arg0, %c0_i32, %c0_i32_0 : i32, i32, i32
  }
}

</mosaic_0001>

<llo_original>
// kernel: tpu_custom_call.1
$region0: #{tpu_custom_call.1}
  #allocation0 [shape = 'u32[]', space=smem, size = 0x4, offset = 0x4, fixed_abs, tag = 'smem constant byte address 0x4 - core index']
  #allocation1 [shape = 'u32[144,128]{1,0:T(1,128)}', space=vmem, size = 0x12000, scoped, tag = 'internal scratch']
  %s0 = inlined_call_operand.vmem [shape: f32[8,8,32], index: 0, kind: input, shape index: {}]
  %s1 = inlined_call_operand.hbm [shape: f32[1,8,32], index: 1, kind: input, shape index: {}]
  %s2 = inlined_call_operand.vmem [shape: f32[2,32,96], index: 2, kind: input, shape index: {}]
  %s3 = inlined_call_operand.vmem [shape: f32[2,1,96], index: 3, kind: input, shape index: {}]
  %s4 = inlined_call_operand.vmem [shape: f32[2,32,32], index: 4, kind: input, shape index: {}]
  %s5 = inlined_call_operand.vmem [shape: f32[2,1,32], index: 5, kind: input, shape index: {}]
  %s6 = inlined_call_operand.vmem [shape: f32[2,1,32], index: 6, kind: input, shape index: {}]
  %s7 = inlined_call_operand.vmem [shape: f32[2,1,32], index: 7, kind: input, shape index: {}]
  %s8 = inlined_call_operand.hbm [shape: f32[2,32,64], index: 8, kind: input, shape index: {}]
  %s9 = inlined_call_operand.vmem [shape: f32[2,1,64], index: 9, kind: input, shape index: {}]
  %s10 = inlined_call_operand.vmem [shape: f32[2,64,32], index: 10, kind: input, shape index: {}]
  %s11 = inlined_call_operand.vmem [shape: f32[2,1,32], index: 11, kind: input, shape index: {}]
  %s12 = inlined_call_operand.vmem [shape: f32[2,1,32], index: 12, kind: input, shape index: {}]
  %s13 = inlined_call_operand.vmem [shape: f32[2,1,32], index: 13, kind: input, shape index: {}]
  %s14 = inlined_call_operand.hbm [shape: f32[8,8,32], index: 14, kind: output, shape index: {}]
  %s15 = sld [smem:[#allocation0]]
  $region101: #{tpu_custom_call.1} parent=0
    _
  %s17 = ssub.s32 1, %s15
  %s18 = scalar_select 0, %s17, %s15
  $region1: #{tpu_custom_call.1} parent=0
    #allocation2 [shape = 'u8[4096]{0}', space=vmem, size = 0x1000, scoped, tag = 'input window, operand 1, single buffered']
    #allocation3 [shape = 's32[2]{0}', space=sflag, size = 0x8, scoped, tag = 'scoped memory for tpu_custom_call.1']
    #allocation4 [shape = 's32[2]{0}', space=sflag, size = 0x8, scoped, tag = 'scoped memory for tpu_custom_call.1']
    #allocation5 [shape = 'u8[32768]{0}', space=vmem, size = 0x8000, scoped, tag = 'input window, operand 8']
    #allocation6 [shape = 's32[2]{0}', space=sflag, size = 0x8, scoped, tag = 'scoped memory for tpu_custom_call.1']
    #allocation7 [shape = 'u8[32768]{0}', space=vmem, size = 0x8000, scoped, tag = 'output window, operand 0']
    %19 = vsyncpa [#allocation3], 0
    %20 = vsyncpa [#allocation6], 0
    %s21 = scalar_lea.sflag [#allocation6], 1
    %22 = vsyncpa %s21, 0
    %23 = vsyncpa [#allocation4], 0
    %s24 = scalar_lea.sflag [#allocation4], 1
    %25 = vsyncpa %s24, 0
    loop: start=0, step=1, limit=6
    $region2: #{tpu_custom_call.1} parent=1 // loop_pre_header
      _
    $region3: #{tpu_custom_call.1} parent=1 // loop_header
      %s27 = sphi 0, %s31
      %p28 = scmp.ge.s32.totalorder %s27, 6
      %s34 = sphi 0, %s46
      %s35 = sphi 0, %s42
      %s36 = sphi 0, %s34
      %s37 = sphi 0, %s35
      %s38 = sphi 0, %s36
      %s39 = sphi 0, %s37
      %s49 = sphi 0, %s51
      %s52 = sphi 0, %s49
      %s53 = sphi 0, %s52
      %s69 = sphi 0, %s53
      %s73 = sphi 0, %s73
      %s75 = sphi 0, %s73
      %s76 = sphi 0, %s75
      %s90 = sphi 0, %s76
      %s96 = sphi 0, %s98
      %s99 = sphi 0, %s96
      %s100 = sphi 0, %s99
      %s116 = sphi 0, %s100
      %s122 = sphi 0, %s124
      %s125 = sphi 0, %s122
      %s126 = sphi 0, %s125
      %s142 = sphi 0, %s126
      %s148 = sphi 0, %s150
      %s151 = sphi 0, %s148
      %s152 = sphi 0, %s151
      %s168 = sphi 0, %s152
      %s174 = sphi 0, %s176
      %s177 = sphi 0, %s174
      %s178 = sphi 0, %s177
      %s194 = sphi 0, %s178
      %s200 = sphi 0, %s202
      %s203 = sphi 0, %s200
      %s204 = sphi 0, %s203
      %s220 = sphi 0, %s204
      %s226 = sphi 0, %s228
      %s229 = sphi 0, %s226
      %s230 = sphi 0, %s229
      %s246 = sphi 0, %s230
      %s252 = sphi 0, %s254
      %s255 = sphi 0, %s252
      %s256 = sphi 0, %s255
      %s272 = sphi 0, %s256
      %s278 = sphi 0, %s280
      %s281 = sphi 0, %s278
      %s282 = sphi 0, %s281
      %s298 = sphi 0, %s282
      %s304 = sphi 0, %s306
      %s307 = sphi 0, %s304
      %s308 = sphi 0, %s307
      %s324 = sphi 0, %s308
      %s330 = sphi 0, %s332
      %s333 = sphi 0, %s330
      %s334 = sphi 0, %s333
      %s350 = sphi 0, %s334
      %s356 = sphi 0, %s358
      %s359 = sphi 0, %s356
      %s360 = sphi 0, %s359
      %s376 = sphi 0, %s360
      %s382 = sphi 0, %s384
      %s385 = sphi 0, %s382
      %s386 = sphi 0, %s385
      %s402 = sphi 0, %s386
      %s408 = sphi 0, %s410
      %s411 = sphi 0, %s408
      %s412 = sphi 0, %s411
      %s428 = sphi 0, %s412
    $region4: #{tpu_custom_call.1} parent=1 // loop_header_branch
      %30 = sbr.rel (%p28) target = $region8
    $region5: #{tpu_custom_call.1} parent=1 // loop_body
      %s32 = ssub.s32 %s27, 1
      %s33 = ssub.s32 %s27, 2
      %s40 = sadd.s32 1, %s35
      %p41 = scmp.ge.s32.totalorder %s40, 2
      %s42 = scalar_select %p41, 0, %s40
      %s43 = sadd.s32 1, %s34
      %s44 = scalar_select %p41, %s43, %s34
      %p45 = scmp.ge.s32.totalorder %s44, 2
      %s46 = scalar_select %p45, 0, %s44
      %s47 = ssub.s32 %s34, %s46
      %p48 = scmp.eq.s32.totalorder %s47, 0
      %s50 = sadd.s32 %s49, 1
      %s51 = scalar_select %p48, %s49, %s50
      %p54 = pneg %p48
      %p55 = scmp.eq.s32.totalorder %s27, 3
      %p56 = por %p54, %p55
      %p57 = scmp.ne.s32.totalorder %s49, %s52
      %p58 = scmp.eq.s32.totalorder %s27, 0
      %p59 = por %p57, %p58
      %p60 = scmp.ne.s32.totalorder %s49, %s52
      %p61 = scmp.eq.s32.totalorder %s32, 3
      %p62 = por %p60, %p61
      %p63 = scmp.ne.s32.totalorder %s52, %s53
      %p64 = scmp.eq.s32.totalorder %s32, 0
      %p65 = por %p63, %p64
      %p66 = scmp.ne.s32.totalorder %s52, %s53
      %p67 = scmp.eq.s32.totalorder %s33, 3
      %p68 = por %p66, %p67
      %p70 = scmp.ne.s32.totalorder %s53, %s69
      %p71 = scmp.eq.s32.totalorder %s33, 0
      %p72 = por %p70, %p71
      %s74 = sadd.s32 %s73, 1
      %p77 = scmp.eq.s32.totalorder %s27, 3
      %p78 = scmp.ne.s32.totalorder %s73, %s75
      %p79 = scmp.eq.s32.totalorder %s27, 0
      %p80 = por %p78, %p79
      %p81 = scmp.ne.s32.totalorder %s73, %s75
      %p82 = scmp.eq.s32.totalorder %s32, 3
      %p83 = por %p81, %p82
      %p84 = scmp.ne.s32.totalorder %s75, %s76
      %p85 = scmp.eq.s32.totalorder %s32, 0
      %p86 = por %p84, %p85
      %p87 = scmp.ne.s32.totalorder %s75, %s76
      %p88 = scmp.eq.s32.totalorder %s33, 3
      %p89 = por %p87, %p88
      %p91 = scmp.ne.s32.totalorder %s76, %s90
      %p92 = scmp.eq.s32.totalorder %s33, 0
      %p93 = por %p91, %p92
      %s94 = ssub.s32 %s35, %s42
      %p95 = scmp.eq.s32.totalorder %s94, 0
      %s97 = sadd.s32 %s96, 1
      %s98 = scalar_select %p95, %s96, %s97
      %p101 = pneg %p95
      %p102 = scmp.eq.s32.totalorder %s27, 3
      %p103 = por %p101, %p102
      %p104 = scmp.ne.s32.totalorder %s96, %s99
      %p105 = scmp.eq.s32.totalorder %s27, 0
      %p106 = por %p104, %p105
      %p107 = scmp.ne.s32.totalorder %s96, %s99
      %p108 = scmp.eq.s32.totalorder %s32, 3
      %p109 = por %p107, %p108
      %p110 = scmp.ne.s32.totalorder %s99, %s100
      %p111 = scmp.eq.s32.totalorder %s32, 0
      %p112 = por %p110, %p111
      %p113 = scmp.ne.s32.totalorder %s99, %s100
      %p114 = scmp.eq.s32.totalorder %s33, 3
      %p115 = por %p113, %p114
      %p117 = scmp.ne.s32.totalorder %s100, %s116
      %p118 = scmp.eq.s32.totalorder %s33, 0
      %p119 = por %p117, %p118
      %s120 = ssub.s32 %s35, %s42
      %p121 = scmp.eq.s32.totalorder %s120, 0
      %s123 = sadd.s32 %s122, 1
      %s124 = scalar_select %p121, %s122, %s123
      %p127 = pneg %p121
      %p128 = scmp.eq.s32.totalorder %s27, 3
      %p129 = por %p127, %p128
      %p130 = scmp.ne.s32.totalorder %s122, %s125
      %p131 = scmp.eq.s32.totalorder %s27, 0
      %p132 = por %p130, %p131
      %p133 = scmp.ne.s32.totalorder %s122, %s125
      %p134 = scmp.eq.s32.totalorder %s32, 3
      %p135 = por %p133, %p134
      %p136 = scmp.ne.s32.totalorder %s125, %s126
      %p137 = scmp.eq.s32.totalorder %s32, 0
      %p138 = por %p136, %p137
      %p139 = scmp.ne.s32.totalorder %s125, %s126
      %p140 = scmp.eq.s32.totalorder %s33, 3
      %p141 = por %p139, %p140
      %p143 = scmp.ne.s32.totalorder %s126, %s142
      %p144 = scmp.eq.s32.totalorder %s33, 0
      %p145 = por %p143, %p144
      %s146 = ssub.s32 %s35, %s42
      %p147 = scmp.eq.s32.totalorder %s146, 0
      %s149 = sadd.s32 %s148, 1
      %s150 = scalar_select %p147, %s148, %s149
      %p153 = pneg %p147
      %p154 = scmp.eq.s32.totalorder %s27, 3
      %p155 = por %p153, %p154
      %p156 = scmp.ne.s32.totalorder %s148, %s151
      %p157 = scmp.eq.s32.totalorder %s27, 0
      %p158 = por %p156, %p157
      %p159 = scmp.ne.s32.totalorder %s148, %s151
      %p160 = scmp.eq.s32.totalorder %s32, 3
      %p161 = por %p159, %p160
      %p162 = scmp.ne.s32.totalorder %s151, %s152
      %p163 = scmp.eq.s32.totalorder %s32, 0
      %p164 = por %p162, %p163
      %p165 = scmp.ne.s32.totalorder %s151, %s152
      %p166 = scmp.eq.s32.totalorder %s33, 3
      %p167 = por %p165, %p166
      %p169 = scmp.ne.s32.totalorder %s152, %s168
      %p170 = scmp.eq.s32.totalorder %s33, 0
      %p171 = por %p169, %p170
      %s172 = ssub.s32 %s35, %s42
      %p173 = scmp.eq.s32.totalorder %s172, 0
      %s175 = sadd.s32 %s174, 1
      %s176 = scalar_select %p173, %s174, %s175
      %p179 = pneg %p173
      %p180 = scmp.eq.s32.totalorder %s27, 3
      %p181 = por %p179, %p180
      %p182 = scmp.ne.s32.totalorder %s174, %s177
      %p183 = scmp.eq.s32.totalorder %s27, 0
      %p184 = por %p182, %p183
      %p185 = scmp.ne.s32.totalorder %s174, %s177
      %p186 = scmp.eq.s32.totalorder %s32, 3
      %p187 = por %p185, %p186
      %p188 = scmp.ne.s32.totalorder %s177, %s178
      %p189 = scmp.eq.s32.totalorder %s32, 0
      %p190 = por %p188, %p189
      %p191 = scmp.ne.s32.totalorder %s177, %s178
      %p192 = scmp.eq.s32.totalorder %s33, 3
      %p193 = por %p191, %p192
      %p195 = scmp.ne.s32.totalorder %s178, %s194
      %p196 = scmp.eq.s32.totalorder %s33, 0
      %p197 = por %p195, %p196
      %s198 = ssub.s32 %s35, %s42
      %p199 = scmp.eq.s32.totalorder %s198, 0
      %s201 = sadd.s32 %s200, 1
      %s202 = scalar_select %p199, %s200, %s201
      %p205 = pneg %p199
      %p206 = scmp.eq.s32.totalorder %s27, 3
      %p207 = por %p205, %p206
      %p208 = scmp.ne.s32.totalorder %s200, %s203
      %p209 = scmp.eq.s32.totalorder %s27, 0
      %p210 = por %p208, %p209
      %p211 = scmp.ne.s32.totalorder %s200, %s203
      %p212 = scmp.eq.s32.totalorder %s32, 3
      %p213 = por %p211, %p212
      %p214 = scmp.ne.s32.totalorder %s203, %s204
      %p215 = scmp.eq.s32.totalorder %s32, 0
      %p216 = por %p214, %p215
      %p217 = scmp.ne.s32.totalorder %s203, %s204
      %p218 = scmp.eq.s32.totalorder %s33, 3
      %p219 = por %p217, %p218
      %p221 = scmp.ne.s32.totalorder %s204, %s220
      %p222 = scmp.eq.s32.totalorder %s33, 0
      %p223 = por %p221, %p222
      %s224 = ssub.s32 %s35, %s42
      %p225 = scmp.eq.s32.totalorder %s224, 0
      %s227 = sadd.s32 %s226, 1
      %s228 = scalar_select %p225, %s226, %s227
      %p231 = pneg %p225
      %p232 = scmp.eq.s32.totalorder %s27, 3
      %p233 = por %p231, %p232
      %p234 = scmp.ne.s32.totalorder %s226, %s229
      %p235 = scmp.eq.s32.totalorder %s27, 0
      %p236 = por %p234, %p235
      %p237 = scmp.ne.s32.totalorder %s226, %s229
      %p238 = scmp.eq.s32.totalorder %s32, 3
      %p239 = por %p237, %p238
      %p240 = scmp.ne.s32.totalorder %s229, %s230
      %p241 = scmp.eq.s32.totalorder %s32, 0
      %p242 = por %p240, %p241
      %p243 = scmp.ne.s32.totalorder %s229, %s230
      %p244 = scmp.eq.s32.totalorder %s33, 3
      %p245 = por %p243, %p244
      %p247 = scmp.ne.s32.totalorder %s230, %s246
      %p248 = scmp.eq.s32.totalorder %s33, 0
      %p249 = por %p247, %p248
      %s250 = ssub.s32 %s35, %s42
      %p251 = scmp.eq.s32.totalorder %s250, 0
      %s253 = sadd.s32 %s252, 1
      %s254 = scalar_select %p251, %s252, %s253
      %p257 = pneg %p251
      %p258 = scmp.eq.s32.totalorder %s27, 3
      %p259 = por %p257, %p258
      %p260 = scmp.ne.s32.totalorder %s252, %s255
      %p261 = scmp.eq.s32.totalorder %s27, 0
      %p262 = por %p260, %p261
      %p263 = scmp.ne.s32.totalorder %s252, %s255
      %p264 = scmp.eq.s32.totalorder %s32, 3
      %p265 = por %p263, %p264
      %p266 = scmp.ne.s32.totalorder %s255, %s256
      %p267 = scmp.eq.s32.totalorder %s32, 0
      %p268 = por %p266, %p267
      %p269 = scmp.ne.s32.totalorder %s255, %s256
      %p270 = scmp.eq.s32.totalorder %s33, 3
      %p271 = por %p269, %p270
      %p273 = scmp.ne.s32.totalorder %s256, %s272
      %p274 = scmp.eq.s32.totalorder %s33, 0
      %p275 = por %p273, %p274
      %s276 = ssub.s32 %s35, %s42
      %p277 = scmp.eq.s32.totalorder %s276, 0
      %s279 = sadd.s32 %s278, 1
      %s280 = scalar_select %p277, %s278, %s279
      %p283 = pneg %p277
      %p284 = scmp.eq.s32.totalorder %s27, 3
      %p285 = por %p283, %p284
      %p286 = scmp.ne.s32.totalorder %s278, %s281
      %p287 = scmp.eq.s32.totalorder %s27, 0
      %p288 = por %p286, %p287
      %p289 = scmp.ne.s32.totalorder %s278, %s281
      %p290 = scmp.eq.s32.totalorder %s32, 3
      %p291 = por %p289, %p290
      %p292 = scmp.ne.s32.totalorder %s281, %s282
      %p293 = scmp.eq.s32.totalorder %s32, 0
      %p294 = por %p292, %p293
      %p295 = scmp.ne.s32.totalorder %s281, %s282
      %p296 = scmp.eq.s32.totalorder %s33, 3
      %p297 = por %p295, %p296
      %p299 = scmp.ne.s32.totalorder %s282, %s298
      %p300 = scmp.eq.s32.totalorder %s33, 0
      %p301 = por %p299, %p300
      %s302 = ssub.s32 %s35, %s42
      %p303 = scmp.eq.s32.totalorder %s302, 0
      %s305 = sadd.s32 %s304, 1
      %s306 = scalar_select %p303, %s304, %s305
      %p309 = pneg %p303
      %p310 = scmp.eq.s32.totalorder %s27, 3
      %p311 = por %p309, %p310
      %p312 = scmp.ne.s32.totalorder %s304, %s307
      %p313 = scmp.eq.s32.totalorder %s27, 0
      %p314 = por %p312, %p313
      %p315 = scmp.ne.s32.totalorder %s304, %s307
      %p316 = scmp.eq.s32.totalorder %s32, 3
      %p317 = por %p315, %p316
      %p318 = scmp.ne.s32.totalorder %s307, %s308
      %p319 = scmp.eq.s32.totalorder %s32, 0
      %p320 = por %p318, %p319
      %p321 = scmp.ne.s32.totalorder %s307, %s308
      %p322 = scmp.eq.s32.totalorder %s33, 3
      %p323 = por %p321, %p322
      %p325 = scmp.ne.s32.totalorder %s308, %s324
      %p326 = scmp.eq.s32.totalorder %s33, 0
      %p327 = por %p325, %p326
      %s328 = ssub.s32 %s35, %s42
      %p329 = scmp.eq.s32.totalorder %s328, 0
      %s331 = sadd.s32 %s330, 1
      %s332 = scalar_select %p329, %s330, %s331
      %p335 = pneg %p329
      %p336 = scmp.eq.s32.totalorder %s27, 3
      %p337 = por %p335, %p336
      %p338 = scmp.ne.s32.totalorder %s330, %s333
      %p339 = scmp.eq.s32.totalorder %s27, 0
      %p340 = por %p338, %p339
      %p341 = scmp.ne.s32.totalorder %s330, %s333
      %p342 = scmp.eq.s32.totalorder %s32, 3
      %p343 = por %p341, %p342
      %p344 = scmp.ne.s32.totalorder %s333, %s334
      %p345 = scmp.eq.s32.totalorder %s32, 0
      %p346 = por %p344, %p345
      %p347 = scmp.ne.s32.totalorder %s333, %s334
      %p348 = scmp.eq.s32.totalorder %s33, 3
      %p349 = por %p347, %p348
      %p351 = scmp.ne.s32.totalorder %s334, %s350
      %p352 = scmp.eq.s32.totalorder %s33, 0
      %p353 = por %p351, %p352
      %s354 = ssub.s32 %s35, %s42
      %p355 = scmp.eq.s32.totalorder %s354, 0
      %s357 = sadd.s32 %s356, 1
      %s358 = scalar_select %p355, %s356, %s357
      %p361 = pneg %p355
      %p362 = scmp.eq.s32.totalorder %s27, 3
      %p363 = por %p361, %p362
      %p364 = scmp.ne.s32.totalorder %s356, %s359
      %p365 = scmp.eq.s32.totalorder %s27, 0
      %p366 = por %p364, %p365
      %p367 = scmp.ne.s32.totalorder %s356, %s359
      %p368 = scmp.eq.s32.totalorder %s32, 3
      %p369 = por %p367, %p368
      %p370 = scmp.ne.s32.totalorder %s359, %s360
      %p371 = scmp.eq.s32.totalorder %s32, 0
      %p372 = por %p370, %p371
      %p373 = scmp.ne.s32.totalorder %s359, %s360
      %p374 = scmp.eq.s32.totalorder %s33, 3
      %p375 = por %p373, %p374
      %p377 = scmp.ne.s32.totalorder %s360, %s376
      %p378 = scmp.eq.s32.totalorder %s33, 0
      %p379 = por %p377, %p378
      %s380 = ssub.s32 %s35, %s42
      %p381 = scmp.eq.s32.totalorder %s380, 0
      %s383 = sadd.s32 %s382, 1
      %s384 = scalar_select %p381, %s382, %s383
      %p387 = pneg %p381
      %p388 = scmp.eq.s32.totalorder %s27, 3
      %p389 = por %p387, %p388
      %p390 = scmp.ne.s32.totalorder %s382, %s385
      %p391 = scmp.eq.s32.totalorder %s27, 0
      %p392 = por %p390, %p391
      %p393 = scmp.ne.s32.totalorder %s382, %s385
      %p394 = scmp.eq.s32.totalorder %s32, 3
      %p395 = por %p393, %p394
      %p396 = scmp.ne.s32.totalorder %s385, %s386
      %p397 = scmp.eq.s32.totalorder %s32, 0
      %p398 = por %p396, %p397
      %p399 = scmp.ne.s32.totalorder %s385, %s386
      %p400 = scmp.eq.s32.totalorder %s33, 3
      %p401 = por %p399, %p400
      %p403 = scmp.ne.s32.totalorder %s386, %s402
      %p404 = scmp.eq.s32.totalorder %s33, 0
      %p405 = por %p403, %p404
      %s406 = ssub.s32 %s34, %s46
      %p407 = scmp.eq.s32.totalorder %s406, 0
      %s409 = sadd.s32 %s408, 1
      %s410 = scalar_select %p407, %s408, %s409
      %p413 = pneg %p407
      %p414 = scmp.eq.s32.totalorder %s27, 3
      %p415 = por %p413, %p414
      %p416 = scmp.ne.s32.totalorder %s408, %s411
      %p417 = scmp.eq.s32.totalorder %s27, 0
      %p418 = por %p416, %p417
      %p419 = scmp.ne.s32.totalorder %s408, %s411
      %p420 = scmp.eq.s32.totalorder %s32, 3
      %p421 = por %p419, %p420
      %p422 = scmp.ne.s32.totalorder %s411, %s412
      %p423 = scmp.eq.s32.totalorder %s32, 0
      %p424 = por %p422, %p423
      %p425 = scmp.ne.s32.totalorder %s411, %s412
      %p426 = scmp.eq.s32.totalorder %s33, 3
      %p427 = por %p425, %p426
      %p429 = scmp.ne.s32.totalorder %s412, %s428
      %p430 = scmp.eq.s32.totalorder %s33, 0
      %p431 = por %p429, %p430
      %p432 = scmp.le.s32.totalorder 1, %s27
      %p433 = scmp.lt.s32.totalorder %s27, 5
      %p434 = pnand %p432, %p433
      %p435 = pneg %p434
      // Predicated region
      $region9: #{tpu_custom_call.1} parent=5 // pred_check
        _
      $region10: #{tpu_custom_call.1} parent=5 // pred_check_branch
        %437 = sbr.rel (%p434) target = $region12
      $region11: #{tpu_custom_call.1} parent=5 // pred_region
        %s438 = ssub.s32 %s27, 1
        // Predicated region
        $region13: #{tpu_custom_call.1} parent=11 // pred_check
          %p439 = pneg %p86
        $region14: #{tpu_custom_call.1} parent=11 // pred_check_branch
          %441 = sbr.rel (%p439) target = $region16
        $region15: #{tpu_custom_call.1} parent=11 // pred_region
          %s443 = ssub.s32 128, 128
          %444 = vsyncadd [#allocation3], %s443
          %s446 = sshll.u32 [#allocation2], 4
          %s447 = int_to_ptr.vmem [resolvable:$true] %s446
          %449 = dma.hbm_to_vmem [thread:$0]  %s1, 128, %s447, [#allocation3]
        $region16: #{tpu_custom_call.1} parent=11 // pred_fallthru
          _
      $region12: #{tpu_custom_call.1} parent=5 // pred_fallthru
        _
      %p450 = scmp.lt.s32.totalorder %s27, 4
      // Predicated region
      $region17: #{tpu_custom_call.1} parent=5 // pred_check
        %p451 = pneg %p450
      $region18: #{tpu_custom_call.1} parent=5 // pred_check_branch
        %453 = sbr.rel (%p451) target = $region20
      $region19: #{tpu_custom_call.1} parent=5 // pred_region
        // Predicated region
        $region21: #{tpu_custom_call.1} parent=19 // pred_check
          %p454 = pneg %p59
        $region22: #{tpu_custom_call.1} parent=19 // pred_check_branch
          %456 = sbr.rel (%p454) target = $region24
        $region23: #{tpu_custom_call.1} parent=19 // pred_region
          %s457 = smul.u32 4, %s34
          %p458 = scmp.lt.s32.totalorder %s457, 7
          %s459 = scalar_select %p458, %s457, 7
          %s460 = smul.addr %s459, 8
          %s461 = scalar_lea.vmem %s0, %s460
          %s462 = smul.u32 4, %s34
        $region24: #{tpu_custom_call.1} parent=19 // pred_fallthru
          _
        // Predicated region
        $region25: #{tpu_custom_call.1} parent=19 // pred_check
          %p463 = pneg %p106
        $region26: #{tpu_custom_call.1} parent=19 // pred_check_branch
          %465 = sbr.rel (%p463) target = $region28
        $region27: #{tpu_custom_call.1} parent=19 // pred_region
          %p466 = scmp.lt.s32.totalorder %s35, 1
          %s467 = scalar_select %p466, %s35, 1
          %s468 = smul.addr %s467, 4
          %s469 = smul.addr %s468, 8
          %s470 = scalar_lea.vmem %s2, %s469
        $region28: #{tpu_custom_call.1} parent=19 // pred_fallthru
          _
        // Predicated region
        $region29: #{tpu_custom_call.1} parent=19 // pred_check
          %p471 = pneg %p132
        $region30: #{tpu_custom_call.1} parent=19 // pred_check_branch
          %473 = sbr.rel (%p471) target = $region32
        $region31: #{tpu_custom_call.1} parent=19 // pred_region
          %p474 = scmp.lt.s32.totalorder %s35, 1
          %s475 = scalar_select %p474, %s35, 1
          %s476 = scalar_lea.vmem %s3, %s475
        $region32: #{tpu_custom_call.1} parent=19 // pred_fallthru
          _
        // Predicated region
        $region33: #{tpu_custom_call.1} parent=19 // pred_check
          %p477 = pneg %p158
        $region34: #{tpu_custom_call.1} parent=19 // pred_check_branch
          %479 = sbr.rel (%p477) target = $region36
        $region35: #{tpu_custom_call.1} parent=19 // pred_region
          %p480 = scmp.lt.s32.totalorder %s35, 1
          %s481 = scalar_select %p480, %s35, 1
          %s482 = smul.addr %s481, 4
          %s483 = smul.addr %s482, 8
          %s484 = scalar_lea.vmem %s4, %s483
        $region36: #{tpu_custom_call.1} parent=19 // pred_fallthru
          _
        // Predicated region
        $region37: #{tpu_custom_call.1} parent=19 // pred_check
          %p485 = pneg %p184
        $region38: #{tpu_custom_call.1} parent=19 // pred_check_branch
          %487 = sbr.rel (%p485) target = $region40
        $region39: #{tpu_custom_call.1} parent=19 // pred_region
          %p488 = scmp.lt.s32.totalorder %s35, 1
          %s489 = scalar_select %p488, %s35, 1
          %s490 = scalar_lea.vmem %s5, %s489
        $region40: #{tpu_custom_call.1} parent=19 // pred_fallthru
          _
        // Predicated region
        $region41: #{tpu_custom_call.1} parent=19 // pred_check
          %p491 = pneg %p210
        $region42: #{tpu_custom_call.1} parent=19 // pred_check_branch
          %493 = sbr.rel (%p491) target = $region44
        $region43: #{tpu_custom_call.1} parent=19 // pred_region
          %p494 = scmp.lt.s32.totalorder %s35, 1
          %s495 = scalar_select %p494, %s35, 1
          %s496 = scalar_lea.vmem %s6, %s495
        $region44: #{tpu_custom_call.1} parent=19 // pred_fallthru
          _
        // Predicated region
        $region45: #{tpu_custom_call.1} parent=19 // pred_check
          %p497 = pneg %p236
        $region46: #{tpu_custom_call.1} parent=19 // pred_check_branch
          %499 = sbr.rel (%p497) target = $region48
        $region47: #{tpu_custom_call.1} parent=19 // pred_region
          %p500 = scmp.lt.s32.totalorder %s35, 1
          %s501 = scalar_select %p500, %s35, 1
          %s502 = scalar_lea.vmem %s7, %s501
        $region48: #{tpu_custom_call.1} parent=19 // pred_fallthru
          _
        // Predicated region
        $region49: #{tpu_custom_call.1} parent=19 // pred_check
          %p503 = pneg %p262
        $region50: #{tpu_custom_call.1} parent=19 // pred_check_branch
          %505 = sbr.rel (%p503) target = $region52
        $region51: #{tpu_custom_call.1} parent=19 // pred_region
          %s506 = sand.u32 %s252, 1
          %s507 = scalar_lea.sflag [#allocation6], %s506
          %s508 = sand.u32 %s252, 1
          %s509 = smul.addr %s508, 32
          %s510 = scalar_lea.vmem [#allocation5], %s509
          %s512 = ssub.s32 512, 512
          %513 = vsyncadd %s507, %s512
          %s514 = smul.addr %s35, 4
          %s515 = smul.addr %s514, 128
          %s516 = scalar_lea.hbm %s8, %s515
          %s517 = sshll.u32 %s510, 4
          %s518 = int_to_ptr.vmem [resolvable:$true] %s517
          %523 = dma.hbm_to_vmem [thread:$0]  %s516, 512, %s518, %s507, 128, 128, 8
        $region52: #{tpu_custom_call.1} parent=19 // pred_fallthru
          _
        // Predicated region
        $region53: #{tpu_custom_call.1} parent=19 // pred_check
          %p524 = pneg %p288
        $region54: #{tpu_custom_call.1} parent=19 // pred_check_branch
          %526 = sbr.rel (%p524) target = $region56
        $region55: #{tpu_custom_call.1} parent=19 // pred_region
          %p527 = scmp.lt.s32.totalorder %s35, 1
          %s528 = scalar_select %p527, %s35, 1
          %s529 = scalar_lea.vmem %s9, %s528
        $region56: #{tpu_custom_call.1} parent=19 // pred_fallthru
          _
        // Predicated region
        $region57: #{tpu_custom_call.1} parent=19 // pred_check
          %p530 = pneg %p314
        $region58: #{tpu_custom_call.1} parent=19 // pred_check_branch
          %532 = sbr.rel (%p530) target = $region60
        $region59: #{tpu_custom_call.1} parent=19 // pred_region
          %p533 = scmp.lt.s32.totalorder %s35, 1
          %s534 = scalar_select %p533, %s35, 1
          %s535 = smul.addr %s534, 8
          %s536 = smul.addr %s535, 8
          %s537 = scalar_lea.vmem %s10, %s536
        $region60: #{tpu_custom_call.1} parent=19 // pred_fallthru
          _
        // Predicated region
        $region61: #{tpu_custom_call.1} parent=19 // pred_check
          %p538 = pneg %p340
        $region62: #{tpu_custom_call.1} parent=19 // pred_check_branch
          %540 = sbr.rel (%p538) target = $region64
        $region63: #{tpu_custom_call.1} parent=19 // pred_region
          %p541 = scmp.lt.s32.totalorder %s35, 1
          %s542 = scalar_select %p541, %s35, 1
          %s543 = scalar_lea.vmem %s11, %s542
        $region64: #{tpu_custom_call.1} parent=19 // pred_fallthru
          _
        // Predicated region
        $region65: #{tpu_custom_call.1} parent=19 // pred_check
          %p544 = pneg %p366
        $region66: #{tpu_custom_call.1} parent=19 // pred_check_branch
          %546 = sbr.rel (%p544) target = $region68
        $region67: #{tpu_custom_call.1} parent=19 // pred_region
          %p547 = scmp.lt.s32.totalorder %s35, 1
          %s548 = scalar_select %p547, %s35, 1
          %s549 = scalar_lea.vmem %s12, %s548
        $region68: #{tpu_custom_call.1} parent=19 // pred_fallthru
          _
        // Predicated region
        $region69: #{tpu_custom_call.1} parent=19 // pred_check
          %p550 = pneg %p392
        $region70: #{tpu_custom_call.1} parent=19 // pred_check_branch
          %552 = sbr.rel (%p550) target = $region72
        $region71: #{tpu_custom_call.1} parent=19 // pred_region
          %p553 = scmp.lt.s32.totalorder %s35, 1
          %s554 = scalar_select %p553, %s35, 1
          %s555 = scalar_lea.vmem %s13, %s554
        $region72: #{tpu_custom_call.1} parent=19 // pred_fallthru
          _
      $region20: #{tpu_custom_call.1} parent=5 // pred_fallthru
        _
      %p556 = scmp.le.s32.totalorder 1, %s27
      %p557 = scmp.lt.s32.totalorder %s27, 5
      %p558 = pnand %p556, %p557
      %p559 = pneg %p558
      // Predicated region
      $region73: #{tpu_custom_call.1} parent=5 // pred_check
        _
      $region74: #{tpu_custom_call.1} parent=5 // pred_check_branch
        %561 = sbr.rel (%p558) target = $region76
      $region75: #{tpu_custom_call.1} parent=5 // pred_region
        %s562 = ssub.s32 %s27, 1
        // Predicated region
        $region77: #{tpu_custom_call.1} parent=75 // pred_check
          %p563 = pneg %p86
        $region78: #{tpu_custom_call.1} parent=75 // pred_check_branch
          %565 = sbr.rel (%p563) target = $region80
        $region79: #{tpu_custom_call.1} parent=75 // pred_region
          %566 = dma.done [#allocation3], 128
        $region80: #{tpu_custom_call.1} parent=75 // pred_fallthru
          _
        %s567 = sand.u32 %s255, 1
        %s568 = scalar_lea.sflag [#allocation6], %s567
        %s569 = sand.u32 %s255, 1
        %s570 = smul.addr %s569, 32
        %s571 = scalar_lea.vmem [#allocation5], %s570
        // Predicated region
        $region81: #{tpu_custom_call.1} parent=75 // pred_check
          %p572 = pneg %p268
        $region82: #{tpu_custom_call.1} parent=75 // pred_check_branch
          %574 = sbr.rel (%p572) target = $region84
        $region83: #{tpu_custom_call.1} parent=75 // pred_region
          %575 = dma.done %s568, 512
        $region84: #{tpu_custom_call.1} parent=75 // pred_fallthru
          _
        %s576 = smul.u32 4, %s36
        %p577 = scmp.lt.s32.totalorder %s576, 7
        %s578 = scalar_select %p577, %s576, 7
        %s579 = smul.addr %s578, 8
        %s580 = scalar_lea.vmem %s0, %s579
        %p581 = pneg %p65
        %p582 = pneg %p62
        %p583 = pneg %p86
        %p584 = pneg %p83
        %p585 = scmp.lt.s32.totalorder %s37, 1
        %s586 = scalar_select %p585, %s37, 1
        %s587 = smul.addr %s586, 4
        %s588 = smul.addr %s587, 8
        %s589 = scalar_lea.vmem %s2, %s588
        %p590 = pneg %p112
        %p591 = pneg %p109
        %p592 = scmp.lt.s32.totalorder %s37, 1
        %s593 = scalar_select %p592, %s37, 1
        %s594 = scalar_lea.vmem %s3, %s593
        %p595 = pneg %p138
        %p596 = pneg %p135
        %p597 = scmp.lt.s32.totalorder %s37, 1
        %s598 = scalar_select %p597, %s37, 1
        %s599 = smul.addr %s598, 4
        %s600 = smul.addr %s599, 8
        %s601 = scalar_lea.vmem %s4, %s600
        %p602 = pneg %p164
        %p603 = pneg %p161
        %p604 = scmp.lt.s32.totalorder %s37, 1
        %s605 = scalar_select %p604, %s37, 1
        %s606 = scalar_lea.vmem %s5, %s605
        %p607 = pneg %p190
        %p608 = pneg %p187
        %p609 = scmp.lt.s32.totalorder %s37, 1
        %s610 = scalar_select %p609, %s37, 1
        %s611 = scalar_lea.vmem %s6, %s610
        %p612 = pneg %p216
        %p613 = pneg %p213
        %p614 = scmp.lt.s32.totalorder %s37, 1
        %s615 = scalar_select %p614, %s37, 1
        %s616 = scalar_lea.vmem %s7, %s615
        %p617 = pneg %p242
        %p618 = pneg %p239
        %s619 = sand.u32 %s255, 1
        %s620 = scalar_lea.sflag [#allocation6], %s619
        %s621 = sand.u32 %s255, 1
        %s622 = smul.addr %s621, 32
        %s623 = scalar_lea.vmem [#allocation5], %s622
        %p624 = pneg %p268
        %p625 = pneg %p265
        %p626 = scmp.lt.s32.totalorder %s37, 1
        %s627 = scalar_select %p626, %s37, 1
        %s628 = scalar_lea.vmem %s9, %s627
        %p629 = pneg %p294
        %p630 = pneg %p291
        %p631 = scmp.lt.s32.totalorder %s37, 1
        %s632 = scalar_select %p631, %s37, 1
        %s633 = smul.addr %s632, 8
        %s634 = smul.addr %s633, 8
        %s635 = scalar_lea.vmem %s10, %s634
        %p636 = pneg %p320
        %p637 = pneg %p317
        %p638 = scmp.lt.s32.totalorder %s37, 1
        %s639 = scalar_select %p638, %s37, 1
        %s640 = scalar_lea.vmem %s11, %s639
        %p641 = pneg %p346
        %p642 = pneg %p343
        %p643 = scmp.lt.s32.totalorder %s37, 1
        %s644 = scalar_select %p643, %s37, 1
        %s645 = scalar_lea.vmem %s12, %s644
        %p646 = pneg %p372
        %p647 = pneg %p369
        %p648 = scmp.lt.s32.totalorder %s37, 1
        %s649 = scalar_select %p648, %s37, 1
        %s650 = scalar_lea.vmem %s13, %s649
        %p651 = pneg %p398
        %p652 = pneg %p395
        %p653 = pneg %p424
        %p654 = pneg %p421
        %s655 = sand.u32 %s411, 1
        %s656 = scalar_lea.sflag [#allocation4], %s655
        %s657 = sand.u32 %s411, 1
        %s658 = smul.addr %s657, 32
        %s659 = scalar_lea.vmem [#allocation7], %s658
        %s660 = smul.u32 4, %s36
        %p661 = scmp.lt.s32.totalorder %s660, 7
        %s662 = scalar_select %p661, %s660, 7
        %s663 = smul.addr %s662, 8
        %s664 = scalar_lea.vmem %s0, %s663
        %s665 = smul.u32 4, %s36
        %p666 = scmp.lt.s32.totalorder %s37, 1
        %s667 = scalar_select %p666, %s37, 1
        %s668 = smul.addr %s667, 4
        %s669 = smul.addr %s668, 8
        %s670 = scalar_lea.vmem %s2, %s669
        %p671 = scmp.lt.s32.totalorder %s37, 1
        %s672 = scalar_select %p671, %s37, 1
        %s673 = scalar_lea.vmem %s3, %s672
        %p674 = scmp.lt.s32.totalorder %s37, 1
        %s675 = scalar_select %p674, %s37, 1
        %s676 = smul.addr %s675, 4
        %s677 = smul.addr %s676, 8
        %s678 = scalar_lea.vmem %s4, %s677
        %p679 = scmp.lt.s32.totalorder %s37, 1
        %s680 = scalar_select %p679, %s37, 1
        %s681 = scalar_lea.vmem %s5, %s680
        %p682 = scmp.lt.s32.totalorder %s37, 1
        %s683 = scalar_select %p682, %s37, 1
        %s684 = scalar_lea.vmem %s6, %s683
        %p685 = scmp.lt.s32.totalorder %s37, 1
        %s686 = scalar_select %p685, %s37, 1
        %s687 = scalar_lea.vmem %s7, %s686
        %p688 = scmp.lt.s32.totalorder %s37, 1
        %s689 = scalar_select %p688, %s37, 1
        %s690 = scalar_lea.vmem %s9, %s689
        %p691 = scmp.lt.s32.totalorder %s37, 1
        %s692 = scalar_select %p691, %s37, 1
        %s693 = smul.addr %s692, 8
        %s694 = smul.addr %s693, 8
        %s695 = scalar_lea.vmem %s10, %s694
        %p696 = scmp.lt.s32.totalorder %s37, 1
        %s697 = scalar_select %p696, %s37, 1
        %s698 = scalar_lea.vmem %s11, %s697
        %p699 = scmp.lt.s32.totalorder %s37, 1
        %s700 = scalar_select %p699, %s37, 1
        %s701 = scalar_lea.vmem %s12, %s700
        %p702 = scmp.lt.s32.totalorder %s37, 1
        %s703 = scalar_select %p702, %s37, 1
        %s704 = scalar_lea.vmem %s13, %s703
        %s705 = smul.u32 4, %s36
        %p706 = scmp.eq.s32.totalorder %s37, 0
        // Predicated region
        $region85: #{tpu_custom_call.1} parent=75 // pred_check
          %p707 = pneg %p706
        $region86: #{tpu_custom_call.1} parent=75 // pred_check_branch
          %709 = sbr.rel (%p707) target = $region88
        $region87: #{tpu_custom_call.1} parent=75 // pred_region
          %v710 = vld [vmem:[%s664] sm:$0xff]
          %v711 = vld [vmem:[%s664 + $0x8] sm:$0xff]
          %v712 = vld [vmem:[%s664 + $0x10] sm:$0xff]
          %v713 = vld [vmem:[%s664 + $0x18] sm:$0xff]
          %v714 = vld [vmem:[#allocation2] sm:$0xff]
          %v715 = vadd.f32 %v710, %v714
          %v716 = vadd.f32 %v711, %v714
          %v717 = vadd.f32 %v712, %v714
          %v718 = vadd.f32 %v713, %v714
          %vm719 = vcmask 261120
          %720 = vst.msk [vmem:[%s659] sm:$0xff] %vm719, %v715
          %721 = vst.msk [vmem:[%s659 + $0x8] sm:$0xff] %vm719, %v716
          %722 = vst.msk [vmem:[%s659 + $0x10] sm:$0xff] %vm719, %v717
          %723 = vst.msk [vmem:[%s659 + $0x18] sm:$0xff] %vm719, %v718
        $region88: #{tpu_custom_call.1} parent=75 // pred_fallthru
          _
        %v724 = vld [vmem:[%s659] sm:$0xff]
        %v725 = vld [vmem:[%s659 + $0x8] sm:$0xff]
        %v726 = vld [vmem:[%s659 + $0x10] sm:$0xff]
        %v727 = vld [vmem:[%s659 + $0x18] sm:$0xff]
        %v728 = vld [vmem:[%s670] sm:$0xff]
        %v729 = vld [vmem:[%s670 + $0x8] sm:$0xff]
        %v730 = vld [vmem:[%s670 + $0x10] sm:$0xff]
        %v731 = vld [vmem:[%s670 + $0x18] sm:$0xff]
        %v732 = vld [vmem:[%s673] sm:$0x1]
        %v734 = vlaneseq
        %v735 = vshrl.u32 %v734, 7
        %v736 = vsub.s32 0, %v735
        %v737 = vrot.slane %v732, %v736
        %vm739 = vcmask 261120
        %v741 = vsel %vm739, %v724, 0
        %v744 = vsel %vm739, %v725, 0
        %v747 = vsel %vm739, %v726, 0
        %v750 = vsel %vm739, %v727, 0
        %752 = vmatprep.subr.mxu0 0.0
        %753 = vmatpush1.msra.mxu0 0.0
        %754 = vmatprep.subr.mxu0 0.0
        %755 = vmatpush1.msra.mxu0 0.0
        %756 = vmatprep.subr.mxu0 0.0
        %757 = vmatpush1.msra.mxu0 0.0
        %758 = vmatprep.subr.mxu0 0.0
        %759 = vmatpush1.msra.mxu0 0.0
        %760 = vmatprep.subr.mxu0 0.0
        %761 = vmatpush1.msra.mxu0 0.0
        %762 = vmatprep.subr.mxu0 0.0
        %763 = vmatpush1.msra.mxu0 0.0
        %764 = vmatprep.subr.mxu0 0.0
        %765 = vmatpush1.msra.mxu0 0.0
        %766 = vmatprep.subr.mxu0 0.0
        %767 = vmatpush1.msra.mxu0 0.0
        %768 = vmatprep.subr.mxu0 0.0
        %769 = vmatpush1.msra.mxu0 0.0
        %770 = vmatprep.subr.mxu0 0.0
        %771 = vmatpush1.msra.mxu0 0.0
        %772 = vmatprep.subr.mxu0 0.0
        %773 = vmatpush1.msra.mxu0 0.0
        %774 = vmatprep.subr.mxu0 0.0
        %775 = vmatpush1.msra.mxu0 0.0
        %776 = vmatprep.subr.mxu0 0.0
        %777 = vmatpush1.msra.mxu0 %v731
        %778 = vmatprep.subr.mxu0 0.0
        %779 = vmatpush1.msra.mxu0 %v730
        %780 = vmatprep.subr.mxu0 0.0
        %781 = vmatpush1.msra.mxu0 %v729
        %782 = vmatprep.subr.mxu0 0.0
        %783 = vmatpush1.msra.mxu0 %v728
        %784 = vmatprep.subr.mxu0 0.0
        %785 = vmatpush2.msra.mxu0 0.0
        %786 = vmatprep.subr.mxu0 0.0
        %787 = vmatpush2.msra.mxu0 0.0
        %788 = vmatprep.subr.mxu0 0.0
        %789 = vmatpush2.msra.mxu0 0.0
        %790 = vmatprep.subr.mxu0 0.0
        %791 = vmatpush2.msra.mxu0 0.0
        %792 = vmatprep.subr.mxu0 0.0
        %793 = vmatpush2.msra.mxu0 0.0
        %794 = vmatprep.subr.mxu0 0.0
        %795 = vmatpush2.msra.mxu0 0.0
        %796 = vmatprep.subr.mxu0 0.0
        %797 = vmatpush2.msra.mxu0 0.0
        %798 = vmatprep.subr.mxu0 0.0
        %799 = vmatpush2.msra.mxu0 0.0
        %800 = vmatprep.subr.mxu0 0.0
        %801 = vmatpush2.msra.mxu0 0.0
        %802 = vmatprep.subr.mxu0 0.0
        %803 = vmatpush2.msra.mxu0 0.0
        %804 = vmatprep.subr.mxu0 0.0
        %805 = vmatpush2.msra.mxu0 0.0
        %806 = vmatprep.subr.mxu0 0.0
        %807 = vmatpush2.msra.mxu0 0.0
        %808 = vmatprep.subr.mxu0 0.0
        %809 = vmatpush2.msra.mxu0 0.0
        %810 = vmatprep.subr.mxu0 0.0
        %811 = vmatpush2.msra.mxu0 0.0
        %812 = vmatprep.subr.mxu0 0.0
        %813 = vmatpush2.msra.mxu0 0.0
        %814 = vmatprep.subr.mxu0 0.0
        %815 = vmatpush2.msra.mxu0 0.0
        %816 = vmatprep.mubr.f32.mxu0 0.0
        %817 = vmatmul.mubr.f32.gmra.mxu0 %v741
        %v818 = vpop.f32.mrf.mxu0
        %v819 = vadd.f32 %v737, %v818
        %v820 = vpop.f32.mrf.mxu0
        %821 = vmatprep.mubr.f32.mxu0 0.0
        %822 = vmatmul.mubr.f32.gmra.mxu0 %v744
        %v823 = vpop.f32.mrf.mxu0
        %v824 = vadd.f32 %v737, %v823
        %v825 = vpop.f32.mrf.mxu0
        %826 = vmatprep.mubr.f32.mxu0 0.0
        %827 = vmatmul.mubr.f32.gmra.mxu0 %v747
        %v828 = vpop.f32.mrf.mxu0
        %v829 = vadd.f32 %v737, %v828
        %v830 = vpop.f32.mrf.mxu0
        %831 = vmatprep.mubr.f32.mxu0 0.0
        %832 = vmatmul.mubr.f32.gmra.mxu0 %v750
        %v833 = vpop.f32.mrf.mxu0
        %v834 = vadd.f32 %v737, %v833
        %v835 = vpop.f32.mrf.mxu0
        %836 = vdwg.mxu0
        %838 = vrot.lane.b32.xlu0 %v819, 96
        %v839 = vpop.permute.xlu0 %838
        %vm840 = vcmask 64512
        %v841 = vsel %vm840, %v819, 0
        %v843 = vsel %vm840, %v839, 0
        %845 = vmatprep.subr.mxu0 0.0
        %846 = vmatpush1.xpose.msra.mxu0 0.0
        %847 = vmatprep.subr.mxu0 0.0
        %848 = vmatpush1.xpose.msra.mxu0 0.0
        %849 = vmatprep.subr.mxu0 0.0
        %850 = vmatpush1.xpose.msra.mxu0 0.0
        %851 = vmatprep.subr.mxu0 0.0
        %852 = vmatpush1.xpose.msra.mxu0 0.0
        %853 = vmatprep.subr.mxu0 0.0
        %854 = vmatpush1.xpose.msra.mxu0 0.0
        %855 = vmatprep.subr.mxu0 0.0
        %856 = vmatpush1.xpose.msra.mxu0 0.0
        %857 = vmatprep.subr.mxu0 0.0
        %858 = vmatpush1.xpose.msra.mxu0 0.0
        %859 = vmatprep.subr.mxu0 0.0
        %860 = vmatpush1.xpose.msra.mxu0 0.0
        %861 = vmatprep.subr.mxu0 0.0
        %862 = vmatpush1.xpose.msra.mxu0 0.0
        %863 = vmatprep.subr.mxu0 0.0
        %864 = vmatpush1.xpose.msra.mxu0 0.0
        %865 = vmatprep.subr.mxu0 0.0
        %866 = vmatpush1.xpose.msra.mxu0 0.0
        %867 = vmatprep.subr.mxu0 0.0
        %868 = vmatpush1.xpose.msra.mxu0 0.0
        %869 = vmatprep.subr.mxu0 0.0
        %870 = vmatpush1.xpose.msra.mxu0 0.0
        %871 = vmatprep.subr.mxu0 0.0
        %872 = vmatpush1.xpose.msra.mxu0 0.0
        %873 = vmatprep.subr.mxu0 0.0
        %874 = vmatpush1.xpose.msra.mxu0 0.0
        %875 = vmatprep.subr.mxu0 0.0
        %876 = vmatpush1.xpose.msra.mxu0 %v843
        %877 = vmatprep.subr.mxu0 0.0
        %878 = vmatpush2.xpose.msra.mxu0 0.0
        %879 = vmatprep.subr.mxu0 0.0
        %880 = vmatpush2.xpose.msra.mxu0 0.0
        %881 = vmatprep.subr.mxu0 0.0
        %882 = vmatpush2.xpose.msra.mxu0 0.0
        %883 = vmatprep.subr.mxu0 0.0
        %884 = vmatpush2.xpose.msra.mxu0 0.0
        %885 = vmatprep.subr.mxu0 0.0
        %886 = vmatpush2.xpose.msra.mxu0 0.0
        %887 = vmatprep.subr.mxu0 0.0
        %888 = vmatpush2.xpose.msra.mxu0 0.0
        %889 = vmatprep.subr.mxu0 0.0
        %890 = vmatpush2.xpose.msra.mxu0 0.0
        %891 = vmatprep.subr.mxu0 0.0
        %892 = vmatpush2.xpose.msra.mxu0 0.0
        %893 = vmatprep.subr.mxu0 0.0
        %894 = vmatpush2.xpose.msra.mxu0 0.0
        %895 = vmatprep.subr.mxu0 0.0
        %896 = vmatpush2.xpose.msra.mxu0 0.0
        %897 = vmatprep.subr.mxu0 0.0
        %898 = vmatpush2.xpose.msra.mxu0 0.0
        %899 = vmatprep.subr.mxu0 0.0
        %900 = vmatpush2.xpose.msra.mxu0 0.0
        %901 = vmatprep.subr.mxu0 0.0
        %902 = vmatpush2.xpose.msra.mxu0 0.0
        %903 = vmatprep.subr.mxu0 0.0
        %904 = vmatpush2.xpose.msra.mxu0 0.0
        %905 = vmatprep.subr.mxu0 0.0
        %906 = vmatpush2.xpose.msra.mxu0 0.0
        %907 = vmatprep.subr.mxu0 0.0
        %908 = vmatpush2.xpose.msra.mxu0 0.0
        %909 = vmatprep.mubr.f32.mxu0 0.0
        %910 = vmatmul.mubr.f32.gmra.mxu0 %v841
        %v911 = vpop.f32.mrf.mxu0
        %v912 = vadd.f32 0.0, %v911
        %v913 = vpop.f32.mrf.mxu0
        %914 = vdwg.mxu0
        %916 = vrot.lane.b32.xlu0 %v824, 96
        %v917 = vpop.permute.xlu0 %916
        %v918 = vsel %vm840, %v824, 0
        %v920 = vsel %vm840, %v917, 0
        %922 = vmatprep.subr.mxu0 0.0
        %923 = vmatpush1.xpose.msra.mxu0 0.0
        %924 = vmatprep.subr.mxu0 0.0
        %925 = vmatpush1.xpose.msra.mxu0 0.0
        %926 = vmatprep.subr.mxu0 0.0
        %927 = vmatpush1.xpose.msra.mxu0 0.0
        %928 = vmatprep.subr.mxu0 0.0
        %929 = vmatpush1.xpose.msra.mxu0 0.0
        %930 = vmatprep.subr.mxu0 0.0
        %931 = vmatpush1.xpose.msra.mxu0 0.0
        %932 = vmatprep.subr.mxu0 0.0
        %933 = vmatpush1.xpose.msra.mxu0 0.0
        %934 = vmatprep.subr.mxu0 0.0
        %935 = vmatpush1.xpose.msra.mxu0 0.0
        %936 = vmatprep.subr.mxu0 0.0
        %937 = vmatpush1.xpose.msra.mxu0 0.0
        %938 = vmatprep.subr.mxu0 0.0
        %939 = vmatpush1.xpose.msra.mxu0 0.0
        %940 = vmatprep.subr.mxu0 0.0
        %941 = vmatpush1.xpose.msra.mxu0 0.0
        %942 = vmatprep.subr.mxu0 0.0
        %943 = vmatpush1.xpose.msra.mxu0 0.0
        %944 = vmatprep.subr.mxu0 0.0
        %945 = vmatpush1.xpose.msra.mxu0 0.0
        %946 = vmatprep.subr.mxu0 0.0
        %947 = vmatpush1.xpose.msra.mxu0 0.0
        %948 = vmatprep.subr.mxu0 0.0
        %949 = vmatpush1.xpose.msra.mxu0 0.0
        %950 = vmatprep.subr.mxu0 0.0
        %951 = vmatpush1.xpose.msra.mxu0 0.0
        %952 = vmatprep.subr.mxu0 0.0
        %953 = vmatpush1.xpose.msra.mxu0 %v920
        %954 = vmatprep.subr.mxu0 0.0
        %955 = vmatpush2.xpose.msra.mxu0 0.0
        %956 = vmatprep.subr.mxu0 0.0
        %957 = vmatpush2.xpose.msra.mxu0 0.0
        %958 = vmatprep.subr.mxu0 0.0
        %959 = vmatpush2.xpose.msra.mxu0 0.0
        %960 = vmatprep.subr.mxu0 0.0
        %961 = vmatpush2.xpose.msra.mxu0 0.0
        %962 = vmatprep.subr.mxu0 0.0
        %963 = vmatpush2.xpose.msra.mxu0 0.0
        %964 = vmatprep.subr.mxu0 0.0
        %965 = vmatpush2.xpose.msra.mxu0 0.0
        %966 = vmatprep.subr.mxu0 0.0
        %967 = vmatpush2.xpose.msra.mxu0 0.0
        %968 = vmatprep.subr.mxu0 0.0
        %969 = vmatpush2.xpose.msra.mxu0 0.0
        %970 = vmatprep.subr.mxu0 0.0
        %971 = vmatpush2.xpose.msra.mxu0 0.0
        %972 = vmatprep.subr.mxu0 0.0
        %973 = vmatpush2.xpose.msra.mxu0 0.0
        %974 = vmatprep.subr.mxu0 0.0
        %975 = vmatpush2.xpose.msra.mxu0 0.0
        %976 = vmatprep.subr.mxu0 0.0
        %977 = vmatpush2.xpose.msra.mxu0 0.0
        %978 = vmatprep.subr.mxu0 0.0
        %979 = vmatpush2.xpose.msra.mxu0 0.0
        %980 = vmatprep.subr.mxu0 0.0
        %981 = vmatpush2.xpose.msra.mxu0 0.0
        %982 = vmatprep.subr.mxu0 0.0
        %983 = vmatpush2.xpose.msra.mxu0 0.0
        %984 = vmatprep.subr.mxu0 0.0
        %985 = vmatpush2.xpose.msra.mxu0 0.0
        %986 = vmatprep.mubr.f32.mxu0 0.0
        %987 = vmatmul.mubr.f32.gmra.mxu0 %v918
        %v988 = vpop.f32.mrf.mxu0
        %v989 = vadd.f32 0.0, %v988
        %v990 = vpop.f32.mrf.mxu0
        %991 = vdwg.mxu0
        %993 = vrot.lane.b32.xlu0 %v829, 96
        %v994 = vpop.permute.xlu0 %993
        %v995 = vsel %vm840, %v829, 0
        %v997 = vsel %vm840, %v994, 0
        %999 = vmatprep.subr.mxu0 0.0
        %1000 = vmatpush1.xpose.msra.mxu0 0.0
        %1001 = vmatprep.subr.mxu0 0.0
        %1002 = vmatpush1.xpose.msra.mxu0 0.0
        %1003 = vmatprep.subr.mxu0 0.0
        %1004 = vmatpush1.xpose.msra.mxu0 0.0
        %1005 = vmatprep.subr.mxu0 0.0
        %1006 = vmatpush1.xpose.msra.mxu0 0.0
        %1007 = vmatprep.subr.mxu0 0.0
        %1008 = vmatpush1.xpose.msra.mxu0 0.0
        %1009 = vmatprep.subr.mxu0 0.0
        %1010 = vmatpush1.xpose.msra.mxu0 0.0
        %1011 = vmatprep.subr.mxu0 0.0
        %1012 = vmatpush1.xpose.msra.mxu0 0.0
        %1013 = vmatprep.subr.mxu0 0.0
        %1014 = vmatpush1.xpose.msra.mxu0 0.0
        %1015 = vmatprep.subr.mxu0 0.0
        %1016 = vmatpush1.xpose.msra.mxu0 0.0
        %1017 = vmatprep.subr.mxu0 0.0
        %1018 = vmatpush1.xpose.msra.mxu0 0.0
        %1019 = vmatprep.subr.mxu0 0.0
        %1020 = vmatpush1.xpose.msra.mxu0 0.0
        %1021 = vmatprep.subr.mxu0 0.0
        %1022 = vmatpush1.xpose.msra.mxu0 0.0
        %1023 = vmatprep.subr.mxu0 0.0
        %1024 = vmatpush1.xpose.msra.mxu0 0.0
        %1025 = vmatprep.subr.mxu0 0.0
        %1026 = vmatpush1.xpose.msra.mxu0 0.0
        %1027 = vmatprep.subr.mxu0 0.0
        %1028 = vmatpush1.xpose.msra.mxu0 0.0
        %1029 = vmatprep.subr.mxu0 0.0
        %1030 = vmatpush1.xpose.msra.mxu0 %v997
        %1031 = vmatprep.subr.mxu0 0.0
        %1032 = vmatpush2.xpose.msra.mxu0 0.0
        %1033 = vmatprep.subr.mxu0 0.0
        %1034 = vmatpush2.xpose.msra.mxu0 0.0
        %1035 = vmatprep.subr.mxu0 0.0
        %1036 = vmatpush2.xpose.msra.mxu0 0.0
        %1037 = vmatprep.subr.mxu0 0.0
        %1038 = vmatpush2.xpose.msra.mxu0 0.0
        %1039 = vmatprep.subr.mxu0 0.0
        %1040 = vmatpush2.xpose.msra.mxu0 0.0
        %1041 = vmatprep.subr.mxu0 0.0
        %1042 = vmatpush2.xpose.msra.mxu0 0.0
        %1043 = vmatprep.subr.mxu0 0.0
        %1044 = vmatpush2.xpose.msra.mxu0 0.0
        %1045 = vmatprep.subr.mxu0 0.0
        %1046 = vmatpush2.xpose.msra.mxu0 0.0
        %1047 = vmatprep.subr.mxu0 0.0
        %1048 = vmatpush2.xpose.msra.mxu0 0.0
        %1049 = vmatprep.subr.mxu0 0.0
        %1050 = vmatpush2.xpose.msra.mxu0 0.0
        %1051 = vmatprep.subr.mxu0 0.0
        %1052 = vmatpush2.xpose.msra.mxu0 0.0
        %1053 = vmatprep.subr.mxu0 0.0
        %1054 = vmatpush2.xpose.msra.mxu0 0.0
        %1055 = vmatprep.subr.mxu0 0.0
        %1056 = vmatpush2.xpose.msra.mxu0 0.0
        %1057 = vmatprep.subr.mxu0 0.0
        %1058 = vmatpush2.xpose.msra.mxu0 0.0
        %1059 = vmatprep.subr.mxu0 0.0
        %1060 = vmatpush2.xpose.msra.mxu0 0.0
        %1061 = vmatprep.subr.mxu0 0.0
        %1062 = vmatpush2.xpose.msra.mxu0 0.0
        %1063 = vmatprep.mubr.f32.mxu0 0.0
        %1064 = vmatmul.mubr.f32.gmra.mxu0 %v995
        %v1065 = vpop.f32.mrf.mxu0
        %v1066 = vadd.f32 0.0, %v1065
        %v1067 = vpop.f32.mrf.mxu0
        %1068 = vdwg.mxu0
        %1070 = vrot.lane.b32.xlu0 %v834, 96
        %v1071 = vpop.permute.xlu0 %1070
        %v1072 = vsel %vm840, %v834, 0
        %v1074 = vsel %vm840, %v1071, 0
        %1076 = vmatprep.subr.mxu0 0.0
        %1077 = vmatpush1.xpose.msra.mxu0 0.0
        %1078 = vmatprep.subr.mxu0 0.0
        %1079 = vmatpush1.xpose.msra.mxu0 0.0
        %1080 = vmatprep.subr.mxu0 0.0
        %1081 = vmatpush1.xpose.msra.mxu0 0.0
        %1082 = vmatprep.subr.mxu0 0.0
        %1083 = vmatpush1.xpose.msra.mxu0 0.0
        %1084 = vmatprep.subr.mxu0 0.0
        %1085 = vmatpush1.xpose.msra.mxu0 0.0
        %1086 = vmatprep.subr.mxu0 0.0
        %1087 = vmatpush1.xpose.msra.mxu0 0.0
        %1088 = vmatprep.subr.mxu0 0.0
        %1089 = vmatpush1.xpose.msra.mxu0 0.0
        %1090 = vmatprep.subr.mxu0 0.0
        %1091 = vmatpush1.xpose.msra.mxu0 0.0
        %1092 = vmatprep.subr.mxu0 0.0
        %1093 = vmatpush1.xpose.msra.mxu0 0.0
        %1094 = vmatprep.subr.mxu0 0.0
        %1095 = vmatpush1.xpose.msra.mxu0 0.0
        %1096 = vmatprep.subr.mxu0 0.0
        %1097 = vmatpush1.xpose.msra.mxu0 0.0
        %1098 = vmatprep.subr.mxu0 0.0
        %1099 = vmatpush1.xpose.msra.mxu0 0.0
        %1100 = vmatprep.subr.mxu0 0.0
        %1101 = vmatpush1.xpose.msra.mxu0 0.0
        %1102 = vmatprep.subr.mxu0 0.0
        %1103 = vmatpush1.xpose.msra.mxu0 0.0
        %1104 = vmatprep.subr.mxu0 0.0
        %1105 = vmatpush1.xpose.msra.mxu0 0.0
        %1106 = vmatprep.subr.mxu0 0.0
        %1107 = vmatpush1.xpose.msra.mxu0 %v1074
        %1108 = vmatprep.subr.mxu0 0.0
        %1109 = vmatpush2.xpose.msra.mxu0 0.0
        %1110 = vmatprep.subr.mxu0 0.0
        %1111 = vmatpush2.xpose.msra.mxu0 0.0
        %1112 = vmatprep.subr.mxu0 0.0
        %1113 = vmatpush2.xpose.msra.mxu0 0.0
        %1114 = vmatprep.subr.mxu0 0.0
        %1115 = vmatpush2.xpose.msra.mxu0 0.0
        %1116 = vmatprep.subr.mxu0 0.0
        %1117 = vmatpush2.xpose.msra.mxu0 0.0
        %1118 = vmatprep.subr.mxu0 0.0
        %1119 = vmatpush2.xpose.msra.mxu0 0.0
        %1120 = vmatprep.subr.mxu0 0.0
        %1121 = vmatpush2.xpose.msra.mxu0 0.0
        %1122 = vmatprep.subr.mxu0 0.0
        %1123 = vmatpush2.xpose.msra.mxu0 0.0
        %1124 = vmatprep.subr.mxu0 0.0
        %1125 = vmatpush2.xpose.msra.mxu0 0.0
        %1126 = vmatprep.subr.mxu0 0.0
        %1127 = vmatpush2.xpose.msra.mxu0 0.0
        %1128 = vmatprep.subr.mxu0 0.0
        %1129 = vmatpush2.xpose.msra.mxu0 0.0
        %1130 = vmatprep.subr.mxu0 0.0
        %1131 = vmatpush2.xpose.msra.mxu0 0.0
        %1132 = vmatprep.subr.mxu0 0.0
        %1133 = vmatpush2.xpose.msra.mxu0 0.0
        %1134 = vmatprep.subr.mxu0 0.0
        %1135 = vmatpush2.xpose.msra.mxu0 0.0
        %1136 = vmatprep.subr.mxu0 0.0
        %1137 = vmatpush2.xpose.msra.mxu0 0.0
        %1138 = vmatprep.subr.mxu0 0.0
        %1139 = vmatpush2.xpose.msra.mxu0 0.0
        %1140 = vmatprep.mubr.f32.mxu0 0.0
        %1141 = vmatmul.mubr.f32.gmra.mxu0 %v1072
        %v1142 = vpop.f32.mrf.mxu0
        %v1143 = vadd.f32 0.0, %v1142
        %v1144 = vpop.f32.mrf.mxu0
        %1145 = vdwg.mxu0
        %v1146 = vsel %vm840, %v912, -inf
        %1147 = vmax.xlane.f32.xlu0 %v1146
        %v1148 = vpop.xlane.xlu0 %1147
        %v1149 = vsel %vm840, %v989, -inf
        %1150 = vmax.xlane.f32.xlu0 %v1149
        %v1151 = vpop.xlane.xlu0 %1150
        %v1152 = vsel %vm840, %v1066, -inf
        %1153 = vmax.xlane.f32.xlu0 %v1152
        %v1154 = vpop.xlane.xlu0 %1153
        %v1155 = vsel %vm840, %v1143, -inf
        %1156 = vmax.xlane.f32.xlu0 %v1155
        %v1157 = vpop.xlane.xlu0 %1156
        %v1158 = vsub.f32 %v912, %v1148
        %v1159 = vsub.f32 %v989, %v1151
        %v1160 = vsub.f32 %v1066, %v1154
        %v1161 = vsub.f32 %v1143, %v1157
        %v1162 = vmul.f32 %v1158, 1.442695
        %v1163 = vpow.pop %v1162
        %v1164 = vmul.f32 %v1159, 1.442695
        %v1165 = vpow.pop %v1164
        %v1166 = vmul.f32 %v1160, 1.442695
        %v1167 = vpow.pop %v1166
        %v1168 = vmul.f32 %v1161, 1.442695
        %v1169 = vpow.pop %v1168
        %v1170 = vsel %vm840, %v1163, 0.0
        %1171 = vadd.xlane.f32.xlu0 %v1170
        %v1172 = vpop.xlane.xlu0 %1171
        %v1173 = vsel %vm840, %v1165, 0.0
        %1174 = vadd.xlane.f32.xlu0 %v1173
        %v1175 = vpop.xlane.xlu0 %1174
        %v1176 = vsel %vm840, %v1167, 0.0
        %1177 = vadd.xlane.f32.xlu0 %v1176
        %v1178 = vpop.xlane.xlu0 %1177
        %v1179 = vsel %vm840, %v1169, 0.0
        %1180 = vadd.xlane.f32.xlu0 %v1179
        %v1181 = vpop.xlane.xlu0 %1180
        %v1182 = vrcp.pop %v1172
        %v1183 = vmul.f32 %v1163, %v1182
        %v1184 = vrcp.pop %v1175
        %v1185 = vmul.f32 %v1165, %v1184
        %v1186 = vrcp.pop %v1178
        %v1187 = vmul.f32 %v1167, %v1186
        %v1188 = vrcp.pop %v1181
        %v1189 = vmul.f32 %v1169, %v1188
        %1190 = vrot.lane.b32.xlu0 %v819, 64
        %v1191 = vpop.permute.xlu0 %1190
        %v1194 = vsel %vm840, %v1183, 0
        %1196 = vmatprep.subr.mxu0 0.0
        %1197 = vmatpush1.msra.mxu0 0.0
        %1198 = vmatprep.subr.mxu0 0.0
        %1199 = vmatpush1.msra.mxu0 0.0
        %1200 = vmatprep.subr.mxu0 0.0
        %1201 = vmatpush1.msra.mxu0 0.0
        %1202 = vmatprep.subr.mxu0 0.0
        %1203 = vmatpush1.msra.mxu0 0.0
        %1204 = vmatprep.subr.mxu0 0.0
        %1205 = vmatpush1.msra.mxu0 0.0
        %1206 = vmatprep.subr.mxu0 0.0
        %1207 = vmatpush1.msra.mxu0 0.0
        %1208 = vmatprep.subr.mxu0 0.0
        %1209 = vmatpush1.msra.mxu0 0.0
        %1210 = vmatprep.subr.mxu0 0.0
        %1211 = vmatpush1.msra.mxu0 0.0
        %1212 = vmatprep.subr.mxu0 0.0
        %1213 = vmatpush1.msra.mxu0 0.0
        %1214 = vmatprep.subr.mxu0 0.0
        %1215 = vmatpush1.msra.mxu0 0.0
        %1216 = vmatprep.subr.mxu0 0.0
        %1217 = vmatpush1.msra.mxu0 0.0
        %1218 = vmatprep.subr.mxu0 0.0
        %1219 = vmatpush1.msra.mxu0 0.0
        %1220 = vmatprep.subr.mxu0 0.0
        %1221 = vmatpush1.msra.mxu0 0.0
        %1222 = vmatprep.subr.mxu0 0.0
        %1223 = vmatpush1.msra.mxu0 0.0
        %1224 = vmatprep.subr.mxu0 0.0
        %1225 = vmatpush1.msra.mxu0 0.0
        %1226 = vmatprep.subr.mxu0 0.0
        %1227 = vmatpush1.msra.mxu0 %v1191
        %1228 = vmatprep.subr.mxu0 0.0
        %1229 = vmatpush2.msra.mxu0 0.0
        %1230 = vmatprep.subr.mxu0 0.0
        %1231 = vmatpush2.msra.mxu0 0.0
        %1232 = vmatprep.subr.mxu0 0.0
        %1233 = vmatpush2.msra.mxu0 0.0
        %1234 = vmatprep.subr.mxu0 0.0
        %1235 = vmatpush2.msra.mxu0 0.0
        %1236 = vmatprep.subr.mxu0 0.0
        %1237 = vmatpush2.msra.mxu0 0.0
        %1238 = vmatprep.subr.mxu0 0.0
        %1239 = vmatpush2.msra.mxu0 0.0
        %1240 = vmatprep.subr.mxu0 0.0
        %1241 = vmatpush2.msra.mxu0 0.0
        %1242 = vmatprep.subr.mxu0 0.0
        %1243 = vmatpush2.msra.mxu0 0.0
        %1244 = vmatprep.subr.mxu0 0.0
        %1245 = vmatpush2.msra.mxu0 0.0
        %1246 = vmatprep.subr.mxu0 0.0
        %1247 = vmatpush2.msra.mxu0 0.0
        %1248 = vmatprep.subr.mxu0 0.0
        %1249 = vmatpush2.msra.mxu0 0.0
        %1250 = vmatprep.subr.mxu0 0.0
        %1251 = vmatpush2.msra.mxu0 0.0
        %1252 = vmatprep.subr.mxu0 0.0
        %1253 = vmatpush2.msra.mxu0 0.0
        %1254 = vmatprep.subr.mxu0 0.0
        %1255 = vmatpush2.msra.mxu0 0.0
        %1256 = vmatprep.subr.mxu0 0.0
        %1257 = vmatpush2.msra.mxu0 0.0
        %1258 = vmatprep.subr.mxu0 0.0
        %1259 = vmatpush2.msra.mxu0 0.0
        %1260 = vmatprep.mubr.f32.mxu0 0.0
        %1261 = vmatmul.mubr.f32.gmra.mxu0 %v1194
        %v1262 = vpop.f32.mrf.mxu0
        %v1263 = vadd.f32 0.0, %v1262
        %v1264 = vpop.f32.mrf.mxu0
        %1265 = vdwg.mxu0
        %1266 = vrot.lane.b32.xlu0 %v824, 64
        %v1267 = vpop.permute.xlu0 %1266
        %v1270 = vsel %vm840, %v1185, 0
        %1272 = vmatprep.subr.mxu0 0.0
        %1273 = vmatpush1.msra.mxu0 0.0
        %1274 = vmatprep.subr.mxu0 0.0
        %1275 = vmatpush1.msra.mxu0 0.0
        %1276 = vmatprep.subr.mxu0 0.0
        %1277 = vmatpush1.msra.mxu0 0.0
        %1278 = vmatprep.subr.mxu0 0.0
        %1279 = vmatpush1.msra.mxu0 0.0
        %1280 = vmatprep.subr.mxu0 0.0
        %1281 = vmatpush1.msra.mxu0 0.0
        %1282 = vmatprep.subr.mxu0 0.0
        %1283 = vmatpush1.msra.mxu0 0.0
        %1284 = vmatprep.subr.mxu0 0.0
        %1285 = vmatpush1.msra.mxu0 0.0
        %1286 = vmatprep.subr.mxu0 0.0
        %1287 = vmatpush1.msra.mxu0 0.0
        %1288 = vmatprep.subr.mxu0 0.0
        %1289 = vmatpush1.msra.mxu0 0.0
        %1290 = vmatprep.subr.mxu0 0.0
        %1291 = vmatpush1.msra.mxu0 0.0
        %1292 = vmatprep.subr.mxu0 0.0
        %1293 = vmatpush1.msra.mxu0 0.0
        %1294 = vmatprep.subr.mxu0 0.0
        %1295 = vmatpush1.msra.mxu0 0.0
        %1296 = vmatprep.subr.mxu0 0.0
        %1297 = vmatpush1.msra.mxu0 0.0
        %1298 = vmatprep.subr.mxu0 0.0
        %1299 = vmatpush1.msra.mxu0 0.0
        %1300 = vmatprep.subr.mxu0 0.0
        %1301 = vmatpush1.msra.mxu0 0.0
        %1302 = vmatprep.subr.mxu0 0.0
        %1303 = vmatpush1.msra.mxu0 %v1267
        %1304 = vmatprep.subr.mxu0 0.0
        %1305 = vmatpush2.msra.mxu0 0.0
        %1306 = vmatprep.subr.mxu0 0.0
        %1307 = vmatpush2.msra.mxu0 0.0
        %1308 = vmatprep.subr.mxu0 0.0
        %1309 = vmatpush2.msra.mxu0 0.0
        %1310 = vmatprep.subr.mxu0 0.0
        %1311 = vmatpush2.msra.mxu0 0.0
        %1312 = vmatprep.subr.mxu0 0.0
        %1313 = vmatpush2.msra.mxu0 0.0
        %1314 = vmatprep.subr.mxu0 0.0
        %1315 = vmatpush2.msra.mxu0 0.0
        %1316 = vmatprep.subr.mxu0 0.0
        %1317 = vmatpush2.msra.mxu0 0.0
        %1318 = vmatprep.subr.mxu0 0.0
        %1319 = vmatpush2.msra.mxu0 0.0
        %1320 = vmatprep.subr.mxu0 0.0
        %1321 = vmatpush2.msra.mxu0 0.0
        %1322 = vmatprep.subr.mxu0 0.0
        %1323 = vmatpush2.msra.mxu0 0.0
        %1324 = vmatprep.subr.mxu0 0.0
        %1325 = vmatpush2.msra.mxu0 0.0
        %1326 = vmatprep.subr.mxu0 0.0
        %1327 = vmatpush2.msra.mxu0 0.0
        %1328 = vmatprep.subr.mxu0 0.0
        %1329 = vmatpush2.msra.mxu0 0.0
        %1330 = vmatprep.subr.mxu0 0.0
        %1331 = vmatpush2.msra.mxu0 0.0
        %1332 = vmatprep.subr.mxu0 0.0
        %1333 = vmatpush2.msra.mxu0 0.0
        %1334 = vmatprep.subr.mxu0 0.0
        %1335 = vmatpush2.msra.mxu0 0.0
        %1336 = vmatprep.mubr.f32.mxu0 0.0
        %1337 = vmatmul.mubr.f32.gmra.mxu0 %v1270
        %v1338 = vpop.f32.mrf.mxu0
        %v1339 = vadd.f32 0.0, %v1338
        %v1340 = vpop.f32.mrf.mxu0
        %1341 = vdwg.mxu0
        %1342 = vrot.lane.b32.xlu0 %v829, 64
        %v1343 = vpop.permute.xlu0 %1342
        %v1346 = vsel %vm840, %v1187, 0
        %1348 = vmatprep.subr.mxu0 0.0
        %1349 = vmatpush1.msra.mxu0 0.0
        %1350 = vmatprep.subr.mxu0 0.0
        %1351 = vmatpush1.msra.mxu0 0.0
        %1352 = vmatprep.subr.mxu0 0.0
        %1353 = vmatpush1.msra.mxu0 0.0
        %1354 = vmatprep.subr.mxu0 0.0
        %1355 = vmatpush1.msra.mxu0 0.0
        %1356 = vmatprep.subr.mxu0 0.0
        %1357 = vmatpush1.msra.mxu0 0.0
        %1358 = vmatprep.subr.mxu0 0.0
        %1359 = vmatpush1.msra.mxu0 0.0
        %1360 = vmatprep.subr.mxu0 0.0
        %1361 = vmatpush1.msra.mxu0 0.0
        %1362 = vmatprep.subr.mxu0 0.0
        %1363 = vmatpush1.msra.mxu0 0.0
        %1364 = vmatprep.subr.mxu0 0.0
        %1365 = vmatpush1.msra.mxu0 0.0
        %1366 = vmatprep.subr.mxu0 0.0
        %1367 = vmatpush1.msra.mxu0 0.0
        %1368 = vmatprep.subr.mxu0 0.0
        %1369 = vmatpush1.msra.mxu0 0.0
        %1370 = vmatprep.subr.mxu0 0.0
        %1371 = vmatpush1.msra.mxu0 0.0
        %1372 = vmatprep.subr.mxu0 0.0
        %1373 = vmatpush1.msra.mxu0 0.0
        %1374 = vmatprep.subr.mxu0 0.0
        %1375 = vmatpush1.msra.mxu0 0.0
        %1376 = vmatprep.subr.mxu0 0.0
        %1377 = vmatpush1.msra.mxu0 0.0
        %1378 = vmatprep.subr.mxu0 0.0
        %1379 = vmatpush1.msra.mxu0 %v1343
        %1380 = vmatprep.subr.mxu0 0.0
        %1381 = vmatpush2.msra.mxu0 0.0
        %1382 = vmatprep.subr.mxu0 0.0
        %1383 = vmatpush2.msra.mxu0 0.0
        %1384 = vmatprep.subr.mxu0 0.0
        %1385 = vmatpush2.msra.mxu0 0.0
        %1386 = vmatprep.subr.mxu0 0.0
        %1387 = vmatpush2.msra.mxu0 0.0
        %1388 = vmatprep.subr.mxu0 0.0
        %1389 = vmatpush2.msra.mxu0 0.0
        %1390 = vmatprep.subr.mxu0 0.0
        %1391 = vmatpush2.msra.mxu0 0.0
        %1392 = vmatprep.subr.mxu0 0.0
        %1393 = vmatpush2.msra.mxu0 0.0
        %1394 = vmatprep.subr.mxu0 0.0
        %1395 = vmatpush2.msra.mxu0 0.0
        %1396 = vmatprep.subr.mxu0 0.0
        %1397 = vmatpush2.msra.mxu0 0.0
        %1398 = vmatprep.subr.mxu0 0.0
        %1399 = vmatpush2.msra.mxu0 0.0
        %1400 = vmatprep.subr.mxu0 0.0
        %1401 = vmatpush2.msra.mxu0 0.0
        %1402 = vmatprep.subr.mxu0 0.0
        %1403 = vmatpush2.msra.mxu0 0.0
        %1404 = vmatprep.subr.mxu0 0.0
        %1405 = vmatpush2.msra.mxu0 0.0
        %1406 = vmatprep.subr.mxu0 0.0
        %1407 = vmatpush2.msra.mxu0 0.0
        %1408 = vmatprep.subr.mxu0 0.0
        %1409 = vmatpush2.msra.mxu0 0.0
        %1410 = vmatprep.subr.mxu0 0.0
        %1411 = vmatpush2.msra.mxu0 0.0
        %1412 = vmatprep.mubr.f32.mxu0 0.0
        %1413 = vmatmul.mubr.f32.gmra.mxu0 %v1346
        %v1414 = vpop.f32.mrf.mxu0
        %v1415 = vadd.f32 0.0, %v1414
        %v1416 = vpop.f32.mrf.mxu0
        %1417 = vdwg.mxu0
        %1418 = vrot.lane.b32.xlu0 %v834, 64
        %v1419 = vpop.permute.xlu0 %1418
        %v1422 = vsel %vm840, %v1189, 0
        %1424 = vmatprep.subr.mxu0 0.0
        %1425 = vmatpush1.msra.mxu0 0.0
        %1426 = vmatprep.subr.mxu0 0.0
        %1427 = vmatpush1.msra.mxu0 0.0
        %1428 = vmatprep.subr.mxu0 0.0
        %1429 = vmatpush1.msra.mxu0 0.0
        %1430 = vmatprep.subr.mxu0 0.0
        %1431 = vmatpush1.msra.mxu0 0.0
        %1432 = vmatprep.subr.mxu0 0.0
        %1433 = vmatpush1.msra.mxu0 0.0
        %1434 = vmatprep.subr.mxu0 0.0
        %1435 = vmatpush1.msra.mxu0 0.0
        %1436 = vmatprep.subr.mxu0 0.0
        %1437 = vmatpush1.msra.mxu0 0.0
        %1438 = vmatprep.subr.mxu0 0.0
        %1439 = vmatpush1.msra.mxu0 0.0
        %1440 = vmatprep.subr.mxu0 0.0
        %1441 = vmatpush1.msra.mxu0 0.0
        %1442 = vmatprep.subr.mxu0 0.0
        %1443 = vmatpush1.msra.mxu0 0.0
        %1444 = vmatprep.subr.mxu0 0.0
        %1445 = vmatpush1.msra.mxu0 0.0
        %1446 = vmatprep.subr.mxu0 0.0
        %1447 = vmatpush1.msra.mxu0 0.0
        %1448 = vmatprep.subr.mxu0 0.0
        %1449 = vmatpush1.msra.mxu0 0.0
        %1450 = vmatprep.subr.mxu0 0.0
        %1451 = vmatpush1.msra.mxu0 0.0
        %1452 = vmatprep.subr.mxu0 0.0
        %1453 = vmatpush1.msra.mxu0 0.0
        %1454 = vmatprep.subr.mxu0 0.0
        %1455 = vmatpush1.msra.mxu0 %v1419
        %1456 = vmatprep.subr.mxu0 0.0
        %1457 = vmatpush2.msra.mxu0 0.0
        %1458 = vmatprep.subr.mxu0 0.0
        %1459 = vmatpush2.msra.mxu0 0.0
        %1460 = vmatprep.subr.mxu0 0.0
        %1461 = vmatpush2.msra.mxu0 0.0
        %1462 = vmatprep.subr.mxu0 0.0
        %1463 = vmatpush2.msra.mxu0 0.0
        %1464 = vmatprep.subr.mxu0 0.0
        %1465 = vmatpush2.msra.mxu0 0.0
        %1466 = vmatprep.subr.mxu0 0.0
        %1467 = vmatpush2.msra.mxu0 0.0
        %1468 = vmatprep.subr.mxu0 0.0
        %1469 = vmatpush2.msra.mxu0 0.0
        %1470 = vmatprep.subr.mxu0 0.0
        %1471 = vmatpush2.msra.mxu0 0.0
        %1472 = vmatprep.subr.mxu0 0.0
        %1473 = vmatpush2.msra.mxu0 0.0
        %1474 = vmatprep.subr.mxu0 0.0
        %1475 = vmatpush2.msra.mxu0 0.0
        %1476 = vmatprep.subr.mxu0 0.0
        %1477 = vmatpush2.msra.mxu0 0.0
        %1478 = vmatprep.subr.mxu0 0.0
        %1479 = vmatpush2.msra.mxu0 0.0
        %1480 = vmatprep.subr.mxu0 0.0
        %1481 = vmatpush2.msra.mxu0 0.0
        %1482 = vmatprep.subr.mxu0 0.0
        %1483 = vmatpush2.msra.mxu0 0.0
        %1484 = vmatprep.subr.mxu0 0.0
        %1485 = vmatpush2.msra.mxu0 0.0
        %1486 = vmatprep.subr.mxu0 0.0
        %1487 = vmatpush2.msra.mxu0 0.0
        %1488 = vmatprep.mubr.f32.mxu0 0.0
        %1489 = vmatmul.mubr.f32.gmra.mxu0 %v1422
        %v1490 = vpop.f32.mrf.mxu0
        %v1491 = vadd.f32 0.0, %v1490
        %v1492 = vpop.f32.mrf.mxu0
        %1493 = vdwg.mxu0
        %1494 = vrot.lane.b32.xlu0 %v819, 120
        %v1495 = vpop.permute.xlu0 %1494
        %1496 = vrot.lane.b32.xlu0 %v819, 88
        %v1497 = vpop.permute.xlu0 %1496
        %v1498 = vsel %vm840, %v1495, 0
        %v1500 = vsel %vm840, %v1497, 0
        %1502 = vmatprep.subr.mxu0 0.0
        %1503 = vmatpush1.xpose.msra.mxu0 0.0
        %1504 = vmatprep.subr.mxu0 0.0
        %1505 = vmatpush1.xpose.msra.mxu0 0.0
        %1506 = vmatprep.subr.mxu0 0.0
        %1507 = vmatpush1.xpose.msra.mxu0 0.0
        %1508 = vmatprep.subr.mxu0 0.0
        %1509 = vmatpush1.xpose.msra.mxu0 0.0
        %1510 = vmatprep.subr.mxu0 0.0
        %1511 = vmatpush1.xpose.msra.mxu0 0.0
        %1512 = vmatprep.subr.mxu0 0.0
        %1513 = vmatpush1.xpose.msra.mxu0 0.0
        %1514 = vmatprep.subr.mxu0 0.0
        %1515 = vmatpush1.xpose.msra.mxu0 0.0
        %1516 = vmatprep.subr.mxu0 0.0
        %1517 = vmatpush1.xpose.msra.mxu0 0.0
        %1518 = vmatprep.subr.mxu0 0.0
        %1519 = vmatpush1.xpose.msra.mxu0 0.0
        %1520 = vmatprep.subr.mxu0 0.0
        %1521 = vmatpush1.xpose.msra.mxu0 0.0
        %1522 = vmatprep.subr.mxu0 0.0
        %1523 = vmatpush1.xpose.msra.mxu0 0.0
        %1524 = vmatprep.subr.mxu0 0.0
        %1525 = vmatpush1.xpose.msra.mxu0 0.0
        %1526 = vmatprep.subr.mxu0 0.0
        %1527 = vmatpush1.xpose.msra.mxu0 0.0
        %1528 = vmatprep.subr.mxu0 0.0
        %1529 = vmatpush1.xpose.msra.mxu0 0.0
        %1530 = vmatprep.subr.mxu0 0.0
        %1531 = vmatpush1.xpose.msra.mxu0 0.0
        %1532 = vmatprep.subr.mxu0 0.0
        %1533 = vmatpush1.xpose.msra.mxu0 %v1500
        %1534 = vmatprep.subr.mxu0 0.0
        %1535 = vmatpush2.xpose.msra.mxu0 0.0
        %1536 = vmatprep.subr.mxu0 0.0
        %1537 = vmatpush2.xpose.msra.mxu0 0.0
        %1538 = vmatprep.subr.mxu0 0.0
        %1539 = vmatpush2.xpose.msra.mxu0 0.0
        %1540 = vmatprep.subr.mxu0 0.0
        %1541 = vmatpush2.xpose.msra.mxu0 0.0
        %1542 = vmatprep.subr.mxu0 0.0
        %1543 = vmatpush2.xpose.msra.mxu0 0.0
        %1544 = vmatprep.subr.mxu0 0.0
        %1545 = vmatpush2.xpose.msra.mxu0 0.0
        %1546 = vmatprep.subr.mxu0 0.0
        %1547 = vmatpush2.xpose.msra.mxu0 0.0
        %1548 = vmatprep.subr.mxu0 0.0
        %1549 = vmatpush2.xpose.msra.mxu0 0.0
        %1550 = vmatprep.subr.mxu0 0.0
        %1551 = vmatpush2.xpose.msra.mxu0 0.0
        %1552 = vmatprep.subr.mxu0 0.0
        %1553 = vmatpush2.xpose.msra.mxu0 0.0
        %1554 = vmatprep.subr.mxu0 0.0
        %1555 = vmatpush2.xpose.msra.mxu0 0.0
        %1556 = vmatprep.subr.mxu0 0.0
        %1557 = vmatpush2.xpose.msra.mxu0 0.0
        %1558 = vmatprep.subr.mxu0 0.0
        %1559 = vmatpush2.xpose.msra.mxu0 0.0
        %1560 = vmatprep.subr.mxu0 0.0
        %1561 = vmatpush2.xpose.msra.mxu0 0.0
        %1562 = vmatprep.subr.mxu0 0.0
        %1563 = vmatpush2.xpose.msra.mxu0 0.0
        %1564 = vmatprep.subr.mxu0 0.0
        %1565 = vmatpush2.xpose.msra.mxu0 0.0
        %1566 = vmatprep.mubr.f32.mxu0 0.0
        %1567 = vmatmul.mubr.f32.gmra.mxu0 %v1498
        %v1568 = vpop.f32.mrf.mxu0
        %v1569 = vadd.f32 0.0, %v1568
        %v1570 = vpop.f32.mrf.mxu0
        %1571 = vdwg.mxu0
        %1572 = vrot.lane.b32.xlu0 %v824, 120
        %v1573 = vpop.permute.xlu0 %1572
        %1574 = vrot.lane.b32.xlu0 %v824, 88
        %v1575 = vpop.permute.xlu0 %1574
        %v1576 = vsel %vm840, %v1573, 0
        %v1578 = vsel %vm840, %v1575, 0
        %1580 = vmatprep.subr.mxu0 0.0
        %1581 = vmatpush1.xpose.msra.mxu0 0.0
        %1582 = vmatprep.subr.mxu0 0.0
        %1583 = vmatpush1.xpose.msra.mxu0 0.0
        %1584 = vmatprep.subr.mxu0 0.0
        %1585 = vmatpush1.xpose.msra.mxu0 0.0
        %1586 = vmatprep.subr.mxu0 0.0
        %1587 = vmatpush1.xpose.msra.mxu0 0.0
        %1588 = vmatprep.subr.mxu0 0.0
        %1589 = vmatpush1.xpose.msra.mxu0 0.0
        %1590 = vmatprep.subr.mxu0 0.0
        %1591 = vmatpush1.xpose.msra.mxu0 0.0
        %1592 = vmatprep.subr.mxu0 0.0
        %1593 = vmatpush1.xpose.msra.mxu0 0.0
        %1594 = vmatprep.subr.mxu0 0.0
        %1595 = vmatpush1.xpose.msra.mxu0 0.0
        %1596 = vmatprep.subr.mxu0 0.0
        %1597 = vmatpush1.xpose.msra.mxu0 0.0
        %1598 = vmatprep.subr.mxu0 0.0
        %1599 = vmatpush1.xpose.msra.mxu0 0.0
        %1600 = vmatprep.subr.mxu0 0.0
        %1601 = vmatpush1.xpose.msra.mxu0 0.0
        %1602 = vmatprep.subr.mxu0 0.0
        %1603 = vmatpush1.xpose.msra.mxu0 0.0
        %1604 = vmatprep.subr.mxu0 0.0
        %1605 = vmatpush1.xpose.msra.mxu0 0.0
        %1606 = vmatprep.subr.mxu0 0.0
        %1607 = vmatpush1.xpose.msra.mxu0 0.0
        %1608 = vmatprep.subr.mxu0 0.0
        %1609 = vmatpush1.xpose.msra.mxu0 0.0
        %1610 = vmatprep.subr.mxu0 0.0
        %1611 = vmatpush1.xpose.msra.mxu0 %v1578
        %1612 = vmatprep.subr.mxu0 0.0
        %1613 = vmatpush2.xpose.msra.mxu0 0.0
        %1614 = vmatprep.subr.mxu0 0.0
        %1615 = vmatpush2.xpose.msra.mxu0 0.0
        %1616 = vmatprep.subr.mxu0 0.0
        %1617 = vmatpush2.xpose.msra.mxu0 0.0
        %1618 = vmatprep.subr.mxu0 0.0
        %1619 = vmatpush2.xpose.msra.mxu0 0.0
        %1620 = vmatprep.subr.mxu0 0.0
        %1621 = vmatpush2.xpose.msra.mxu0 0.0
        %1622 = vmatprep.subr.mxu0 0.0
        %1623 = vmatpush2.xpose.msra.mxu0 0.0
        %1624 = vmatprep.subr.mxu0 0.0
        %1625 = vmatpush2.xpose.msra.mxu0 0.0
        %1626 = vmatprep.subr.mxu0 0.0
        %1627 = vmatpush2.xpose.msra.mxu0 0.0
        %1628 = vmatprep.subr.mxu0 0.0
        %1629 = vmatpush2.xpose.msra.mxu0 0.0
        %1630 = vmatprep.subr.mxu0 0.0
        %1631 = vmatpush2.xpose.msra.mxu0 0.0
        %1632 = vmatprep.subr.mxu0 0.0
        %1633 = vmatpush2.xpose.msra.mxu0 0.0
        %1634 = vmatprep.subr.mxu0 0.0
        %1635 = vmatpush2.xpose.msra.mxu0 0.0
        %1636 = vmatprep.subr.mxu0 0.0
        %1637 = vmatpush2.xpose.msra.mxu0 0.0
        %1638 = vmatprep.subr.mxu0 0.0
        %1639 = vmatpush2.xpose.msra.mxu0 0.0
        %1640 = vmatprep.subr.mxu0 0.0
        %1641 = vmatpush2.xpose.msra.mxu0 0.0
        %1642 = vmatprep.subr.mxu0 0.0
        %1643 = vmatpush2.xpose.msra.mxu0 0.0
        %1644 = vmatprep.mubr.f32.mxu0 0.0
        %1645 = vmatmul.mubr.f32.gmra.mxu0 %v1576
        %v1646 = vpop.f32.mrf.mxu0
        %v1647 = vadd.f32 0.0, %v1646
        %v1648 = vpop.f32.mrf.mxu0
        %1649 = vdwg.mxu0
        %1650 = vrot.lane.b32.xlu0 %v829, 120
        %v1651 = vpop.permute.xlu0 %1650
        %1652 = vrot.lane.b32.xlu0 %v829, 88
        %v1653 = vpop.permute.xlu0 %1652
        %v1654 = vsel %vm840, %v1651, 0
        %v1656 = vsel %vm840, %v1653, 0
        %1658 = vmatprep.subr.mxu0 0.0
        %1659 = vmatpush1.xpose.msra.mxu0 0.0
        %1660 = vmatprep.subr.mxu0 0.0
        %1661 = vmatpush1.xpose.msra.mxu0 0.0
        %1662 = vmatprep.subr.mxu0 0.0
        %1663 = vmatpush1.xpose.msra.mxu0 0.0
        %1664 = vmatprep.subr.mxu0 0.0
        %1665 = vmatpush1.xpose.msra.mxu0 0.0
        %1666 = vmatprep.subr.mxu0 0.0
        %1667 = vmatpush1.xpose.msra.mxu0 0.0
        %1668 = vmatprep.subr.mxu0 0.0
        %1669 = vmatpush1.xpose.msra.mxu0 0.0
        %1670 = vmatprep.subr.mxu0 0.0
        %1671 = vmatpush1.xpose.msra.mxu0 0.0
        %1672 = vmatprep.subr.mxu0 0.0
        %1673 = vmatpush1.xpose.msra.mxu0 0.0
        %1674 = vmatprep.subr.mxu0 0.0
        %1675 = vmatpush1.xpose.msra.mxu0 0.0
        %1676 = vmatprep.subr.mxu0 0.0
        %1677 = vmatpush1.xpose.msra.mxu0 0.0
        %1678 = vmatprep.subr.mxu0 0.0
        %1679 = vmatpush1.xpose.msra.mxu0 0.0
        %1680 = vmatprep.subr.mxu0 0.0
        %1681 = vmatpush1.xpose.msra.mxu0 0.0
        %1682 = vmatprep.subr.mxu0 0.0
        %1683 = vmatpush1.xpose.msra.mxu0 0.0
        %1684 = vmatprep.subr.mxu0 0.0
        %1685 = vmatpush1.xpose.msra.mxu0 0.0
        %1686 = vmatprep.subr.mxu0 0.0
        %1687 = vmatpush1.xpose.msra.mxu0 0.0
        %1688 = vmatprep.subr.mxu0 0.0
        %1689 = vmatpush1.xpose.msra.mxu0 %v1656
        %1690 = vmatprep.subr.mxu0 0.0
        %1691 = vmatpush2.xpose.msra.mxu0 0.0
        %1692 = vmatprep.subr.mxu0 0.0
        %1693 = vmatpush2.xpose.msra.mxu0 0.0
        %1694 = vmatprep.subr.mxu0 0.0
        %1695 = vmatpush2.xpose.msra.mxu0 0.0
        %1696 = vmatprep.subr.mxu0 0.0
        %1697 = vmatpush2.xpose.msra.mxu0 0.0
        %1698 = vmatprep.subr.mxu0 0.0
        %1699 = vmatpush2.xpose.msra.mxu0 0.0
        %1700 = vmatprep.subr.mxu0 0.0
        %1701 = vmatpush2.xpose.msra.mxu0 0.0
        %1702 = vmatprep.subr.mxu0 0.0
        %1703 = vmatpush2.xpose.msra.mxu0 0.0
        %1704 = vmatprep.subr.mxu0 0.0
        %1705 = vmatpush2.xpose.msra.mxu0 0.0
        %1706 = vmatprep.subr.mxu0 0.0
        %1707 = vmatpush2.xpose.msra.mxu0 0.0
        %1708 = vmatprep.subr.mxu0 0.0
        %1709 = vmatpush2.xpose.msra.mxu0 0.0
        %1710 = vmatprep.subr.mxu0 0.0
        %1711 = vmatpush2.xpose.msra.mxu0 0.0
        %1712 = vmatprep.subr.mxu0 0.0
        %1713 = vmatpush2.xpose.msra.mxu0 0.0
        %1714 = vmatprep.subr.mxu0 0.0
        %1715 = vmatpush2.xpose.msra.mxu0 0.0
        %1716 = vmatprep.subr.mxu0 0.0
        %1717 = vmatpush2.xpose.msra.mxu0 0.0
        %1718 = vmatprep.subr.mxu0 0.0
        %1719 = vmatpush2.xpose.msra.mxu0 0.0
        %1720 = vmatprep.subr.mxu0 0.0
        %1721 = vmatpush2.xpose.msra.mxu0 0.0
        %1722 = vmatprep.mubr.f32.mxu0 0.0
        %1723 = vmatmul.mubr.f32.gmra.mxu0 %v1654
        %v1724 = vpop.f32.mrf.mxu0
        %v1725 = vadd.f32 0.0, %v1724
        %v1726 = vpop.f32.mrf.mxu0
        %1727 = vdwg.mxu0
        %1728 = vrot.lane.b32.xlu0 %v834, 120
        %v1729 = vpop.permute.xlu0 %1728
        %1730 = vrot.lane.b32.xlu0 %v834, 88
        %v1731 = vpop.permute.xlu0 %1730
        %v1732 = vsel %vm840, %v1729, 0
        %v1734 = vsel %vm840, %v1731, 0
        %1736 = vmatprep.subr.mxu0 0.0
        %1737 = vmatpush1.xpose.msra.mxu0 0.0
        %1738 = vmatprep.subr.mxu0 0.0
        %1739 = vmatpush1.xpose.msra.mxu0 0.0
        %1740 = vmatprep.subr.mxu0 0.0
        %1741 = vmatpush1.xpose.msra.mxu0 0.0
        %1742 = vmatprep.subr.mxu0 0.0
        %1743 = vmatpush1.xpose.msra.mxu0 0.0
        %1744 = vmatprep.subr.mxu0 0.0
        %1745 = vmatpush1.xpose.msra.mxu0 0.0
        %1746 = vmatprep.subr.mxu0 0.0
        %1747 = vmatpush1.xpose.msra.mxu0 0.0
        %1748 = vmatprep.subr.mxu0 0.0
        %1749 = vmatpush1.xpose.msra.mxu0 0.0
        %1750 = vmatprep.subr.mxu0 0.0
        %1751 = vmatpush1.xpose.msra.mxu0 0.0
        %1752 = vmatprep.subr.mxu0 0.0
        %1753 = vmatpush1.xpose.msra.mxu0 0.0
        %1754 = vmatprep.subr.mxu0 0.0
        %1755 = vmatpush1.xpose.msra.mxu0 0.0
        %1756 = vmatprep.subr.mxu0 0.0
        %1757 = vmatpush1.xpose.msra.mxu0 0.0
        %1758 = vmatprep.subr.mxu0 0.0
        %1759 = vmatpush1.xpose.msra.mxu0 0.0
        %1760 = vmatprep.subr.mxu0 0.0
        %1761 = vmatpush1.xpose.msra.mxu0 0.0
        %1762 = vmatprep.subr.mxu0 0.0
        %1763 = vmatpush1.xpose.msra.mxu0 0.0
        %1764 = vmatprep.subr.mxu0 0.0
        %1765 = vmatpush1.xpose.msra.mxu0 0.0
        %1766 = vmatprep.subr.mxu0 0.0
        %1767 = vmatpush1.xpose.msra.mxu0 %v1734
        %1768 = vmatprep.subr.mxu0 0.0
        %1769 = vmatpush2.xpose.msra.mxu0 0.0
        %1770 = vmatprep.subr.mxu0 0.0
        %1771 = vmatpush2.xpose.msra.mxu0 0.0
        %1772 = vmatprep.subr.mxu0 0.0
        %1773 = vmatpush2.xpose.msra.mxu0 0.0
        %1774 = vmatprep.subr.mxu0 0.0
        %1775 = vmatpush2.xpose.msra.mxu0 0.0
        %1776 = vmatprep.subr.mxu0 0.0
        %1777 = vmatpush2.xpose.msra.mxu0 0.0
        %1778 = vmatprep.subr.mxu0 0.0
        %1779 = vmatpush2.xpose.msra.mxu0 0.0
        %1780 = vmatprep.subr.mxu0 0.0
        %1781 = vmatpush2.xpose.msra.mxu0 0.0
        %1782 = vmatprep.subr.mxu0 0.0
        %1783 = vmatpush2.xpose.msra.mxu0 0.0
        %1784 = vmatprep.subr.mxu0 0.0
        %1785 = vmatpush2.xpose.msra.mxu0 0.0
        %1786 = vmatprep.subr.mxu0 0.0
        %1787 = vmatpush2.xpose.msra.mxu0 0.0
        %1788 = vmatprep.subr.mxu0 0.0
        %1789 = vmatpush2.xpose.msra.mxu0 0.0
        %1790 = vmatprep.subr.mxu0 0.0
        %1791 = vmatpush2.xpose.msra.mxu0 0.0
        %1792 = vmatprep.subr.mxu0 0.0
        %1793 = vmatpush2.xpose.msra.mxu0 0.0
        %1794 = vmatprep.subr.mxu0 0.0
        %1795 = vmatpush2.xpose.msra.mxu0 0.0
        %1796 = vmatprep.subr.mxu0 0.0
        %1797 = vmatpush2.xpose.msra.mxu0 0.0
        %1798 = vmatprep.subr.mxu0 0.0
        %1799 = vmatpush2.xpose.msra.mxu0 0.0
        %1800 = vmatprep.mubr.f32.mxu0 0.0
        %1801 = vmatmul.mubr.f32.gmra.mxu0 %v1732
        %v1802 = vpop.f32.mrf.mxu0
        %v1803 = vadd.f32 0.0, %v1802
        %v1804 = vpop.f32.mrf.mxu0
        %1805 = vdwg.mxu0
        %v1806 = vsel %vm840, %v1569, -inf
        %1807 = vmax.xlane.f32.xlu0 %v1806
        %v1808 = vpop.xlane.xlu0 %1807
        %v1809 = vsel %vm840, %v1647, -inf
        %1810 = vmax.xlane.f32.xlu0 %v1809
        %v1811 = vpop.xlane.xlu0 %1810
        %v1812 = vsel %vm840, %v1725, -inf
        %1813 = vmax.xlane.f32.xlu0 %v1812
        %v1814 = vpop.xlane.xlu0 %1813
        %v1815 = vsel %vm840, %v1803, -inf
        %1816 = vmax.xlane.f32.xlu0 %v1815
        %v1817 = vpop.xlane.xlu0 %1816
        %v1818 = vsub.f32 %v1569, %v1808
        %v1819 = vsub.f32 %v1647, %v1811
        %v1820 = vsub.f32 %v1725, %v1814
        %v1821 = vsub.f32 %v1803, %v1817
        %v1822 = vmul.f32 %v1818, 1.442695
        %v1823 = vpow.pop %v1822
        %v1824 = vmul.f32 %v1819, 1.442695
        %v1825 = vpow.pop %v1824
        %v1826 = vmul.f32 %v1820, 1.442695
        %v1827 = vpow.pop %v1826
        %v1828 = vmul.f32 %v1821, 1.442695
        %v1829 = vpow.pop %v1828
        %v1830 = vsel %vm840, %v1823, 0.0
        %1831 = vadd.xlane.f32.xlu0 %v1830
        %v1832 = vpop.xlane.xlu0 %1831
        %v1833 = vsel %vm840, %v1825, 0.0
        %1834 = vadd.xlane.f32.xlu0 %v1833
        %v1835 = vpop.xlane.xlu0 %1834
        %v1836 = vsel %vm840, %v1827, 0.0
        %1837 = vadd.xlane.f32.xlu0 %v1836
        %v1838 = vpop.xlane.xlu0 %1837
        %v1839 = vsel %vm840, %v1829, 0.0
        %1840 = vadd.xlane.f32.xlu0 %v1839
        %v1841 = vpop.xlane.xlu0 %1840
        %v1842 = vrcp.pop %v1832
        %v1843 = vmul.f32 %v1823, %v1842
        %v1844 = vrcp.pop %v1835
        %v1845 = vmul.f32 %v1825, %v1844
        %v1846 = vrcp.pop %v1838
        %v1847 = vmul.f32 %v1827, %v1846
        %v1848 = vrcp.pop %v1841
        %v1849 = vmul.f32 %v1829, %v1848
        %1850 = vrot.lane.b32.xlu0 %v819, 56
        %v1851 = vpop.permute.xlu0 %1850
        %v1854 = vsel %vm840, %v1843, 0
        %1856 = vmatprep.subr.mxu0 0.0
        %1857 = vmatpush1.msra.mxu0 0.0
        %1858 = vmatprep.subr.mxu0 0.0
        %1859 = vmatpush1.msra.mxu0 0.0
        %1860 = vmatprep.subr.mxu0 0.0
        %1861 = vmatpush1.msra.mxu0 0.0
        %1862 = vmatprep.subr.mxu0 0.0
        %1863 = vmatpush1.msra.mxu0 0.0
        %1864 = vmatprep.subr.mxu0 0.0
        %1865 = vmatpush1.msra.mxu0 0.0
        %1866 = vmatprep.subr.mxu0 0.0
        %1867 = vmatpush1.msra.mxu0 0.0
        %1868 = vmatprep.subr.mxu0 0.0
        %1869 = vmatpush1.msra.mxu0 0.0
        %1870 = vmatprep.subr.mxu0 0.0
        %1871 = vmatpush1.msra.mxu0 0.0
        %1872 = vmatprep.subr.mxu0 0.0
        %1873 = vmatpush1.msra.mxu0 0.0
        %1874 = vmatprep.subr.mxu0 0.0
        %1875 = vmatpush1.msra.mxu0 0.0
        %1876 = vmatprep.subr.mxu0 0.0
        %1877 = vmatpush1.msra.mxu0 0.0
        %1878 = vmatprep.subr.mxu0 0.0
        %1879 = vmatpush1.msra.mxu0 0.0
        %1880 = vmatprep.subr.mxu0 0.0
        %1881 = vmatpush1.msra.mxu0 0.0
        %1882 = vmatprep.subr.mxu0 0.0
        %1883 = vmatpush1.msra.mxu0 0.0
        %1884 = vmatprep.subr.mxu0 0.0
        %1885 = vmatpush1.msra.mxu0 0.0
        %1886 = vmatprep.subr.mxu0 0.0
        %1887 = vmatpush1.msra.mxu0 %v1851
        %1888 = vmatprep.subr.mxu0 0.0
        %1889 = vmatpush2.msra.mxu0 0.0
        %1890 = vmatprep.subr.mxu0 0.0
        %1891 = vmatpush2.msra.mxu0 0.0
        %1892 = vmatprep.subr.mxu0 0.0
        %1893 = vmatpush2.msra.mxu0 0.0
        %1894 = vmatprep.subr.mxu0 0.0
        %1895 = vmatpush2.msra.mxu0 0.0
        %1896 = vmatprep.subr.mxu0 0.0
        %1897 = vmatpush2.msra.mxu0 0.0
        %1898 = vmatprep.subr.mxu0 0.0
        %1899 = vmatpush2.msra.mxu0 0.0
        %1900 = vmatprep.subr.mxu0 0.0
        %1901 = vmatpush2.msra.mxu0 0.0
        %1902 = vmatprep.subr.mxu0 0.0
        %1903 = vmatpush2.msra.mxu0 0.0
        %1904 = vmatprep.subr.mxu0 0.0
        %1905 = vmatpush2.msra.mxu0 0.0
        %1906 = vmatprep.subr.mxu0 0.0
        %1907 = vmatpush2.msra.mxu0 0.0
        %1908 = vmatprep.subr.mxu0 0.0
        %1909 = vmatpush2.msra.mxu0 0.0
        %1910 = vmatprep.subr.mxu0 0.0
        %1911 = vmatpush2.msra.mxu0 0.0
        %1912 = vmatprep.subr.mxu0 0.0
        %1913 = vmatpush2.msra.mxu0 0.0
        %1914 = vmatprep.subr.mxu0 0.0
        %1915 = vmatpush2.msra.mxu0 0.0
        %1916 = vmatprep.subr.mxu0 0.0
        %1917 = vmatpush2.msra.mxu0 0.0
        %1918 = vmatprep.subr.mxu0 0.0
        %1919 = vmatpush2.msra.mxu0 0.0
        %1920 = vmatprep.mubr.f32.mxu0 0.0
        %1921 = vmatmul.mubr.f32.gmra.mxu0 %v1854
        %v1922 = vpop.f32.mrf.mxu0
        %v1923 = vadd.f32 0.0, %v1922
        %v1924 = vpop.f32.mrf.mxu0
        %1925 = vdwg.mxu0
        %1926 = vrot.lane.b32.xlu0 %v824, 56
        %v1927 = vpop.permute.xlu0 %1926
        %v1930 = vsel %vm840, %v1845, 0
        %1932 = vmatprep.subr.mxu0 0.0
        %1933 = vmatpush1.msra.mxu0 0.0
        %1934 = vmatprep.subr.mxu0 0.0
        %1935 = vmatpush1.msra.mxu0 0.0
        %1936 = vmatprep.subr.mxu0 0.0
        %1937 = vmatpush1.msra.mxu0 0.0
        %1938 = vmatprep.subr.mxu0 0.0
        %1939 = vmatpush1.msra.mxu0 0.0
        %1940 = vmatprep.subr.mxu0 0.0
        %1941 = vmatpush1.msra.mxu0 0.0
        %1942 = vmatprep.subr.mxu0 0.0
        %1943 = vmatpush1.msra.mxu0 0.0
        %1944 = vmatprep.subr.mxu0 0.0
        %1945 = vmatpush1.msra.mxu0 0.0
        %1946 = vmatprep.subr.mxu0 0.0
        %1947 = vmatpush1.msra.mxu0 0.0
        %1948 = vmatprep.subr.mxu0 0.0
        %1949 = vmatpush1.msra.mxu0 0.0
        %1950 = vmatprep.subr.mxu0 0.0
        %1951 = vmatpush1.msra.mxu0 0.0
        %1952 = vmatprep.subr.mxu0 0.0
        %1953 = vmatpush1.msra.mxu0 0.0
        %1954 = vmatprep.subr.mxu0 0.0
        %1955 = vmatpush1.msra.mxu0 0.0
        %1956 = vmatprep.subr.mxu0 0.0
        %1957 = vmatpush1.msra.mxu0 0.0
        %1958 = vmatprep.subr.mxu0 0.0
        %1959 = vmatpush1.msra.mxu0 0.0
        %1960 = vmatprep.subr.mxu0 0.0
        %1961 = vmatpush1.msra.mxu0 0.0
        %1962 = vmatprep.subr.mxu0 0.0
        %1963 = vmatpush1.msra.mxu0 %v1927
        %1964 = vmatprep.subr.mxu0 0.0
        %1965 = vmatpush2.msra.mxu0 0.0
        %1966 = vmatprep.subr.mxu0 0.0
        %1967 = vmatpush2.msra.mxu0 0.0
        %1968 = vmatprep.subr.mxu0 0.0
        %1969 = vmatpush2.msra.mxu0 0.0
        %1970 = vmatprep.subr.mxu0 0.0
        %1971 = vmatpush2.msra.mxu0 0.0
        %1972 = vmatprep.subr.mxu0 0.0
        %1973 = vmatpush2.msra.mxu0 0.0
        %1974 = vmatprep.subr.mxu0 0.0
        %1975 = vmatpush2.msra.mxu0 0.0
        %1976 = vmatprep.subr.mxu0 0.0
        %1977 = vmatpush2.msra.mxu0 0.0
        %1978 = vmatprep.subr.mxu0 0.0
        %1979 = vmatpush2.msra.mxu0 0.0
        %1980 = vmatprep.subr.mxu0 0.0
        %1981 = vmatpush2.msra.mxu0 0.0
        %1982 = vmatprep.subr.mxu0 0.0
        %1983 = vmatpush2.msra.mxu0 0.0
        %1984 = vmatprep.subr.mxu0 0.0
        %1985 = vmatpush2.msra.mxu0 0.0
        %1986 = vmatprep.subr.mxu0 0.0
        %1987 = vmatpush2.msra.mxu0 0.0
        %1988 = vmatprep.subr.mxu0 0.0
        %1989 = vmatpush2.msra.mxu0 0.0
        %1990 = vmatprep.subr.mxu0 0.0
        %1991 = vmatpush2.msra.mxu0 0.0
        %1992 = vmatprep.subr.mxu0 0.0
        %1993 = vmatpush2.msra.mxu0 0.0
        %1994 = vmatprep.subr.mxu0 0.0
        %1995 = vmatpush2.msra.mxu0 0.0
        %1996 = vmatprep.mubr.f32.mxu0 0.0
        %1997 = vmatmul.mubr.f32.gmra.mxu0 %v1930
        %v1998 = vpop.f32.mrf.mxu0
        %v1999 = vadd.f32 0.0, %v1998
        %v2000 = vpop.f32.mrf.mxu0
        %2001 = vdwg.mxu0
        %2002 = vrot.lane.b32.xlu0 %v829, 56
        %v2003 = vpop.permute.xlu0 %2002
        %v2006 = vsel %vm840, %v1847, 0
        %2008 = vmatprep.subr.mxu0 0.0
        %2009 = vmatpush1.msra.mxu0 0.0
        %2010 = vmatprep.subr.mxu0 0.0
        %2011 = vmatpush1.msra.mxu0 0.0
        %2012 = vmatprep.subr.mxu0 0.0
        %2013 = vmatpush1.msra.mxu0 0.0
        %2014 = vmatprep.subr.mxu0 0.0
        %2015 = vmatpush1.msra.mxu0 0.0
        %2016 = vmatprep.subr.mxu0 0.0
        %2017 = vmatpush1.msra.mxu0 0.0
        %2018 = vmatprep.subr.mxu0 0.0
        %2019 = vmatpush1.msra.mxu0 0.0
        %2020 = vmatprep.subr.mxu0 0.0
        %2021 = vmatpush1.msra.mxu0 0.0
        %2022 = vmatprep.subr.mxu0 0.0
        %2023 = vmatpush1.msra.mxu0 0.0
        %2024 = vmatprep.subr.mxu0 0.0
        %2025 = vmatpush1.msra.mxu0 0.0
        %2026 = vmatprep.subr.mxu0 0.0
        %2027 = vmatpush1.msra.mxu0 0.0
        %2028 = vmatprep.subr.mxu0 0.0
        %2029 = vmatpush1.msra.mxu0 0.0
        %2030 = vmatprep.subr.mxu0 0.0
        %2031 = vmatpush1.msra.mxu0 0.0
        %2032 = vmatprep.subr.mxu0 0.0
        %2033 = vmatpush1.msra.mxu0 0.0
        %2034 = vmatprep.subr.mxu0 0.0
        %2035 = vmatpush1.msra.mxu0 0.0
        %2036 = vmatprep.subr.mxu0 0.0
        %2037 = vmatpush1.msra.mxu0 0.0
        %2038 = vmatprep.subr.mxu0 0.0
        %2039 = vmatpush1.msra.mxu0 %v2003
        %2040 = vmatprep.subr.mxu0 0.0
        %2041 = vmatpush2.msra.mxu0 0.0
        %2042 = vmatprep.subr.mxu0 0.0
        %2043 = vmatpush2.msra.mxu0 0.0
        %2044 = vmatprep.subr.mxu0 0.0
        %2045 = vmatpush2.msra.mxu0 0.0
        %2046 = vmatprep.subr.mxu0 0.0
        %2047 = vmatpush2.msra.mxu0 0.0
        %2048 = vmatprep.subr.mxu0 0.0
        %2049 = vmatpush2.msra.mxu0 0.0
        %2050 = vmatprep.subr.mxu0 0.0
        %2051 = vmatpush2.msra.mxu0 0.0
        %2052 = vmatprep.subr.mxu0 0.0
        %2053 = vmatpush2.msra.mxu0 0.0
        %2054 = vmatprep.subr.mxu0 0.0
        %2055 = vmatpush2.msra.mxu0 0.0
        %2056 = vmatprep.subr.mxu0 0.0
        %2057 = vmatpush2.msra.mxu0 0.0
        %2058 = vmatprep.subr.mxu0 0.0
        %2059 = vmatpush2.msra.mxu0 0.0
        %2060 = vmatprep.subr.mxu0 0.0
        %2061 = vmatpush2.msra.mxu0 0.0
        %2062 = vmatprep.subr.mxu0 0.0
        %2063 = vmatpush2.msra.mxu0 0.0
        %2064 = vmatprep.subr.mxu0 0.0
        %2065 = vmatpush2.msra.mxu0 0.0
        %2066 = vmatprep.subr.mxu0 0.0
        %2067 = vmatpush2.msra.mxu0 0.0
        %2068 = vmatprep.subr.mxu0 0.0
        %2069 = vmatpush2.msra.mxu0 0.0
        %2070 = vmatprep.subr.mxu0 0.0
        %2071 = vmatpush2.msra.mxu0 0.0
        %2072 = vmatprep.mubr.f32.mxu0 0.0
        %2073 = vmatmul.mubr.f32.gmra.mxu0 %v2006
        %v2074 = vpop.f32.mrf.mxu0
        %v2075 = vadd.f32 0.0, %v2074
        %v2076 = vpop.f32.mrf.mxu0
        %2077 = vdwg.mxu0
        %2078 = vrot.lane.b32.xlu0 %v834, 56
        %v2079 = vpop.permute.xlu0 %2078
        %v2082 = vsel %vm840, %v1849, 0
        %2084 = vmatprep.subr.mxu0 0.0
        %2085 = vmatpush1.msra.mxu0 0.0
        %2086 = vmatprep.subr.mxu0 0.0
        %2087 = vmatpush1.msra.mxu0 0.0
        %2088 = vmatprep.subr.mxu0 0.0
        %2089 = vmatpush1.msra.mxu0 0.0
        %2090 = vmatprep.subr.mxu0 0.0
        %2091 = vmatpush1.msra.mxu0 0.0
        %2092 = vmatprep.subr.mxu0 0.0
        %2093 = vmatpush1.msra.mxu0 0.0
        %2094 = vmatprep.subr.mxu0 0.0
        %2095 = vmatpush1.msra.mxu0 0.0
        %2096 = vmatprep.subr.mxu0 0.0
        %2097 = vmatpush1.msra.mxu0 0.0
        %2098 = vmatprep.subr.mxu0 0.0
        %2099 = vmatpush1.msra.mxu0 0.0
        %2100 = vmatprep.subr.mxu0 0.0
        %2101 = vmatpush1.msra.mxu0 0.0
        %2102 = vmatprep.subr.mxu0 0.0
        %2103 = vmatpush1.msra.mxu0 0.0
        %2104 = vmatprep.subr.mxu0 0.0
        %2105 = vmatpush1.msra.mxu0 0.0
        %2106 = vmatprep.subr.mxu0 0.0
        %2107 = vmatpush1.msra.mxu0 0.0
        %2108 = vmatprep.subr.mxu0 0.0
        %2109 = vmatpush1.msra.mxu0 0.0
        %2110 = vmatprep.subr.mxu0 0.0
        %2111 = vmatpush1.msra.mxu0 0.0
        %2112 = vmatprep.subr.mxu0 0.0
        %2113 = vmatpush1.msra.mxu0 0.0
        %2114 = vmatprep.subr.mxu0 0.0
        %2115 = vmatpush1.msra.mxu0 %v2079
        %2116 = vmatprep.subr.mxu0 0.0
        %2117 = vmatpush2.msra.mxu0 0.0
        %2118 = vmatprep.subr.mxu0 0.0
        %2119 = vmatpush2.msra.mxu0 0.0
        %2120 = vmatprep.subr.mxu0 0.0
        %2121 = vmatpush2.msra.mxu0 0.0
        %2122 = vmatprep.subr.mxu0 0.0
        %2123 = vmatpush2.msra.mxu0 0.0
        %2124 = vmatprep.subr.mxu0 0.0
        %2125 = vmatpush2.msra.mxu0 0.0
        %2126 = vmatprep.subr.mxu0 0.0
        %2127 = vmatpush2.msra.mxu0 0.0
        %2128 = vmatprep.subr.mxu0 0.0
        %2129 = vmatpush2.msra.mxu0 0.0
        %2130 = vmatprep.subr.mxu0 0.0
        %2131 = vmatpush2.msra.mxu0 0.0
        %2132 = vmatprep.subr.mxu0 0.0
        %2133 = vmatpush2.msra.mxu0 0.0
        %2134 = vmatprep.subr.mxu0 0.0
        %2135 = vmatpush2.msra.mxu0 0.0
        %2136 = vmatprep.subr.mxu0 0.0
        %2137 = vmatpush2.msra.mxu0 0.0
        %2138 = vmatprep.subr.mxu0 0.0
        %2139 = vmatpush2.msra.mxu0 0.0
        %2140 = vmatprep.subr.mxu0 0.0
        %2141 = vmatpush2.msra.mxu0 0.0
        %2142 = vmatprep.subr.mxu0 0.0
        %2143 = vmatpush2.msra.mxu0 0.0
        %2144 = vmatprep.subr.mxu0 0.0
        %2145 = vmatpush2.msra.mxu0 0.0
        %2146 = vmatprep.subr.mxu0 0.0
        %2147 = vmatpush2.msra.mxu0 0.0
        %2148 = vmatprep.mubr.f32.mxu0 0.0
        %2149 = vmatmul.mubr.f32.gmra.mxu0 %v2082
        %v2150 = vpop.f32.mrf.mxu0
        %v2151 = vadd.f32 0.0, %v2150
        %v2152 = vpop.f32.mrf.mxu0
        %2153 = vdwg.mxu0
        %2154 = vrot.lane.b32.xlu0 %v819, 112
        %v2155 = vpop.permute.xlu0 %2154
        %2156 = vrot.lane.b32.xlu0 %v819, 80
        %v2157 = vpop.permute.xlu0 %2156
        %v2158 = vsel %vm840, %v2155, 0
        %v2160 = vsel %vm840, %v2157, 0
        %2162 = vmatprep.subr.mxu0 0.0
        %2163 = vmatpush1.xpose.msra.mxu0 0.0
        %2164 = vmatprep.subr.mxu0 0.0
        %2165 = vmatpush1.xpose.msra.mxu0 0.0
        %2166 = vmatprep.subr.mxu0 0.0
        %2167 = vmatpush1.xpose.msra.mxu0 0.0
        %2168 = vmatprep.subr.mxu0 0.0
        %2169 = vmatpush1.xpose.msra.mxu0 0.0
        %2170 = vmatprep.subr.mxu0 0.0
        %2171 = vmatpush1.xpose.msra.mxu0 0.0
        %2172 = vmatprep.subr.mxu0 0.0
        %2173 = vmatpush1.xpose.msra.mxu0 0.0
        %2174 = vmatprep.subr.mxu0 0.0
        %2175 = vmatpush1.xpose.msra.mxu0 0.0
        %2176 = vmatprep.subr.mxu0 0.0
        %2177 = vmatpush1.xpose.msra.mxu0 0.0
        %2178 = vmatprep.subr.mxu0 0.0
        %2179 = vmatpush1.xpose.msra.mxu0 0.0
        %2180 = vmatprep.subr.mxu0 0.0
        %2181 = vmatpush1.xpose.msra.mxu0 0.0
        %2182 = vmatprep.subr.mxu0 0.0
        %2183 = vmatpush1.xpose.msra.mxu0 0.0
        %2184 = vmatprep.subr.mxu0 0.0
        %2185 = vmatpush1.xpose.msra.mxu0 0.0
        %2186 = vmatprep.subr.mxu0 0.0
        %2187 = vmatpush1.xpose.msra.mxu0 0.0
        %2188 = vmatprep.subr.mxu0 0.0
        %2189 = vmatpush1.xpose.msra.mxu0 0.0
        %2190 = vmatprep.subr.mxu0 0.0
        %2191 = vmatpush1.xpose.msra.mxu0 0.0
        %2192 = vmatprep.subr.mxu0 0.0
        %2193 = vmatpush1.xpose.msra.mxu0 %v2160
        %2194 = vmatprep.subr.mxu0 0.0
        %2195 = vmatpush2.xpose.msra.mxu0 0.0
        %2196 = vmatprep.subr.mxu0 0.0
        %2197 = vmatpush2.xpose.msra.mxu0 0.0
        %2198 = vmatprep.subr.mxu0 0.0
        %2199 = vmatpush2.xpose.msra.mxu0 0.0
        %2200 = vmatprep.subr.mxu0 0.0
        %2201 = vmatpush2.xpose.msra.mxu0 0.0
        %2202 = vmatprep.subr.mxu0 0.0
        %2203 = vmatpush2.xpose.msra.mxu0 0.0
        %2204 = vmatprep.subr.mxu0 0.0
        %2205 = vmatpush2.xpose.msra.mxu0 0.0
        %2206 = vmatprep.subr.mxu0 0.0
        %2207 = vmatpush2.xpose.msra.mxu0 0.0
        %2208 = vmatprep.subr.mxu0 0.0
        %2209 = vmatpush2.xpose.msra.mxu0 0.0
        %2210 = vmatprep.subr.mxu0 0.0
        %2211 = vmatpush2.xpose.msra.mxu0 0.0
        %2212 = vmatprep.subr.mxu0 0.0
        %2213 = vmatpush2.xpose.msra.mxu0 0.0
        %2214 = vmatprep.subr.mxu0 0.0
        %2215 = vmatpush2.xpose.msra.mxu0 0.0
        %2216 = vmatprep.subr.mxu0 0.0
        %2217 = vmatpush2.xpose.msra.mxu0 0.0
        %2218 = vmatprep.subr.mxu0 0.0
        %2219 = vmatpush2.xpose.msra.mxu0 0.0
        %2220 = vmatprep.subr.mxu0 0.0
        %2221 = vmatpush2.xpose.msra.mxu0 0.0
        %2222 = vmatprep.subr.mxu0 0.0
        %2223 = vmatpush2.xpose.msra.mxu0 0.0
        %2224 = vmatprep.subr.mxu0 0.0
        %2225 = vmatpush2.xpose.msra.mxu0 0.0
        %2226 = vmatprep.mubr.f32.mxu0 0.0
        %2227 = vmatmul.mubr.f32.gmra.mxu0 %v2158
        %v2228 = vpop.f32.mrf.mxu0
        %v2229 = vadd.f32 0.0, %v2228
        %v2230 = vpop.f32.mrf.mxu0
        %2231 = vdwg.mxu0
        %2232 = vrot.lane.b32.xlu0 %v824, 112
        %v2233 = vpop.permute.xlu0 %2232
        %2234 = vrot.lane.b32.xlu0 %v824, 80
        %v2235 = vpop.permute.xlu0 %2234
        %v2236 = vsel %vm840, %v2233, 0
        %v2238 = vsel %vm840, %v2235, 0
        %2240 = vmatprep.subr.mxu0 0.0
        %2241 = vmatpush1.xpose.msra.mxu0 0.0
        %2242 = vmatprep.subr.mxu0 0.0
        %2243 = vmatpush1.xpose.msra.mxu0 0.0
        %2244 = vmatprep.subr.mxu0 0.0
        %2245 = vmatpush1.xpose.msra.mxu0 0.0
        %2246 = vmatprep.subr.mxu0 0.0
        %2247 = vmatpush1.xpose.msra.mxu0 0.0
        %2248 = vmatprep.subr.mxu0 0.0
        %2249 = vmatpush1.xpose.msra.mxu0 0.0
        %2250 = vmatprep.subr.mxu0 0.0
        %2251 = vmatpush1.xpose.msra.mxu0 0.0
        %2252 = vmatprep.subr.mxu0 0.0
        %2253 = vmatpush1.xpose.msra.mxu0 0.0
        %2254 = vmatprep.subr.mxu0 0.0
        %2255 = vmatpush1.xpose.msra.mxu0 0.0
        %2256 = vmatprep.subr.mxu0 0.0
        %2257 = vmatpush1.xpose.msra.mxu0 0.0
        %2258 = vmatprep.subr.mxu0 0.0
        %2259 = vmatpush1.xpose.msra.mxu0 0.0
        %2260 = vmatprep.subr.mxu0 0.0
        %2261 = vmatpush1.xpose.msra.mxu0 0.0
        %2262 = vmatprep.subr.mxu0 0.0
        %2263 = vmatpush1.xpose.msra.mxu0 0.0
        %2264 = vmatprep.subr.mxu0 0.0
        %2265 = vmatpush1.xpose.msra.mxu0 0.0
        %2266 = vmatprep.subr.mxu0 0.0
        %2267 = vmatpush1.xpose.msra.mxu0 0.0
        %2268 = vmatprep.subr.mxu0 0.0
        %2269 = vmatpush1.xpose.msra.mxu0 0.0
        %2270 = vmatprep.subr.mxu0 0.0
        %2271 = vmatpush1.xpose.msra.mxu0 %v2238
        %2272 = vmatprep.subr.mxu0 0.0
        %2273 = vmatpush2.xpose.msra.mxu0 0.0
        %2274 = vmatprep.subr.mxu0 0.0
        %2275 = vmatpush2.xpose.msra.mxu0 0.0
        %2276 = vmatprep.subr.mxu0 0.0
        %2277 = vmatpush2.xpose.msra.mxu0 0.0
        %2278 = vmatprep.subr.mxu0 0.0
        %2279 = vmatpush2.xpose.msra.mxu0 0.0
        %2280 = vmatprep.subr.mxu0 0.0
        %2281 = vmatpush2.xpose.msra.mxu0 0.0
        %2282 = vmatprep.subr.mxu0 0.0
        %2283 = vmatpush2.xpose.msra.mxu0 0.0
        %2284 = vmatprep.subr.mxu0 0.0
        %2285 = vmatpush2.xpose.msra.mxu0 0.0
        %2286 = vmatprep.subr.mxu0 0.0
        %2287 = vmatpush2.xpose.msra.mxu0 0.0
        %2288 = vmatprep.subr.mxu0 0.0
        %2289 = vmatpush2.xpose.msra.mxu0 0.0
        %2290 = vmatprep.subr.mxu0 0.0
        %2291 = vmatpush2.xpose.msra.mxu0 0.0
        %2292 = vmatprep.subr.mxu0 0.0
        %2293 = vmatpush2.xpose.msra.mxu0 0.0
        %2294 = vmatprep.subr.mxu0 0.0
        %2295 = vmatpush2.xpose.msra.mxu0 0.0
        %2296 = vmatprep.subr.mxu0 0.0
        %2297 = vmatpush2.xpose.msra.mxu0 0.0
        %2298 = vmatprep.subr.mxu0 0.0
        %2299 = vmatpush2.xpose.msra.mxu0 0.0
        %2300 = vmatprep.subr.mxu0 0.0
        %2301 = vmatpush2.xpose.msra.mxu0 0.0
        %2302 = vmatprep.subr.mxu0 0.0
        %2303 = vmatpush2.xpose.msra.mxu0 0.0
        %2304 = vmatprep.mubr.f32.mxu0 0.0
        %2305 = vmatmul.mubr.f32.gmra.mxu0 %v2236
        %v2306 = vpop.f32.mrf.mxu0
        %v2307 = vadd.f32 0.0, %v2306
        %v2308 = vpop.f32.mrf.mxu0
        %2309 = vdwg.mxu0
        %2310 = vrot.lane.b32.xlu0 %v829, 112
        %v2311 = vpop.permute.xlu0 %2310
        %2312 = vrot.lane.b32.xlu0 %v829, 80
        %v2313 = vpop.permute.xlu0 %2312
        %v2314 = vsel %vm840, %v2311, 0
        %v2316 = vsel %vm840, %v2313, 0
        %2318 = vmatprep.subr.mxu0 0.0
        %2319 = vmatpush1.xpose.msra.mxu0 0.0
        %2320 = vmatprep.subr.mxu0 0.0
        %2321 = vmatpush1.xpose.msra.mxu0 0.0
        %2322 = vmatprep.subr.mxu0 0.0
        %2323 = vmatpush1.xpose.msra.mxu0 0.0
        %2324 = vmatprep.subr.mxu0 0.0
        %2325 = vmatpush1.xpose.msra.mxu0 0.0
        %2326 = vmatprep.subr.mxu0 0.0
        %2327 = vmatpush1.xpose.msra.mxu0 0.0
        %2328 = vmatprep.subr.mxu0 0.0
        %2329 = vmatpush1.xpose.msra.mxu0 0.0
        %2330 = vmatprep.subr.mxu0 0.0
        %2331 = vmatpush1.xpose.msra.mxu0 0.0
        %2332 = vmatprep.subr.mxu0 0.0
        %2333 = vmatpush1.xpose.msra.mxu0 0.0
        %2334 = vmatprep.subr.mxu0 0.0
        %2335 = vmatpush1.xpose.msra.mxu0 0.0
        %2336 = vmatprep.subr.mxu0 0.0
        %2337 = vmatpush1.xpose.msra.mxu0 0.0
        %2338 = vmatprep.subr.mxu0 0.0
        %2339 = vmatpush1.xpose.msra.mxu0 0.0
        %2340 = vmatprep.subr.mxu0 0.0
        %2341 = vmatpush1.xpose.msra.mxu0 0.0
        %2342 = vmatprep.subr.mxu0 0.0
        %2343 = vmatpush1.xpose.msra.mxu0 0.0
        %2344 = vmatprep.subr.mxu0 0.0
        %2345 = vmatpush1.xpose.msra.mxu0 0.0
        %2346 = vmatprep.subr.mxu0 0.0
        %2347 = vmatpush1.xpose.msra.mxu0 0.0
        %2348 = vmatprep.subr.mxu0 0.0
        %2349 = vmatpush1.xpose.msra.mxu0 %v2316
        %2350 = vmatprep.subr.mxu0 0.0
        %2351 = vmatpush2.xpose.msra.mxu0 0.0
        %2352 = vmatprep.subr.mxu0 0.0
        %2353 = vmatpush2.xpose.msra.mxu0 0.0
        %2354 = vmatprep.subr.mxu0 0.0
        %2355 = vmatpush2.xpose.msra.mxu0 0.0
        %2356 = vmatprep.subr.mxu0 0.0
        %2357 = vmatpush2.xpose.msra.mxu0 0.0
        %2358 = vmatprep.subr.mxu0 0.0
        %2359 = vmatpush2.xpose.msra.mxu0 0.0
        %2360 = vmatprep.subr.mxu0 0.0
        %2361 = vmatpush2.xpose.msra.mxu0 0.0
        %2362 = vmatprep.subr.mxu0 0.0
        %2363 = vmatpush2.xpose.msra.mxu0 0.0
        %2364 = vmatprep.subr.mxu0 0.0
        %2365 = vmatpush2.xpose.msra.mxu0 0.0
        %2366 = vmatprep.subr.mxu0 0.0
        %2367 = vmatpush2.xpose.msra.mxu0 0.0
        %2368 = vmatprep.subr.mxu0 0.0
        %2369 = vmatpush2.xpose.msra.mxu0 0.0
        %2370 = vmatprep.subr.mxu0 0.0
        %2371 = vmatpush2.xpose.msra.mxu0 0.0
        %2372 = vmatprep.subr.mxu0 0.0
        %2373 = vmatpush2.xpose.msra.mxu0 0.0
        %2374 = vmatprep.subr.mxu0 0.0
        %2375 = vmatpush2.xpose.msra.mxu0 0.0
        %2376 = vmatprep.subr.mxu0 0.0
        %2377 = vmatpush2.xpose.msra.mxu0 0.0
        %2378 = vmatprep.subr.mxu0 0.0
        %2379 = vmatpush2.xpose.msra.mxu0 0.0
        %2380 = vmatprep.subr.mxu0 0.0
        %2381 = vmatpush2.xpose.msra.mxu0 0.0
        %2382 = vmatprep.mubr.f32.mxu0 0.0
        %2383 = vmatmul.mubr.f32.gmra.mxu0 %v2314
        %v2384 = vpop.f32.mrf.mxu0
        %v2385 = vadd.f32 0.0, %v2384
        %v2386 = vpop.f32.mrf.mxu0
        %2387 = vdwg.mxu0
        %2388 = vrot.lane.b32.xlu0 %v834, 112
        %v2389 = vpop.permute.xlu0 %2388
        %2390 = vrot.lane.b32.xlu0 %v834, 80
        %v2391 = vpop.permute.xlu0 %2390
        %v2392 = vsel %vm840, %v2389, 0
        %v2394 = vsel %vm840, %v2391, 0
        %2396 = vmatprep.subr.mxu0 0.0
        %2397 = vmatpush1.xpose.msra.mxu0 0.0
        %2398 = vmatprep.subr.mxu0 0.0
        %2399 = vmatpush1.xpose.msra.mxu0 0.0
        %2400 = vmatprep.subr.mxu0 0.0
        %2401 = vmatpush1.xpose.msra.mxu0 0.0
        %2402 = vmatprep.subr.mxu0 0.0
        %2403 = vmatpush1.xpose.msra.mxu0 0.0
        %2404 = vmatprep.subr.mxu0 0.0
        %2405 = vmatpush1.xpose.msra.mxu0 0.0
        %2406 = vmatprep.subr.mxu0 0.0
        %2407 = vmatpush1.xpose.msra.mxu0 0.0
        %2408 = vmatprep.subr.mxu0 0.0
        %2409 = vmatpush1.xpose.msra.mxu0 0.0
        %2410 = vmatprep.subr.mxu0 0.0
        %2411 = vmatpush1.xpose.msra.mxu0 0.0
        %2412 = vmatprep.subr.mxu0 0.0
        %2413 = vmatpush1.xpose.msra.mxu0 0.0
        %2414 = vmatprep.subr.mxu0 0.0
        %2415 = vmatpush1.xpose.msra.mxu0 0.0
        %2416 = vmatprep.subr.mxu0 0.0
        %2417 = vmatpush1.xpose.msra.mxu0 0.0
        %2418 = vmatprep.subr.mxu0 0.0
        %2419 = vmatpush1.xpose.msra.mxu0 0.0
        %2420 = vmatprep.subr.mxu0 0.0
        %2421 = vmatpush1.xpose.msra.mxu0 0.0
        %2422 = vmatprep.subr.mxu0 0.0
        %2423 = vmatpush1.xpose.msra.mxu0 0.0
        %2424 = vmatprep.subr.mxu0 0.0
        %2425 = vmatpush1.xpose.msra.mxu0 0.0
        %2426 = vmatprep.subr.mxu0 0.0
        %2427 = vmatpush1.xpose.msra.mxu0 %v2394
        %2428 = vmatprep.subr.mxu0 0.0
        %2429 = vmatpush2.xpose.msra.mxu0 0.0
        %2430 = vmatprep.subr.mxu0 0.0
        %2431 = vmatpush2.xpose.msra.mxu0 0.0
        %2432 = vmatprep.subr.mxu0 0.0
        %2433 = vmatpush2.xpose.msra.mxu0 0.0
        %2434 = vmatprep.subr.mxu0 0.0
        %2435 = vmatpush2.xpose.msra.mxu0 0.0
        %2436 = vmatprep.subr.mxu0 0.0
        %2437 = vmatpush2.xpose.msra.mxu0 0.0
        %2438 = vmatprep.subr.mxu0 0.0
        %2439 = vmatpush2.xpose.msra.mxu0 0.0
        %2440 = vmatprep.subr.mxu0 0.0
        %2441 = vmatpush2.xpose.msra.mxu0 0.0
        %2442 = vmatprep.subr.mxu0 0.0
        %2443 = vmatpush2.xpose.msra.mxu0 0.0
        %2444 = vmatprep.subr.mxu0 0.0
        %2445 = vmatpush2.xpose.msra.mxu0 0.0
        %2446 = vmatprep.subr.mxu0 0.0
        %2447 = vmatpush2.xpose.msra.mxu0 0.0
        %2448 = vmatprep.subr.mxu0 0.0
        %2449 = vmatpush2.xpose.msra.mxu0 0.0
        %2450 = vmatprep.subr.mxu0 0.0
        %2451 = vmatpush2.xpose.msra.mxu0 0.0
        %2452 = vmatprep.subr.mxu0 0.0
        %2453 = vmatpush2.xpose.msra.mxu0 0.0
        %2454 = vmatprep.subr.mxu0 0.0
        %2455 = vmatpush2.xpose.msra.mxu0 0.0
        %2456 = vmatprep.subr.mxu0 0.0
        %2457 = vmatpush2.xpose.msra.mxu0 0.0
        %2458 = vmatprep.subr.mxu0 0.0
        %2459 = vmatpush2.xpose.msra.mxu0 0.0
        %2460 = vmatprep.mubr.f32.mxu0 0.0
        %2461 = vmatmul.mubr.f32.gmra.mxu0 %v2392
        %v2462 = vpop.f32.mrf.mxu0
        %v2463 = vadd.f32 0.0, %v2462
        %v2464 = vpop.f32.mrf.mxu0
        %2465 = vdwg.mxu0
        %v2466 = vsel %vm840, %v2229, -inf
        %2467 = vmax.xlane.f32.xlu0 %v2466
        %v2468 = vpop.xlane.xlu0 %2467
        %v2469 = vsel %vm840, %v2307, -inf
        %2470 = vmax.xlane.f32.xlu0 %v2469
        %v2471 = vpop.xlane.xlu0 %2470
        %v2472 = vsel %vm840, %v2385, -inf
        %2473 = vmax.xlane.f32.xlu0 %v2472
        %v2474 = vpop.xlane.xlu0 %2473
        %v2475 = vsel %vm840, %v2463, -inf
        %2476 = vmax.xlane.f32.xlu0 %v2475
        %v2477 = vpop.xlane.xlu0 %2476
        %v2478 = vsub.f32 %v2229, %v2468
        %v2479 = vsub.f32 %v2307, %v2471
        %v2480 = vsub.f32 %v2385, %v2474
        %v2481 = vsub.f32 %v2463, %v2477
        %v2482 = vmul.f32 %v2478, 1.442695
        %v2483 = vpow.pop %v2482
        %v2484 = vmul.f32 %v2479, 1.442695
        %v2485 = vpow.pop %v2484
        %v2486 = vmul.f32 %v2480, 1.442695
        %v2487 = vpow.pop %v2486
        %v2488 = vmul.f32 %v2481, 1.442695
        %v2489 = vpow.pop %v2488
        %v2490 = vsel %vm840, %v2483, 0.0
        %2491 = vadd.xlane.f32.xlu0 %v2490
        %v2492 = vpop.xlane.xlu0 %2491
        %v2493 = vsel %vm840, %v2485, 0.0
        %2494 = vadd.xlane.f32.xlu0 %v2493
        %v2495 = vpop.xlane.xlu0 %2494
        %v2496 = vsel %vm840, %v2487, 0.0
        %2497 = vadd.xlane.f32.xlu0 %v2496
        %v2498 = vpop.xlane.xlu0 %2497
        %v2499 = vsel %vm840, %v2489, 0.0
        %2500 = vadd.xlane.f32.xlu0 %v2499
        %v2501 = vpop.xlane.xlu0 %2500
        %v2502 = vrcp.pop %v2492
        %v2503 = vmul.f32 %v2483, %v2502
        %v2504 = vrcp.pop %v2495
        %v2505 = vmul.f32 %v2485, %v2504
        %v2506 = vrcp.pop %v2498
        %v2507 = vmul.f32 %v2487, %v2506
        %v2508 = vrcp.pop %v2501
        %v2509 = vmul.f32 %v2489, %v2508
        %2510 = vrot.lane.b32.xlu0 %v819, 48
        %v2511 = vpop.permute.xlu0 %2510
        %v2514 = vsel %vm840, %v2503, 0
        %2516 = vmatprep.subr.mxu0 0.0
        %2517 = vmatpush1.msra.mxu0 0.0
        %2518 = vmatprep.subr.mxu0 0.0
        %2519 = vmatpush1.msra.mxu0 0.0
        %2520 = vmatprep.subr.mxu0 0.0
        %2521 = vmatpush1.msra.mxu0 0.0
        %2522 = vmatprep.subr.mxu0 0.0
        %2523 = vmatpush1.msra.mxu0 0.0
        %2524 = vmatprep.subr.mxu0 0.0
        %2525 = vmatpush1.msra.mxu0 0.0
        %2526 = vmatprep.subr.mxu0 0.0
        %2527 = vmatpush1.msra.mxu0 0.0
        %2528 = vmatprep.subr.mxu0 0.0
        %2529 = vmatpush1.msra.mxu0 0.0
        %2530 = vmatprep.subr.mxu0 0.0
        %2531 = vmatpush1.msra.mxu0 0.0
        %2532 = vmatprep.subr.mxu0 0.0
        %2533 = vmatpush1.msra.mxu0 0.0
        %2534 = vmatprep.subr.mxu0 0.0
        %2535 = vmatpush1.msra.mxu0 0.0
        %2536 = vmatprep.subr.mxu0 0.0
        %2537 = vmatpush1.msra.mxu0 0.0
        %2538 = vmatprep.subr.mxu0 0.0
        %2539 = vmatpush1.msra.mxu0 0.0
        %2540 = vmatprep.subr.mxu0 0.0
        %2541 = vmatpush1.msra.mxu0 0.0
        %2542 = vmatprep.subr.mxu0 0.0
        %2543 = vmatpush1.msra.mxu0 0.0
        %2544 = vmatprep.subr.mxu0 0.0
        %2545 = vmatpush1.msra.mxu0 0.0
        %2546 = vmatprep.subr.mxu0 0.0
        %2547 = vmatpush1.msra.mxu0 %v2511
        %2548 = vmatprep.subr.mxu0 0.0
        %2549 = vmatpush2.msra.mxu0 0.0
        %2550 = vmatprep.subr.mxu0 0.0
        %2551 = vmatpush2.msra.mxu0 0.0
        %2552 = vmatprep.subr.mxu0 0.0
        %2553 = vmatpush2.msra.mxu0 0.0
        %2554 = vmatprep.subr.mxu0 0.0
        %2555 = vmatpush2.msra.mxu0 0.0
        %2556 = vmatprep.subr.mxu0 0.0
        %2557 = vmatpush2.msra.mxu0 0.0
        %2558 = vmatprep.subr.mxu0 0.0
        %2559 = vmatpush2.msra.mxu0 0.0
        %2560 = vmatprep.subr.mxu0 0.0
        %2561 = vmatpush2.msra.mxu0 0.0
        %2562 = vmatprep.subr.mxu0 0.0
        %2563 = vmatpush2.msra.mxu0 0.0
        %2564 = vmatprep.subr.mxu0 0.0
        %2565 = vmatpush2.msra.mxu0 0.0
        %2566 = vmatprep.subr.mxu0 0.0
        %2567 = vmatpush2.msra.mxu0 0.0
        %2568 = vmatprep.subr.mxu0 0.0
        %2569 = vmatpush2.msra.mxu0 0.0
        %2570 = vmatprep.subr.mxu0 0.0
        %2571 = vmatpush2.msra.mxu0 0.0
        %2572 = vmatprep.subr.mxu0 0.0
        %2573 = vmatpush2.msra.mxu0 0.0
        %2574 = vmatprep.subr.mxu0 0.0
        %2575 = vmatpush2.msra.mxu0 0.0
        %2576 = vmatprep.subr.mxu0 0.0
        %2577 = vmatpush2.msra.mxu0 0.0
        %2578 = vmatprep.subr.mxu0 0.0
        %2579 = vmatpush2.msra.mxu0 0.0
        %2580 = vmatprep.mubr.f32.mxu0 0.0
        %2581 = vmatmul.mubr.f32.gmra.mxu0 %v2514
        %v2582 = vpop.f32.mrf.mxu0
        %v2583 = vadd.f32 0.0, %v2582
        %v2584 = vpop.f32.mrf.mxu0
        %2585 = vdwg.mxu0
        %2586 = vrot.lane.b32.xlu0 %v824, 48
        %v2587 = vpop.permute.xlu0 %2586
        %v2590 = vsel %vm840, %v2505, 0
        %2592 = vmatprep.subr.mxu0 0.0
        %2593 = vmatpush1.msra.mxu0 0.0
        %2594 = vmatprep.subr.mxu0 0.0
        %2595 = vmatpush1.msra.mxu0 0.0
        %2596 = vmatprep.subr.mxu0 0.0
        %2597 = vmatpush1.msra.mxu0 0.0
        %2598 = vmatprep.subr.mxu0 0.0
        %2599 = vmatpush1.msra.mxu0 0.0
        %2600 = vmatprep.subr.mxu0 0.0
        %2601 = vmatpush1.msra.mxu0 0.0
        %2602 = vmatprep.subr.mxu0 0.0
        %2603 = vmatpush1.msra.mxu0 0.0
        %2604 = vmatprep.subr.mxu0 0.0
        %2605 = vmatpush1.msra.mxu0 0.0
        %2606 = vmatprep.subr.mxu0 0.0
        %2607 = vmatpush1.msra.mxu0 0.0
        %2608 = vmatprep.subr.mxu0 0.0
        %2609 = vmatpush1.msra.mxu0 0.0
        %2610 = vmatprep.subr.mxu0 0.0
        %2611 = vmatpush1.msra.mxu0 0.0
        %2612 = vmatprep.subr.mxu0 0.0
        %2613 = vmatpush1.msra.mxu0 0.0
        %2614 = vmatprep.subr.mxu0 0.0
        %2615 = vmatpush1.msra.mxu0 0.0
        %2616 = vmatprep.subr.mxu0 0.0
        %2617 = vmatpush1.msra.mxu0 0.0
        %2618 = vmatprep.subr.mxu0 0.0
        %2619 = vmatpush1.msra.mxu0 0.0
        %2620 = vmatprep.subr.mxu0 0.0
        %2621 = vmatpush1.msra.mxu0 0.0
        %2622 = vmatprep.subr.mxu0 0.0
        %2623 = vmatpush1.msra.mxu0 %v2587
        %2624 = vmatprep.subr.mxu0 0.0
        %2625 = vmatpush2.msra.mxu0 0.0
        %2626 = vmatprep.subr.mxu0 0.0
        %2627 = vmatpush2.msra.mxu0 0.0
        %2628 = vmatprep.subr.mxu0 0.0
        %2629 = vmatpush2.msra.mxu0 0.0
        %2630 = vmatprep.subr.mxu0 0.0
        %2631 = vmatpush2.msra.mxu0 0.0
        %2632 = vmatprep.subr.mxu0 0.0
        %2633 = vmatpush2.msra.mxu0 0.0
        %2634 = vmatprep.subr.mxu0 0.0
        %2635 = vmatpush2.msra.mxu0 0.0
        %2636 = vmatprep.subr.mxu0 0.0
        %2637 = vmatpush2.msra.mxu0 0.0
        %2638 = vmatprep.subr.mxu0 0.0
        %2639 = vmatpush2.msra.mxu0 0.0
        %2640 = vmatprep.subr.mxu0 0.0
        %2641 = vmatpush2.msra.mxu0 0.0
        %2642 = vmatprep.subr.mxu0 0.0
        %2643 = vmatpush2.msra.mxu0 0.0
        %2644 = vmatprep.subr.mxu0 0.0
        %2645 = vmatpush2.msra.mxu0 0.0
        %2646 = vmatprep.subr.mxu0 0.0
        %2647 = vmatpush2.msra.mxu0 0.0
        %2648 = vmatprep.subr.mxu0 0.0
        %2649 = vmatpush2.msra.mxu0 0.0
        %2650 = vmatprep.subr.mxu0 0.0
        %2651 = vmatpush2.msra.mxu0 0.0
        %2652 = vmatprep.subr.mxu0 0.0
        %2653 = vmatpush2.msra.mxu0 0.0
        %2654 = vmatprep.subr.mxu0 0.0
        %2655 = vmatpush2.msra.mxu0 0.0
        %2656 = vmatprep.mubr.f32.mxu0 0.0
        %2657 = vmatmul.mubr.f32.gmra.mxu0 %v2590
        %v2658 = vpop.f32.mrf.mxu0
        %v2659 = vadd.f32 0.0, %v2658
        %v2660 = vpop.f32.mrf.mxu0
        %2661 = vdwg.mxu0
        %2662 = vrot.lane.b32.xlu0 %v829, 48
        %v2663 = vpop.permute.xlu0 %2662
        %v2666 = vsel %vm840, %v2507, 0
        %2668 = vmatprep.subr.mxu0 0.0
        %2669 = vmatpush1.msra.mxu0 0.0
        %2670 = vmatprep.subr.mxu0 0.0
        %2671 = vmatpush1.msra.mxu0 0.0
        %2672 = vmatprep.subr.mxu0 0.0
        %2673 = vmatpush1.msra.mxu0 0.0
        %2674 = vmatprep.subr.mxu0 0.0
        %2675 = vmatpush1.msra.mxu0 0.0
        %2676 = vmatprep.subr.mxu0 0.0
        %2677 = vmatpush1.msra.mxu0 0.0
        %2678 = vmatprep.subr.mxu0 0.0
        %2679 = vmatpush1.msra.mxu0 0.0
        %2680 = vmatprep.subr.mxu0 0.0
        %2681 = vmatpush1.msra.mxu0 0.0
        %2682 = vmatprep.subr.mxu0 0.0
        %2683 = vmatpush1.msra.mxu0 0.0
        %2684 = vmatprep.subr.mxu0 0.0
        %2685 = vmatpush1.msra.mxu0 0.0
        %2686 = vmatprep.subr.mxu0 0.0
        %2687 = vmatpush1.msra.mxu0 0.0
        %2688 = vmatprep.subr.mxu0 0.0
        %2689 = vmatpush1.msra.mxu0 0.0
        %2690 = vmatprep.subr.mxu0 0.0
        %2691 = vmatpush1.msra.mxu0 0.0
        %2692 = vmatprep.subr.mxu0 0.0
        %2693 = vmatpush1.msra.mxu0 0.0
        %2694 = vmatprep.subr.mxu0 0.0
        %2695 = vmatpush1.msra.mxu0 0.0
        %2696 = vmatprep.subr.mxu0 0.0
        %2697 = vmatpush1.msra.mxu0 0.0
        %2698 = vmatprep.subr.mxu0 0.0
        %2699 = vmatpush1.msra.mxu0 %v2663
        %2700 = vmatprep.subr.mxu0 0.0
        %2701 = vmatpush2.msra.mxu0 0.0
        %2702 = vmatprep.subr.mxu0 0.0
        %2703 = vmatpush2.msra.mxu0 0.0
        %2704 = vmatprep.subr.mxu0 0.0
        %2705 = vmatpush2.msra.mxu0 0.0
        %2706 = vmatprep.subr.mxu0 0.0
        %2707 = vmatpush2.msra.mxu0 0.0
        %2708 = vmatprep.subr.mxu0 0.0
        %2709 = vmatpush2.msra.mxu0 0.0
        %2710 = vmatprep.subr.mxu0 0.0
        %2711 = vmatpush2.msra.mxu0 0.0
        %2712 = vmatprep.subr.mxu0 0.0
        %2713 = vmatpush2.msra.mxu0 0.0
        %2714 = vmatprep.subr.mxu0 0.0
        %2715 = vmatpush2.msra.mxu0 0.0
        %2716 = vmatprep.subr.mxu0 0.0
        %2717 = vmatpush2.msra.mxu0 0.0
        %2718 = vmatprep.subr.mxu0 0.0
        %2719 = vmatpush2.msra.mxu0 0.0
        %2720 = vmatprep.subr.mxu0 0.0
        %2721 = vmatpush2.msra.mxu0 0.0
        %2722 = vmatprep.subr.mxu0 0.0
        %2723 = vmatpush2.msra.mxu0 0.0
        %2724 = vmatprep.subr.mxu0 0.0
        %2725 = vmatpush2.msra.mxu0 0.0
        %2726 = vmatprep.subr.mxu0 0.0
        %2727 = vmatpush2.msra.mxu0 0.0
        %2728 = vmatprep.subr.mxu0 0.0
        %2729 = vmatpush2.msra.mxu0 0.0
        %2730 = vmatprep.subr.mxu0 0.0
        %2731 = vmatpush2.msra.mxu0 0.0
        %2732 = vmatprep.mubr.f32.mxu0 0.0
        %2733 = vmatmul.mubr.f32.gmra.mxu0 %v2666
        %v2734 = vpop.f32.mrf.mxu0
        %v2735 = vadd.f32 0.0, %v2734
        %v2736 = vpop.f32.mrf.mxu0
        %2737 = vdwg.mxu0
        %2738 = vrot.lane.b32.xlu0 %v834, 48
        %v2739 = vpop.permute.xlu0 %2738
        %v2742 = vsel %vm840, %v2509, 0
        %2744 = vmatprep.subr.mxu0 0.0
        %2745 = vmatpush1.msra.mxu0 0.0
        %2746 = vmatprep.subr.mxu0 0.0
        %2747 = vmatpush1.msra.mxu0 0.0
        %2748 = vmatprep.subr.mxu0 0.0
        %2749 = vmatpush1.msra.mxu0 0.0
        %2750 = vmatprep.subr.mxu0 0.0
        %2751 = vmatpush1.msra.mxu0 0.0
        %2752 = vmatprep.subr.mxu0 0.0
        %2753 = vmatpush1.msra.mxu0 0.0
        %2754 = vmatprep.subr.mxu0 0.0
        %2755 = vmatpush1.msra.mxu0 0.0
        %2756 = vmatprep.subr.mxu0 0.0
        %2757 = vmatpush1.msra.mxu0 0.0
        %2758 = vmatprep.subr.mxu0 0.0
        %2759 = vmatpush1.msra.mxu0 0.0
        %2760 = vmatprep.subr.mxu0 0.0
        %2761 = vmatpush1.msra.mxu0 0.0
        %2762 = vmatprep.subr.mxu0 0.0
        %2763 = vmatpush1.msra.mxu0 0.0
        %2764 = vmatprep.subr.mxu0 0.0
        %2765 = vmatpush1.msra.mxu0 0.0
        %2766 = vmatprep.subr.mxu0 0.0
        %2767 = vmatpush1.msra.mxu0 0.0
        %2768 = vmatprep.subr.mxu0 0.0
        %2769 = vmatpush1.msra.mxu0 0.0
        %2770 = vmatprep.subr.mxu0 0.0
        %2771 = vmatpush1.msra.mxu0 0.0
        %2772 = vmatprep.subr.mxu0 0.0
        %2773 = vmatpush1.msra.mxu0 0.0
        %2774 = vmatprep.subr.mxu0 0.0
        %2775 = vmatpush1.msra.mxu0 %v2739
        %2776 = vmatprep.subr.mxu0 0.0
        %2777 = vmatpush2.msra.mxu0 0.0
        %2778 = vmatprep.subr.mxu0 0.0
        %2779 = vmatpush2.msra.mxu0 0.0
        %2780 = vmatprep.subr.mxu0 0.0
        %2781 = vmatpush2.msra.mxu0 0.0
        %2782 = vmatprep.subr.mxu0 0.0
        %2783 = vmatpush2.msra.mxu0 0.0
        %2784 = vmatprep.subr.mxu0 0.0
        %2785 = vmatpush2.msra.mxu0 0.0
        %2786 = vmatprep.subr.mxu0 0.0
        %2787 = vmatpush2.msra.mxu0 0.0
        %2788 = vmatprep.subr.mxu0 0.0
        %2789 = vmatpush2.msra.mxu0 0.0
        %2790 = vmatprep.subr.mxu0 0.0
        %2791 = vmatpush2.msra.mxu0 0.0
        %2792 = vmatprep.subr.mxu0 0.0
        %2793 = vmatpush2.msra.mxu0 0.0
        %2794 = vmatprep.subr.mxu0 0.0
        %2795 = vmatpush2.msra.mxu0 0.0
        %2796 = vmatprep.subr.mxu0 0.0
        %2797 = vmatpush2.msra.mxu0 0.0
        %2798 = vmatprep.subr.mxu0 0.0
        %2799 = vmatpush2.msra.mxu0 0.0
        %2800 = vmatprep.subr.mxu0 0.0
        %2801 = vmatpush2.msra.mxu0 0.0
        %2802 = vmatprep.subr.mxu0 0.0
        %2803 = vmatpush2.msra.mxu0 0.0
        %2804 = vmatprep.subr.mxu0 0.0
        %2805 = vmatpush2.msra.mxu0 0.0
        %2806 = vmatprep.subr.mxu0 0.0
        %2807 = vmatpush2.msra.mxu0 0.0
        %2808 = vmatprep.mubr.f32.mxu0 0.0
        %2809 = vmatmul.mubr.f32.gmra.mxu0 %v2742
        %v2810 = vpop.f32.mrf.mxu0
        %v2811 = vadd.f32 0.0, %v2810
        %v2812 = vpop.f32.mrf.mxu0
        %2813 = vdwg.mxu0
        %2814 = vrot.lane.b32.xlu0 %v819, 104
        %v2815 = vpop.permute.xlu0 %2814
        %2816 = vrot.lane.b32.xlu0 %v819, 72
        %v2817 = vpop.permute.xlu0 %2816
        %v2818 = vsel %vm840, %v2815, 0
        %v2820 = vsel %vm840, %v2817, 0
        %2822 = vmatprep.subr.mxu0 0.0
        %2823 = vmatpush1.xpose.msra.mxu0 0.0
        %2824 = vmatprep.subr.mxu0 0.0
        %2825 = vmatpush1.xpose.msra.mxu0 0.0
        %2826 = vmatprep.subr.mxu0 0.0
        %2827 = vmatpush1.xpose.msra.mxu0 0.0
        %2828 = vmatprep.subr.mxu0 0.0
        %2829 = vmatpush1.xpose.msra.mxu0 0.0
        %2830 = vmatprep.subr.mxu0 0.0
        %2831 = vmatpush1.xpose.msra.mxu0 0.0
        %2832 = vmatprep.subr.mxu0 0.0
        %2833 = vmatpush1.xpose.msra.mxu0 0.0
        %2834 = vmatprep.subr.mxu0 0.0
        %2835 = vmatpush1.xpose.msra.mxu0 0.0
        %2836 = vmatprep.subr.mxu0 0.0
        %2837 = vmatpush1.xpose.msra.mxu0 0.0
        %2838 = vmatprep.subr.mxu0 0.0
        %2839 = vmatpush1.xpose.msra.mxu0 0.0
        %2840 = vmatprep.subr.mxu0 0.0
        %2841 = vmatpush1.xpose.msra.mxu0 0.0
        %2842 = vmatprep.subr.mxu0 0.0
        %2843 = vmatpush1.xpose.msra.mxu0 0.0
        %2844 = vmatprep.subr.mxu0 0.0
        %2845 = vmatpush1.xpose.msra.mxu0 0.0
        %2846 = vmatprep.subr.mxu0 0.0
        %2847 = vmatpush1.xpose.msra.mxu0 0.0
        %2848 = vmatprep.subr.mxu0 0.0
        %2849 = vmatpush1.xpose.msra.mxu0 0.0
        %2850 = vmatprep.subr.mxu0 0.0
        %2851 = vmatpush1.xpose.msra.mxu0 0.0
        %2852 = vmatprep.subr.mxu0 0.0
        %2853 = vmatpush1.xpose.msra.mxu0 %v2820
        %2854 = vmatprep.subr.mxu0 0.0
        %2855 = vmatpush2.xpose.msra.mxu0 0.0
        %2856 = vmatprep.subr.mxu0 0.0
        %2857 = vmatpush2.xpose.msra.mxu0 0.0
        %2858 = vmatprep.subr.mxu0 0.0
        %2859 = vmatpush2.xpose.msra.mxu0 0.0
        %2860 = vmatprep.subr.mxu0 0.0
        %2861 = vmatpush2.xpose.msra.mxu0 0.0
        %2862 = vmatprep.subr.mxu0 0.0
        %2863 = vmatpush2.xpose.msra.mxu0 0.0
        %2864 = vmatprep.subr.mxu0 0.0
        %2865 = vmatpush2.xpose.msra.mxu0 0.0
        %2866 = vmatprep.subr.mxu0 0.0
        %2867 = vmatpush2.xpose.msra.mxu0 0.0
        %2868 = vmatprep.subr.mxu0 0.0
        %2869 = vmatpush2.xpose.msra.mxu0 0.0
        %2870 = vmatprep.subr.mxu0 0.0
        %2871 = vmatpush2.xpose.msra.mxu0 0.0
        %2872 = vmatprep.subr.mxu0 0.0
        %2873 = vmatpush2.xpose.msra.mxu0 0.0
        %2874 = vmatprep.subr.mxu0 0.0
        %2875 = vmatpush2.xpose.msra.mxu0 0.0
        %2876 = vmatprep.subr.mxu0 0.0
        %2877 = vmatpush2.xpose.msra.mxu0 0.0
        %2878 = vmatprep.subr.mxu0 0.0
        %2879 = vmatpush2.xpose.msra.mxu0 0.0
        %2880 = vmatprep.subr.mxu0 0.0
        %2881 = vmatpush2.xpose.msra.mxu0 0.0
        %2882 = vmatprep.subr.mxu0 0.0
        %2883 = vmatpush2.xpose.msra.mxu0 0.0
        %2884 = vmatprep.subr.mxu0 0.0
        %2885 = vmatpush2.xpose.msra.mxu0 0.0
        %2886 = vmatprep.mubr.f32.mxu0 0.0
        %2887 = vmatmul.mubr.f32.gmra.mxu0 %v2818
        %v2888 = vpop.f32.mrf.mxu0
        %v2889 = vadd.f32 0.0, %v2888
        %v2890 = vpop.f32.mrf.mxu0
        %2891 = vdwg.mxu0
        %2892 = vrot.lane.b32.xlu0 %v824, 104
        %v2893 = vpop.permute.xlu0 %2892
        %2894 = vrot.lane.b32.xlu0 %v824, 72
        %v2895 = vpop.permute.xlu0 %2894
        %v2896 = vsel %vm840, %v2893, 0
        %v2898 = vsel %vm840, %v2895, 0
        %2900 = vmatprep.subr.mxu0 0.0
        %2901 = vmatpush1.xpose.msra.mxu0 0.0
        %2902 = vmatprep.subr.mxu0 0.0
        %2903 = vmatpush1.xpose.msra.mxu0 0.0
        %2904 = vmatprep.subr.mxu0 0.0
        %2905 = vmatpush1.xpose.msra.mxu0 0.0
        %2906 = vmatprep.subr.mxu0 0.0
        %2907 = vmatpush1.xpose.msra.mxu0 0.0
        %2908 = vmatprep.subr.mxu0 0.0
        %2909 = vmatpush1.xpose.msra.mxu0 0.0
        %2910 = vmatprep.subr.mxu0 0.0
        %2911 = vmatpush1.xpose.msra.mxu0 0.0
        %2912 = vmatprep.subr.mxu0 0.0
        %2913 = vmatpush1.xpose.msra.mxu0 0.0
        %2914 = vmatprep.subr.mxu0 0.0
        %2915 = vmatpush1.xpose.msra.mxu0 0.0
        %2916 = vmatprep.subr.mxu0 0.0
        %2917 = vmatpush1.xpose.msra.mxu0 0.0
        %2918 = vmatprep.subr.mxu0 0.0
        %2919 = vmatpush1.xpose.msra.mxu0 0.0
        %2920 = vmatprep.subr.mxu0 0.0
        %2921 = vmatpush1.xpose.msra.mxu0 0.0
        %2922 = vmatprep.subr.mxu0 0.0
        %2923 = vmatpush1.xpose.msra.mxu0 0.0
        %2924 = vmatprep.subr.mxu0 0.0
        %2925 = vmatpush1.xpose.msra.mxu0 0.0
        %2926 = vmatprep.subr.mxu0 0.0
        %2927 = vmatpush1.xpose.msra.mxu0 0.0
        %2928 = vmatprep.subr.mxu0 0.0
        %2929 = vmatpush1.xpose.msra.mxu0 0.0
        %2930 = vmatprep.subr.mxu0 0.0
        %2931 = vmatpush1.xpose.msra.mxu0 %v2898
        %2932 = vmatprep.subr.mxu0 0.0
        %2933 = vmatpush2.xpose.msra.mxu0 0.0
        %2934 = vmatprep.subr.mxu0 0.0
        %2935 = vmatpush2.xpose.msra.mxu0 0.0
        %2936 = vmatprep.subr.mxu0 0.0
        %2937 = vmatpush2.xpose.msra.mxu0 0.0
        %2938 = vmatprep.subr.mxu0 0.0
        %2939 = vmatpush2.xpose.msra.mxu0 0.0
        %2940 = vmatprep.subr.mxu0 0.0
        %2941 = vmatpush2.xpose.msra.mxu0 0.0
        %2942 = vmatprep.subr.mxu0 0.0
        %2943 = vmatpush2.xpose.msra.mxu0 0.0
        %2944 = vmatprep.subr.mxu0 0.0
        %2945 = vmatpush2.xpose.msra.mxu0 0.0
        %2946 = vmatprep.subr.mxu0 0.0
        %2947 = vmatpush2.xpose.msra.mxu0 0.0
        %2948 = vmatprep.subr.mxu0 0.0
        %2949 = vmatpush2.xpose.msra.mxu0 0.0
        %2950 = vmatprep.subr.mxu0 0.0
        %2951 = vmatpush2.xpose.msra.mxu0 0.0
        %2952 = vmatprep.subr.mxu0 0.0
        %2953 = vmatpush2.xpose.msra.mxu0 0.0
        %2954 = vmatprep.subr.mxu0 0.0
        %2955 = vmatpush2.xpose.msra.mxu0 0.0
        %2956 = vmatprep.subr.mxu0 0.0
        %2957 = vmatpush2.xpose.msra.mxu0 0.0
        %2958 = vmatprep.subr.mxu0 0.0
        %2959 = vmatpush2.xpose.msra.mxu0 0.0
        %2960 = vmatprep.subr.mxu0 0.0
        %2961 = vmatpush2.xpose.msra.mxu0 0.0
        %2962 = vmatprep.subr.mxu0 0.0
        %2963 = vmatpush2.xpose.msra.mxu0 0.0
        %2964 = vmatprep.mubr.f32.mxu0 0.0
        %2965 = vmatmul.mubr.f32.gmra.mxu0 %v2896
        %v2966 = vpop.f32.mrf.mxu0
        %v2967 = vadd.f32 0.0, %v2966
        %v2968 = vpop.f32.mrf.mxu0
        %2969 = vdwg.mxu0
        %2970 = vrot.lane.b32.xlu0 %v829, 104
        %v2971 = vpop.permute.xlu0 %2970
        %2972 = vrot.lane.b32.xlu0 %v829, 72
        %v2973 = vpop.permute.xlu0 %2972
        %v2974 = vsel %vm840, %v2971, 0
        %v2976 = vsel %vm840, %v2973, 0
        %2978 = vmatprep.subr.mxu0 0.0
        %2979 = vmatpush1.xpose.msra.mxu0 0.0
        %2980 = vmatprep.subr.mxu0 0.0
        %2981 = vmatpush1.xpose.msra.mxu0 0.0
        %2982 = vmatprep.subr.mxu0 0.0
        %2983 = vmatpush1.xpose.msra.mxu0 0.0
        %2984 = vmatprep.subr.mxu0 0.0
        %2985 = vmatpush1.xpose.msra.mxu0 0.0
        %2986 = vmatprep.subr.mxu0 0.0
        %2987 = vmatpush1.xpose.msra.mxu0 0.0
        %2988 = vmatprep.subr.mxu0 0.0
        %2989 = vmatpush1.xpose.msra.mxu0 0.0
        %2990 = vmatprep.subr.mxu0 0.0
        %2991 = vmatpush1.xpose.msra.mxu0 0.0
        %2992 = vmatprep.subr.mxu0 0.0
        %2993 = vmatpush1.xpose.msra.mxu0 0.0
        %2994 = vmatprep.subr.mxu0 0.0
        %2995 = vmatpush1.xpose.msra.mxu0 0.0
        %2996 = vmatprep.subr.mxu0 0.0
        %2997 = vmatpush1.xpose.msra.mxu0 0.0
        %2998 = vmatprep.subr.mxu0 0.0
        %2999 = vmatpush1.xpose.msra.mxu0 0.0
        %3000 = vmatprep.subr.mxu0 0.0
        %3001 = vmatpush1.xpose.msra.mxu0 0.0
        %3002 = vmatprep.subr.mxu0 0.0
        %3003 = vmatpush1.xpose.msra.mxu0 0.0
        %3004 = vmatprep.subr.mxu0 0.0
        %3005 = vmatpush1.xpose.msra.mxu0 0.0
        %3006 = vmatprep.subr.mxu0 0.0
        %3007 = vmatpush1.xpose.msra.mxu0 0.0
        %3008 = vmatprep.subr.mxu0 0.0
        %3009 = vmatpush1.xpose.msra.mxu0 %v2976
        %3010 = vmatprep.subr.mxu0 0.0
        %3011 = vmatpush2.xpose.msra.mxu0 0.0
        %3012 = vmatprep.subr.mxu0 0.0
        %3013 = vmatpush2.xpose.msra.mxu0 0.0
        %3014 = vmatprep.subr.mxu0 0.0
        %3015 = vmatpush2.xpose.msra.mxu0 0.0
        %3016 = vmatprep.subr.mxu0 0.0
        %3017 = vmatpush2.xpose.msra.mxu0 0.0
        %3018 = vmatprep.subr.mxu0 0.0
        %3019 = vmatpush2.xpose.msra.mxu0 0.0
        %3020 = vmatprep.subr.mxu0 0.0
        %3021 = vmatpush2.xpose.msra.mxu0 0.0
        %3022 = vmatprep.subr.mxu0 0.0
        %3023 = vmatpush2.xpose.msra.mxu0 0.0
        %3024 = vmatprep.subr.mxu0 0.0
        %3025 = vmatpush2.xpose.msra.mxu0 0.0
        %3026 = vmatprep.subr.mxu0 0.0
        %3027 = vmatpush2.xpose.msra.mxu0 0.0
        %3028 = vmatprep.subr.mxu0 0.0
        %3029 = vmatpush2.xpose.msra.mxu0 0.0
        %3030 = vmatprep.subr.mxu0 0.0
        %3031 = vmatpush2.xpose.msra.mxu0 0.0
        %3032 = vmatprep.subr.mxu0 0.0
        %3033 = vmatpush2.xpose.msra.mxu0 0.0
        %3034 = vmatprep.subr.mxu0 0.0
        %3035 = vmatpush2.xpose.msra.mxu0 0.0
        %3036 = vmatprep.subr.mxu0 0.0
        %3037 = vmatpush2.xpose.msra.mxu0 0.0
        %3038 = vmatprep.subr.mxu0 0.0
        %3039 = vmatpush2.xpose.msra.mxu0 0.0
        %3040 = vmatprep.subr.mxu0 0.0
        %3041 = vmatpush2.xpose.msra.mxu0 0.0
        %3042 = vmatprep.mubr.f32.mxu0 0.0
        %3043 = vmatmul.mubr.f32.gmra.mxu0 %v2974
        %v3044 = vpop.f32.mrf.mxu0
        %v3045 = vadd.f32 0.0, %v3044
        %v3046 = vpop.f32.mrf.mxu0
        %3047 = vdwg.mxu0
        %3048 = vrot.lane.b32.xlu0 %v834, 104
        %v3049 = vpop.permute.xlu0 %3048
        %3050 = vrot.lane.b32.xlu0 %v834, 72
        %v3051 = vpop.permute.xlu0 %3050
        %v3052 = vsel %vm840, %v3049, 0
        %v3054 = vsel %vm840, %v3051, 0
        %3056 = vmatprep.subr.mxu0 0.0
        %3057 = vmatpush1.xpose.msra.mxu0 0.0
        %3058 = vmatprep.subr.mxu0 0.0
        %3059 = vmatpush1.xpose.msra.mxu0 0.0
        %3060 = vmatprep.subr.mxu0 0.0
        %3061 = vmatpush1.xpose.msra.mxu0 0.0
        %3062 = vmatprep.subr.mxu0 0.0
        %3063 = vmatpush1.xpose.msra.mxu0 0.0
        %3064 = vmatprep.subr.mxu0 0.0
        %3065 = vmatpush1.xpose.msra.mxu0 0.0
        %3066 = vmatprep.subr.mxu0 0.0
        %3067 = vmatpush1.xpose.msra.mxu0 0.0
        %3068 = vmatprep.subr.mxu0 0.0
        %3069 = vmatpush1.xpose.msra.mxu0 0.0
        %3070 = vmatprep.subr.mxu0 0.0
        %3071 = vmatpush1.xpose.msra.mxu0 0.0
        %3072 = vmatprep.subr.mxu0 0.0
        %3073 = vmatpush1.xpose.msra.mxu0 0.0
        %3074 = vmatprep.subr.mxu0 0.0
        %3075 = vmatpush1.xpose.msra.mxu0 0.0
        %3076 = vmatprep.subr.mxu0 0.0
        %3077 = vmatpush1.xpose.msra.mxu0 0.0
        %3078 = vmatprep.subr.mxu0 0.0
        %3079 = vmatpush1.xpose.msra.mxu0 0.0
        %3080 = vmatprep.subr.mxu0 0.0
        %3081 = vmatpush1.xpose.msra.mxu0 0.0
        %3082 = vmatprep.subr.mxu0 0.0
        %3083 = vmatpush1.xpose.msra.mxu0 0.0
        %3084 = vmatprep.subr.mxu0 0.0
        %3085 = vmatpush1.xpose.msra.mxu0 0.0
        %3086 = vmatprep.subr.mxu0 0.0
        %3087 = vmatpush1.xpose.msra.mxu0 %v3054
        %3088 = vmatprep.subr.mxu0 0.0
        %3089 = vmatpush2.xpose.msra.mxu0 0.0
        %3090 = vmatprep.subr.mxu0 0.0
        %3091 = vmatpush2.xpose.msra.mxu0 0.0
        %3092 = vmatprep.subr.mxu0 0.0
        %3093 = vmatpush2.xpose.msra.mxu0 0.0
        %3094 = vmatprep.subr.mxu0 0.0
        %3095 = vmatpush2.xpose.msra.mxu0 0.0
        %3096 = vmatprep.subr.mxu0 0.0
        %3097 = vmatpush2.xpose.msra.mxu0 0.0
        %3098 = vmatprep.subr.mxu0 0.0
        %3099 = vmatpush2.xpose.msra.mxu0 0.0
        %3100 = vmatprep.subr.mxu0 0.0
        %3101 = vmatpush2.xpose.msra.mxu0 0.0
        %3102 = vmatprep.subr.mxu0 0.0
        %3103 = vmatpush2.xpose.msra.mxu0 0.0
        %3104 = vmatprep.subr.mxu0 0.0
        %3105 = vmatpush2.xpose.msra.mxu0 0.0
        %3106 = vmatprep.subr.mxu0 0.0
        %3107 = vmatpush2.xpose.msra.mxu0 0.0
        %3108 = vmatprep.subr.mxu0 0.0
        %3109 = vmatpush2.xpose.msra.mxu0 0.0
        %3110 = vmatprep.subr.mxu0 0.0
        %3111 = vmatpush2.xpose.msra.mxu0 0.0
        %3112 = vmatprep.subr.mxu0 0.0
        %3113 = vmatpush2.xpose.msra.mxu0 0.0
        %3114 = vmatprep.subr.mxu0 0.0
        %3115 = vmatpush2.xpose.msra.mxu0 0.0
        %3116 = vmatprep.subr.mxu0 0.0
        %3117 = vmatpush2.xpose.msra.mxu0 0.0
        %3118 = vmatprep.subr.mxu0 0.0
        %3119 = vmatpush2.xpose.msra.mxu0 0.0
        %3120 = vmatprep.mubr.f32.mxu0 0.0
        %3121 = vmatmul.mubr.f32.gmra.mxu0 %v3052
        %v3122 = vpop.f32.mrf.mxu0
        %v3123 = vadd.f32 0.0, %v3122
        %v3124 = vpop.f32.mrf.mxu0
        %3125 = vdwg.mxu0
        %v3126 = vsel %vm840, %v2889, -inf
        %3127 = vmax.xlane.f32.xlu0 %v3126
        %v3128 = vpop.xlane.xlu0 %3127
        %v3129 = vsel %vm840, %v2967, -inf
        %3130 = vmax.xlane.f32.xlu0 %v3129
        %v3131 = vpop.xlane.xlu0 %3130
        %v3132 = vsel %vm840, %v3045, -inf
        %3133 = vmax.xlane.f32.xlu0 %v3132
        %v3134 = vpop.xlane.xlu0 %3133
        %v3135 = vsel %vm840, %v3123, -inf
        %3136 = vmax.xlane.f32.xlu0 %v3135
        %v3137 = vpop.xlane.xlu0 %3136
        %v3138 = vsub.f32 %v2889, %v3128
        %v3139 = vsub.f32 %v2967, %v3131
        %v3140 = vsub.f32 %v3045, %v3134
        %v3141 = vsub.f32 %v3123, %v3137
        %v3142 = vmul.f32 %v3138, 1.442695
        %v3143 = vpow.pop %v3142
        %v3144 = vmul.f32 %v3139, 1.442695
        %v3145 = vpow.pop %v3144
        %v3146 = vmul.f32 %v3140, 1.442695
        %v3147 = vpow.pop %v3146
        %v3148 = vmul.f32 %v3141, 1.442695
        %v3149 = vpow.pop %v3148
        %v3150 = vsel %vm840, %v3143, 0.0
        %3151 = vadd.xlane.f32.xlu0 %v3150
        %v3152 = vpop.xlane.xlu0 %3151
        %v3153 = vsel %vm840, %v3145, 0.0
        %3154 = vadd.xlane.f32.xlu0 %v3153
        %v3155 = vpop.xlane.xlu0 %3154
        %v3156 = vsel %vm840, %v3147, 0.0
        %3157 = vadd.xlane.f32.xlu0 %v3156
        %v3158 = vpop.xlane.xlu0 %3157
        %v3159 = vsel %vm840, %v3149, 0.0
        %3160 = vadd.xlane.f32.xlu0 %v3159
        %v3161 = vpop.xlane.xlu0 %3160
        %v3162 = vrcp.pop %v3152
        %v3163 = vmul.f32 %v3143, %v3162
        %v3164 = vrcp.pop %v3155
        %v3165 = vmul.f32 %v3145, %v3164
        %v3166 = vrcp.pop %v3158
        %v3167 = vmul.f32 %v3147, %v3166
        %v3168 = vrcp.pop %v3161
        %v3169 = vmul.f32 %v3149, %v3168
        %3170 = vrot.lane.b32.xlu0 %v819, 40
        %v3171 = vpop.permute.xlu0 %3170
        %v3174 = vsel %vm840, %v3163, 0
        %3176 = vmatprep.subr.mxu0 0.0
        %3177 = vmatpush1.msra.mxu0 0.0
        %3178 = vmatprep.subr.mxu0 0.0
        %3179 = vmatpush1.msra.mxu0 0.0
        %3180 = vmatprep.subr.mxu0 0.0
        %3181 = vmatpush1.msra.mxu0 0.0
        %3182 = vmatprep.subr.mxu0 0.0
        %3183 = vmatpush1.msra.mxu0 0.0
        %3184 = vmatprep.subr.mxu0 0.0
        %3185 = vmatpush1.msra.mxu0 0.0
        %3186 = vmatprep.subr.mxu0 0.0
        %3187 = vmatpush1.msra.mxu0 0.0
        %3188 = vmatprep.subr.mxu0 0.0
        %3189 = vmatpush1.msra.mxu0 0.0
        %3190 = vmatprep.subr.mxu0 0.0
        %3191 = vmatpush1.msra.mxu0 0.0
        %3192 = vmatprep.subr.mxu0 0.0
        %3193 = vmatpush1.msra.mxu0 0.0
        %3194 = vmatprep.subr.mxu0 0.0
        %3195 = vmatpush1.msra.mxu0 0.0
        %3196 = vmatprep.subr.mxu0 0.0
        %3197 = vmatpush1.msra.mxu0 0.0
        %3198 = vmatprep.subr.mxu0 0.0
        %3199 = vmatpush1.msra.mxu0 0.0
        %3200 = vmatprep.subr.mxu0 0.0
        %3201 = vmatpush1.msra.mxu0 0.0
        %3202 = vmatprep.subr.mxu0 0.0
        %3203 = vmatpush1.msra.mxu0 0.0
        %3204 = vmatprep.subr.mxu0 0.0
        %3205 = vmatpush1.msra.mxu0 0.0
        %3206 = vmatprep.subr.mxu0 0.0
        %3207 = vmatpush1.msra.mxu0 %v3171
        %3208 = vmatprep.subr.mxu0 0.0
        %3209 = vmatpush2.msra.mxu0 0.0
        %3210 = vmatprep.subr.mxu0 0.0
        %3211 = vmatpush2.msra.mxu0 0.0
        %3212 = vmatprep.subr.mxu0 0.0
        %3213 = vmatpush2.msra.mxu0 0.0
        %3214 = vmatprep.subr.mxu0 0.0
        %3215 = vmatpush2.msra.mxu0 0.0
        %3216 = vmatprep.subr.mxu0 0.0
        %3217 = vmatpush2.msra.mxu0 0.0
        %3218 = vmatprep.subr.mxu0 0.0
        %3219 = vmatpush2.msra.mxu0 0.0
        %3220 = vmatprep.subr.mxu0 0.0
        %3221 = vmatpush2.msra.mxu0 0.0
        %3222 = vmatprep.subr.mxu0 0.0
        %3223 = vmatpush2.msra.mxu0 0.0
        %3224 = vmatprep.subr.mxu0 0.0
        %3225 = vmatpush2.msra.mxu0 0.0
        %3226 = vmatprep.subr.mxu0 0.0
        %3227 = vmatpush2.msra.mxu0 0.0
        %3228 = vmatprep.subr.mxu0 0.0
        %3229 = vmatpush2.msra.mxu0 0.0
        %3230 = vmatprep.subr.mxu0 0.0
        %3231 = vmatpush2.msra.mxu0 0.0
        %3232 = vmatprep.subr.mxu0 0.0
        %3233 = vmatpush2.msra.mxu0 0.0
        %3234 = vmatprep.subr.mxu0 0.0
        %3235 = vmatpush2.msra.mxu0 0.0
        %3236 = vmatprep.subr.mxu0 0.0
        %3237 = vmatpush2.msra.mxu0 0.0
        %3238 = vmatprep.subr.mxu0 0.0
        %3239 = vmatpush2.msra.mxu0 0.0
        %3240 = vmatprep.mubr.f32.mxu0 0.0
        %3241 = vmatmul.mubr.f32.gmra.mxu0 %v3174
        %v3242 = vpop.f32.mrf.mxu0
        %v3243 = vadd.f32 0.0, %v3242
        %v3244 = vpop.f32.mrf.mxu0
        %3245 = vdwg.mxu0
        %3246 = vrot.lane.b32.xlu0 %v824, 40
        %v3247 = vpop.permute.xlu0 %3246
        %v3250 = vsel %vm840, %v3165, 0
        %3252 = vmatprep.subr.mxu0 0.0
        %3253 = vmatpush1.msra.mxu0 0.0
        %3254 = vmatprep.subr.mxu0 0.0
        %3255 = vmatpush1.msra.mxu0 0.0
        %3256 = vmatprep.subr.mxu0 0.0
        %3257 = vmatpush1.msra.mxu0 0.0
        %3258 = vmatprep.subr.mxu0 0.0
        %3259 = vmatpush1.msra.mxu0 0.0
        %3260 = vmatprep.subr.mxu0 0.0
        %3261 = vmatpush1.msra.mxu0 0.0
        %3262 = vmatprep.subr.mxu0 0.0
        %3263 = vmatpush1.msra.mxu0 0.0
        %3264 = vmatprep.subr.mxu0 0.0
        %3265 = vmatpush1.msra.mxu0 0.0
        %3266 = vmatprep.subr.mxu0 0.0
        %3267 = vmatpush1.msra.mxu0 0.0
        %3268 = vmatprep.subr.mxu0 0.0
        %3269 = vmatpush1.msra.mxu0 0.0
        %3270 = vmatprep.subr.mxu0 0.0
        %3271 = vmatpush1.msra.mxu0 0.0
        %3272 = vmatprep.subr.mxu0 0.0
        %3273 = vmatpush1.msra.mxu0 0.0
        %3274 = vmatprep.subr.mxu0 0.0
        %3275 = vmatpush1.msra.mxu0 0.0
        %3276 = vmatprep.subr.mxu0 0.0
        %3277 = vmatpush1.msra.mxu0 0.0
        %3278 = vmatprep.subr.mxu0 0.0
        %3279 = vmatpush1.msra.mxu0 0.0
        %3280 = vmatprep.subr.mxu0 0.0
        %3281 = vmatpush1.msra.mxu0 0.0
        %3282 = vmatprep.subr.mxu0 0.0
        %3283 = vmatpush1.msra.mxu0 %v3247
        %3284 = vmatprep.subr.mxu0 0.0
        %3285 = vmatpush2.msra.mxu0 0.0
        %3286 = vmatprep.subr.mxu0 0.0
        %3287 = vmatpush2.msra.mxu0 0.0
        %3288 = vmatprep.subr.mxu0 0.0
        %3289 = vmatpush2.msra.mxu0 0.0
        %3290 = vmatprep.subr.mxu0 0.0
        %3291 = vmatpush2.msra.mxu0 0.0
        %3292 = vmatprep.subr.mxu0 0.0
        %3293 = vmatpush2.msra.mxu0 0.0
        %3294 = vmatprep.subr.mxu0 0.0
        %3295 = vmatpush2.msra.mxu0 0.0
        %3296 = vmatprep.subr.mxu0 0.0
        %3297 = vmatpush2.msra.mxu0 0.0
        %3298 = vmatprep.subr.mxu0 0.0
        %3299 = vmatpush2.msra.mxu0 0.0
        %3300 = vmatprep.subr.mxu0 0.0
        %3301 = vmatpush2.msra.mxu0 0.0
        %3302 = vmatprep.subr.mxu0 0.0
        %3303 = vmatpush2.msra.mxu0 0.0
        %3304 = vmatprep.subr.mxu0 0.0
        %3305 = vmatpush2.msra.mxu0 0.0
        %3306 = vmatprep.subr.mxu0 0.0
        %3307 = vmatpush2.msra.mxu0 0.0
        %3308 = vmatprep.subr.mxu0 0.0
        %3309 = vmatpush2.msra.mxu0 0.0
        %3310 = vmatprep.subr.mxu0 0.0
        %3311 = vmatpush2.msra.mxu0 0.0
        %3312 = vmatprep.subr.mxu0 0.0
        %3313 = vmatpush2.msra.mxu0 0.0
        %3314 = vmatprep.subr.mxu0 0.0
        %3315 = vmatpush2.msra.mxu0 0.0
        %3316 = vmatprep.mubr.f32.mxu0 0.0
        %3317 = vmatmul.mubr.f32.gmra.mxu0 %v3250
        %v3318 = vpop.f32.mrf.mxu0
        %v3319 = vadd.f32 0.0, %v3318
        %v3320 = vpop.f32.mrf.mxu0
        %3321 = vdwg.mxu0
        %3322 = vrot.lane.b32.xlu0 %v829, 40
        %v3323 = vpop.permute.xlu0 %3322
        %v3326 = vsel %vm840, %v3167, 0
        %3328 = vmatprep.subr.mxu0 0.0
        %3329 = vmatpush1.msra.mxu0 0.0
        %3330 = vmatprep.subr.mxu0 0.0
        %3331 = vmatpush1.msra.mxu0 0.0
        %3332 = vmatprep.subr.mxu0 0.0
        %3333 = vmatpush1.msra.mxu0 0.0
        %3334 = vmatprep.subr.mxu0 0.0
        %3335 = vmatpush1.msra.mxu0 0.0
        %3336 = vmatprep.subr.mxu0 0.0
        %3337 = vmatpush1.msra.mxu0 0.0
        %3338 = vmatprep.subr.mxu0 0.0
        %3339 = vmatpush1.msra.mxu0 0.0
        %3340 = vmatprep.subr.mxu0 0.0
        %3341 = vmatpush1.msra.mxu0 0.0
        %3342 = vmatprep.subr.mxu0 0.0
        %3343 = vmatpush1.msra.mxu0 0.0
        %3344 = vmatprep.subr.mxu0 0.0
        %3345 = vmatpush1.msra.mxu0 0.0
        %3346 = vmatprep.subr.mxu0 0.0
        %3347 = vmatpush1.msra.mxu0 0.0
        %3348 = vmatprep.subr.mxu0 0.0
        %3349 = vmatpush1.msra.mxu0 0.0
        %3350 = vmatprep.subr.mxu0 0.0
        %3351 = vmatpush1.msra.mxu0 0.0
        %3352 = vmatprep.subr.mxu0 0.0
        %3353 = vmatpush1.msra.mxu0 0.0
        %3354 = vmatprep.subr.mxu0 0.0
        %3355 = vmatpush1.msra.mxu0 0.0
        %3356 = vmatprep.subr.mxu0 0.0
        %3357 = vmatpush1.msra.mxu0 0.0
        %3358 = vmatprep.subr.mxu0 0.0
        %3359 = vmatpush1.msra.mxu0 %v3323
        %3360 = vmatprep.subr.mxu0 0.0
        %3361 = vmatpush2.msra.mxu0 0.0
        %3362 = vmatprep.subr.mxu0 0.0
        %3363 = vmatpush2.msra.mxu0 0.0
        %3364 = vmatprep.subr.mxu0 0.0
        %3365 = vmatpush2.msra.mxu0 0.0
        %3366 = vmatprep.subr.mxu0 0.0
        %3367 = vmatpush2.msra.mxu0 0.0
        %3368 = vmatprep.subr.mxu0 0.0
        %3369 = vmatpush2.msra.mxu0 0.0
        %3370 = vmatprep.subr.mxu0 0.0
        %3371 = vmatpush2.msra.mxu0 0.0
        %3372 = vmatprep.subr.mxu0 0.0
        %3373 = vmatpush2.msra.mxu0 0.0
        %3374 = vmatprep.subr.mxu0 0.0
        %3375 = vmatpush2.msra.mxu0 0.0
        %3376 = vmatprep.subr.mxu0 0.0
        %3377 = vmatpush2.msra.mxu0 0.0
        %3378 = vmatprep.subr.mxu0 0.0
        %3379 = vmatpush2.msra.mxu0 0.0
        %3380 = vmatprep.subr.mxu0 0.0
        %3381 = vmatpush2.msra.mxu0 0.0
        %3382 = vmatprep.subr.mxu0 0.0
        %3383 = vmatpush2.msra.mxu0 0.0
        %3384 = vmatprep.subr.mxu0 0.0
        %3385 = vmatpush2.msra.mxu0 0.0
        %3386 = vmatprep.subr.mxu0 0.0
        %3387 = vmatpush2.msra.mxu0 0.0
        %3388 = vmatprep.subr.mxu0 0.0
        %3389 = vmatpush2.msra.mxu0 0.0
        %3390 = vmatprep.subr.mxu0 0.0
        %3391 = vmatpush2.msra.mxu0 0.0
        %3392 = vmatprep.mubr.f32.mxu0 0.0
        %3393 = vmatmul.mubr.f32.gmra.mxu0 %v3326
        %v3394 = vpop.f32.mrf.mxu0
        %v3395 = vadd.f32 0.0, %v3394
        %v3396 = vpop.f32.mrf.mxu0
        %3397 = vdwg.mxu0
        %3398 = vrot.lane.b32.xlu0 %v834, 40
        %v3399 = vpop.permute.xlu0 %3398
        %v3402 = vsel %vm840, %v3169, 0
        %3404 = vmatprep.subr.mxu0 0.0
        %3405 = vmatpush1.msra.mxu0 0.0
        %3406 = vmatprep.subr.mxu0 0.0
        %3407 = vmatpush1.msra.mxu0 0.0
        %3408 = vmatprep.subr.mxu0 0.0
        %3409 = vmatpush1.msra.mxu0 0.0
        %3410 = vmatprep.subr.mxu0 0.0
        %3411 = vmatpush1.msra.mxu0 0.0
        %3412 = vmatprep.subr.mxu0 0.0
        %3413 = vmatpush1.msra.mxu0 0.0
        %3414 = vmatprep.subr.mxu0 0.0
        %3415 = vmatpush1.msra.mxu0 0.0
        %3416 = vmatprep.subr.mxu0 0.0
        %3417 = vmatpush1.msra.mxu0 0.0
        %3418 = vmatprep.subr.mxu0 0.0
        %3419 = vmatpush1.msra.mxu0 0.0
        %3420 = vmatprep.subr.mxu0 0.0
        %3421 = vmatpush1.msra.mxu0 0.0
        %3422 = vmatprep.subr.mxu0 0.0
        %3423 = vmatpush1.msra.mxu0 0.0
        %3424 = vmatprep.subr.mxu0 0.0
        %3425 = vmatpush1.msra.mxu0 0.0
        %3426 = vmatprep.subr.mxu0 0.0
        %3427 = vmatpush1.msra.mxu0 0.0
        %3428 = vmatprep.subr.mxu0 0.0
        %3429 = vmatpush1.msra.mxu0 0.0
        %3430 = vmatprep.subr.mxu0 0.0
        %3431 = vmatpush1.msra.mxu0 0.0
        %3432 = vmatprep.subr.mxu0 0.0
        %3433 = vmatpush1.msra.mxu0 0.0
        %3434 = vmatprep.subr.mxu0 0.0
        %3435 = vmatpush1.msra.mxu0 %v3399
        %3436 = vmatprep.subr.mxu0 0.0
        %3437 = vmatpush2.msra.mxu0 0.0
        %3438 = vmatprep.subr.mxu0 0.0
        %3439 = vmatpush2.msra.mxu0 0.0
        %3440 = vmatprep.subr.mxu0 0.0
        %3441 = vmatpush2.msra.mxu0 0.0
        %3442 = vmatprep.subr.mxu0 0.0
        %3443 = vmatpush2.msra.mxu0 0.0
        %3444 = vmatprep.subr.mxu0 0.0
        %3445 = vmatpush2.msra.mxu0 0.0
        %3446 = vmatprep.subr.mxu0 0.0
        %3447 = vmatpush2.msra.mxu0 0.0
        %3448 = vmatprep.subr.mxu0 0.0
        %3449 = vmatpush2.msra.mxu0 0.0
        %3450 = vmatprep.subr.mxu0 0.0
        %3451 = vmatpush2.msra.mxu0 0.0
        %3452 = vmatprep.subr.mxu0 0.0
        %3453 = vmatpush2.msra.mxu0 0.0
        %3454 = vmatprep.subr.mxu0 0.0
        %3455 = vmatpush2.msra.mxu0 0.0
        %3456 = vmatprep.subr.mxu0 0.0
        %3457 = vmatpush2.msra.mxu0 0.0
        %3458 = vmatprep.subr.mxu0 0.0
        %3459 = vmatpush2.msra.mxu0 0.0
        %3460 = vmatprep.subr.mxu0 0.0
        %3461 = vmatpush2.msra.mxu0 0.0
        %3462 = vmatprep.subr.mxu0 0.0
        %3463 = vmatpush2.msra.mxu0 0.0
        %3464 = vmatprep.subr.mxu0 0.0
        %3465 = vmatpush2.msra.mxu0 0.0
        %3466 = vmatprep.subr.mxu0 0.0
        %3467 = vmatpush2.msra.mxu0 0.0
        %3468 = vmatprep.mubr.f32.mxu0 0.0
        %3469 = vmatmul.mubr.f32.gmra.mxu0 %v3402
        %v3470 = vpop.f32.mrf.mxu0
        %v3471 = vadd.f32 0.0, %v3470
        %v3472 = vpop.f32.mrf.mxu0
        %3473 = vdwg.mxu0
        %3478 = vrot.lane.b32.xlu0 %v1923, 8
        %v3479 = vpop.permute.xlu0 %3478
        %3480 = vrot.lane.b32.xlu0 %v1999, 8
        %v3481 = vpop.permute.xlu0 %3480
        %3482 = vrot.lane.b32.xlu0 %v2075, 8
        %v3483 = vpop.permute.xlu0 %3482
        %3484 = vrot.lane.b32.xlu0 %v2151, 8
        %v3485 = vpop.permute.xlu0 %3484
        %3494 = vrot.lane.b32.xlu0 %v2583, 16
        %v3495 = vpop.permute.xlu0 %3494
        %3496 = vrot.lane.b32.xlu0 %v2659, 16
        %v3497 = vpop.permute.xlu0 %3496
        %3498 = vrot.lane.b32.xlu0 %v2735, 16
        %v3499 = vpop.permute.xlu0 %3498
        %3500 = vrot.lane.b32.xlu0 %v2811, 16
        %v3501 = vpop.permute.xlu0 %3500
        %3510 = vrot.lane.b32.xlu0 %v3243, 24
        %v3511 = vpop.permute.xlu0 %3510
        %3512 = vrot.lane.b32.xlu0 %v3319, 24
        %v3513 = vpop.permute.xlu0 %3512
        %3514 = vrot.lane.b32.xlu0 %v3395, 24
        %v3515 = vpop.permute.xlu0 %3514
        %3516 = vrot.lane.b32.xlu0 %v3471, 24
        %v3517 = vpop.permute.xlu0 %3516
        %v3522 = vsel %vm840, %v1263, %v3479
        %v3523 = vsel %vm840, %v1339, %v3481
        %v3524 = vsel %vm840, %v1415, %v3483
        %v3525 = vsel %vm840, %v1491, %v3485
        %vm3526 = vcmask 130048
        %v3527 = vsel %vm3526, %v3522, %v3495
        %v3528 = vsel %vm3526, %v3523, %v3497
        %v3529 = vsel %vm3526, %v3524, %v3499
        %v3530 = vsel %vm3526, %v3525, %v3501
        %vm3531 = vcmask 195584
        %v3532 = vsel %vm3531, %v3527, %v3511
        %v3533 = vsel %vm3531, %v3528, %v3513
        %v3534 = vsel %vm3531, %v3529, %v3515
        %v3535 = vsel %vm3531, %v3530, %v3517
        %v3536 = vld [vmem:[%s678] sm:$0xff]
        %v3537 = vld [vmem:[%s678 + $0x8] sm:$0xff]
        %v3538 = vld [vmem:[%s678 + $0x10] sm:$0xff]
        %v3539 = vld [vmem:[%s678 + $0x18] sm:$0xff]
        %v3540 = vld [vmem:[%s681] sm:$0x1]
        %v3542 = vlaneseq
        %v3543 = vshrl.u32 %v3542, 7
        %v3544 = vsub.s32 0, %v3543
        %v3545 = vrot.slane %v3540, %v3544
        %v3548 = vsel %vm739, %v3532, 0
        %v3551 = vsel %vm739, %v3533, 0
        %v3554 = vsel %vm739, %v3534, 0
        %v3557 = vsel %vm739, %v3535, 0
        %3559 = vmatprep.subr.mxu0 0.0
        %3560 = vmatpush1.msra.mxu0 0.0
        %3561 = vmatprep.subr.mxu0 0.0
        %3562 = vmatpush1.msra.mxu0 0.0
        %3563 = vmatprep.subr.mxu0 0.0
        %3564 = vmatpush1.msra.mxu0 0.0
        %3565 = vmatprep.subr.mxu0 0.0
        %3566 = vmatpush1.msra.mxu0 0.0
        %3567 = vmatprep.subr.mxu0 0.0
        %3568 = vmatpush1.msra.mxu0 0.0
        %3569 = vmatprep.subr.mxu0 0.0
        %3570 = vmatpush1.msra.mxu0 0.0
        %3571 = vmatprep.subr.mxu0 0.0
        %3572 = vmatpush1.msra.mxu0 0.0
        %3573 = vmatprep.subr.mxu0 0.0
        %3574 = vmatpush1.msra.mxu0 0.0
        %3575 = vmatprep.subr.mxu0 0.0
        %3576 = vmatpush1.msra.mxu0 0.0
        %3577 = vmatprep.subr.mxu0 0.0
        %3578 = vmatpush1.msra.mxu0 0.0
        %3579 = vmatprep.subr.mxu0 0.0
        %3580 = vmatpush1.msra.mxu0 0.0
        %3581 = vmatprep.subr.mxu0 0.0
        %3582 = vmatpush1.msra.mxu0 0.0
        %3583 = vmatprep.subr.mxu0 0.0
        %3584 = vmatpush1.msra.mxu0 %v3539
        %3585 = vmatprep.subr.mxu0 0.0
        %3586 = vmatpush1.msra.mxu0 %v3538
        %3587 = vmatprep.subr.mxu0 0.0
        %3588 = vmatpush1.msra.mxu0 %v3537
        %3589 = vmatprep.subr.mxu0 0.0
        %3590 = vmatpush1.msra.mxu0 %v3536
        %3591 = vmatprep.subr.mxu0 0.0
        %3592 = vmatpush2.msra.mxu0 0.0
        %3593 = vmatprep.subr.mxu0 0.0
        %3594 = vmatpush2.msra.mxu0 0.0
        %3595 = vmatprep.subr.mxu0 0.0
        %3596 = vmatpush2.msra.mxu0 0.0
        %3597 = vmatprep.subr.mxu0 0.0
        %3598 = vmatpush2.msra.mxu0 0.0
        %3599 = vmatprep.subr.mxu0 0.0
        %3600 = vmatpush2.msra.mxu0 0.0
        %3601 = vmatprep.subr.mxu0 0.0
        %3602 = vmatpush2.msra.mxu0 0.0
        %3603 = vmatprep.subr.mxu0 0.0
        %3604 = vmatpush2.msra.mxu0 0.0
        %3605 = vmatprep.subr.mxu0 0.0
        %3606 = vmatpush2.msra.mxu0 0.0
        %3607 = vmatprep.subr.mxu0 0.0
        %3608 = vmatpush2.msra.mxu0 0.0
        %3609 = vmatprep.subr.mxu0 0.0
        %3610 = vmatpush2.msra.mxu0 0.0
        %3611 = vmatprep.subr.mxu0 0.0
        %3612 = vmatpush2.msra.mxu0 0.0
        %3613 = vmatprep.subr.mxu0 0.0
        %3614 = vmatpush2.msra.mxu0 0.0
        %3615 = vmatprep.subr.mxu0 0.0
        %3616 = vmatpush2.msra.mxu0 0.0
        %3617 = vmatprep.subr.mxu0 0.0
        %3618 = vmatpush2.msra.mxu0 0.0
        %3619 = vmatprep.subr.mxu0 0.0
        %3620 = vmatpush2.msra.mxu0 0.0
        %3621 = vmatprep.subr.mxu0 0.0
        %3622 = vmatpush2.msra.mxu0 0.0
        %3623 = vmatprep.mubr.f32.mxu0 0.0
        %3624 = vmatmul.mubr.f32.gmra.mxu0 %v3548
        %v3625 = vpop.f32.mrf.mxu0
        %v3626 = vadd.f32 %v3545, %v3625
        %v3627 = vpop.f32.mrf.mxu0
        %3628 = vmatprep.mubr.f32.mxu0 0.0
        %3629 = vmatmul.mubr.f32.gmra.mxu0 %v3551
        %v3630 = vpop.f32.mrf.mxu0
        %v3631 = vadd.f32 %v3545, %v3630
        %v3632 = vpop.f32.mrf.mxu0
        %3633 = vmatprep.mubr.f32.mxu0 0.0
        %3634 = vmatmul.mubr.f32.gmra.mxu0 %v3554
        %v3635 = vpop.f32.mrf.mxu0
        %v3636 = vadd.f32 %v3545, %v3635
        %v3637 = vpop.f32.mrf.mxu0
        %3638 = vmatprep.mubr.f32.mxu0 0.0
        %3639 = vmatmul.mubr.f32.gmra.mxu0 %v3557
        %v3640 = vpop.f32.mrf.mxu0
        %v3641 = vadd.f32 %v3545, %v3640
        %v3642 = vpop.f32.mrf.mxu0
        %3643 = vdwg.mxu0
        %v3644 = vadd.f32 %v724, %v3626
        %v3645 = vadd.f32 %v725, %v3631
        %v3646 = vadd.f32 %v726, %v3636
        %v3647 = vadd.f32 %v727, %v3641
        %v3648 = vsel %vm739, %v3644, 0.0
        %3649 = vadd.xlane.f32.xlu0 %v3648
        %v3650 = vpop.xlane.xlu0 %3649
        %v3651 = vsel %vm739, %v3645, 0.0
        %3652 = vadd.xlane.f32.xlu0 %v3651
        %v3653 = vpop.xlane.xlu0 %3652
        %v3654 = vsel %vm739, %v3646, 0.0
        %3655 = vadd.xlane.f32.xlu0 %v3654
        %v3656 = vpop.xlane.xlu0 %3655
        %v3657 = vsel %vm739, %v3647, 0.0
        %3658 = vadd.xlane.f32.xlu0 %v3657
        %v3659 = vpop.xlane.xlu0 %3658
        %v3660 = vrcp.pop 32.0
        %v3661 = vmul.f32 %v3650, %v3660
        %v3662 = vmul.f32 %v3653, %v3660
        %v3663 = vmul.f32 %v3656, %v3660
        %v3664 = vmul.f32 %v3659, %v3660
        %v3665 = vmul.f32 %v3644, %v3644
        %v3666 = vmul.f32 %v3645, %v3645
        %v3667 = vmul.f32 %v3646, %v3646
        %v3668 = vmul.f32 %v3647, %v3647
        %v3669 = vsel %vm739, %v3665, 0.0
        %3670 = vadd.xlane.f32.xlu0 %v3669
        %v3671 = vpop.xlane.xlu0 %3670
        %v3672 = vsel %vm739, %v3666, 0.0
        %3673 = vadd.xlane.f32.xlu0 %v3672
        %v3674 = vpop.xlane.xlu0 %3673
        %v3675 = vsel %vm739, %v3667, 0.0
        %3676 = vadd.xlane.f32.xlu0 %v3675
        %v3677 = vpop.xlane.xlu0 %3676
        %v3678 = vsel %vm739, %v3668, 0.0
        %3679 = vadd.xlane.f32.xlu0 %v3678
        %v3680 = vpop.xlane.xlu0 %3679
        %v3681 = vmul.f32 %v3671, %v3660
        %v3682 = vmul.f32 %v3674, %v3660
        %v3683 = vmul.f32 %v3677, %v3660
        %v3684 = vmul.f32 %v3680, %v3660
        %v3685 = vmul.f32 %v3661, %v3661
        %v3686 = vmul.f32 %v3662, %v3662
        %v3687 = vmul.f32 %v3663, %v3663
        %v3688 = vmul.f32 %v3664, %v3664
        %v3689 = vsub.f32 %v3681, %v3685
        %v3690 = vsub.f32 %v3682, %v3686
        %v3691 = vsub.f32 %v3683, %v3687
        %v3692 = vsub.f32 %v3684, %v3688
        %v3693 = vsub.f32 %v3644, %v3661
        %v3694 = vsub.f32 %v3645, %v3662
        %v3695 = vsub.f32 %v3646, %v3663
        %v3696 = vsub.f32 %v3647, %v3664
        %v3697 = vadd.f32 %v3689, 1e-05
        %v3698 = vadd.f32 %v3690, 1e-05
        %v3699 = vadd.f32 %v3691, 1e-05
        %v3700 = vadd.f32 %v3692, 1e-05
        %v3701 = vrsqrt.pop %v3697
        %v3702 = vrsqrt.pop %v3698
        %v3703 = vrsqrt.pop %v3699
        %v3704 = vrsqrt.pop %v3700
        %v3705 = vmul.f32 %v3693, %v3701
        %v3706 = vmul.f32 %v3694, %v3702
        %v3707 = vmul.f32 %v3695, %v3703
        %v3708 = vmul.f32 %v3696, %v3704
        %v3709 = vld [vmem:[%s684] sm:$0x1]
        %v3711 = vlaneseq
        %v3712 = vshrl.u32 %v3711, 7
        %v3713 = vsub.s32 0, %v3712
        %v3714 = vrot.slane %v3709, %v3713
        %v3716 = vmul.f32 %v3705, %v3714
        %v3717 = vmul.f32 %v3706, %v3714
        %v3718 = vmul.f32 %v3707, %v3714
        %v3719 = vmul.f32 %v3708, %v3714
        %v3720 = vld [vmem:[%s687] sm:$0x1]
        %v3722 = vlaneseq
        %v3723 = vshrl.u32 %v3722, 7
        %v3724 = vsub.s32 0, %v3723
        %v3725 = vrot.slane %v3720, %v3724
        %v3727 = vadd.f32 %v3716, %v3725
        %v3728 = vadd.f32 %v3717, %v3725
        %v3729 = vadd.f32 %v3718, %v3725
        %v3730 = vadd.f32 %v3719, %v3725
        %v3731 = vld [vmem:[%s571] sm:$0xff]
        %v3732 = vld [vmem:[%s571 + $0x8] sm:$0xff]
        %v3733 = vld [vmem:[%s571 + $0x10] sm:$0xff]
        %v3734 = vld [vmem:[%s571 + $0x18] sm:$0xff]
        %v3735 = vld [vmem:[%s690] sm:$0x1]
        %v3737 = vlaneseq
        %v3738 = vshrl.u32 %v3737, 7
        %v3739 = vsub.s32 0, %v3738
        %v3740 = vrot.slane %v3735, %v3739
        %v3743 = vsel %vm739, %v3727, 0
        %v3746 = vsel %vm739, %v3728, 0
        %v3749 = vsel %vm739, %v3729, 0
        %v3752 = vsel %vm739, %v3730, 0
        %3754 = vmatprep.subr.mxu0 0.0
        %3755 = vmatpush1.msra.mxu0 0.0
        %3756 = vmatprep.subr.mxu0 0.0
        %3757 = vmatpush1.msra.mxu0 0.0
        %3758 = vmatprep.subr.mxu0 0.0
        %3759 = vmatpush1.msra.mxu0 0.0
        %3760 = vmatprep.subr.mxu0 0.0
        %3761 = vmatpush1.msra.mxu0 0.0
        %3762 = vmatprep.subr.mxu0 0.0
        %3763 = vmatpush1.msra.mxu0 0.0
        %3764 = vmatprep.subr.mxu0 0.0
        %3765 = vmatpush1.msra.mxu0 0.0
        %3766 = vmatprep.subr.mxu0 0.0
        %3767 = vmatpush1.msra.mxu0 0.0
        %3768 = vmatprep.subr.mxu0 0.0
        %3769 = vmatpush1.msra.mxu0 0.0
        %3770 = vmatprep.subr.mxu0 0.0
        %3771 = vmatpush1.msra.mxu0 0.0
        %3772 = vmatprep.subr.mxu0 0.0
        %3773 = vmatpush1.msra.mxu0 0.0
        %3774 = vmatprep.subr.mxu0 0.0
        %3775 = vmatpush1.msra.mxu0 0.0
        %3776 = vmatprep.subr.mxu0 0.0
        %3777 = vmatpush1.msra.mxu0 0.0
        %3778 = vmatprep.subr.mxu0 0.0
        %3779 = vmatpush1.msra.mxu0 %v3734
        %3780 = vmatprep.subr.mxu0 0.0
        %3781 = vmatpush1.msra.mxu0 %v3733
        %3782 = vmatprep.subr.mxu0 0.0
        %3783 = vmatpush1.msra.mxu0 %v3732
        %3784 = vmatprep.subr.mxu0 0.0
        %3785 = vmatpush1.msra.mxu0 %v3731
        %3786 = vmatprep.subr.mxu0 0.0
        %3787 = vmatpush2.msra.mxu0 0.0
        %3788 = vmatprep.subr.mxu0 0.0
        %3789 = vmatpush2.msra.mxu0 0.0
        %3790 = vmatprep.subr.mxu0 0.0
        %3791 = vmatpush2.msra.mxu0 0.0
        %3792 = vmatprep.subr.mxu0 0.0
        %3793 = vmatpush2.msra.mxu0 0.0
        %3794 = vmatprep.subr.mxu0 0.0
        %3795 = vmatpush2.msra.mxu0 0.0
        %3796 = vmatprep.subr.mxu0 0.0
        %3797 = vmatpush2.msra.mxu0 0.0
        %3798 = vmatprep.subr.mxu0 0.0
        %3799 = vmatpush2.msra.mxu0 0.0
        %3800 = vmatprep.subr.mxu0 0.0
        %3801 = vmatpush2.msra.mxu0 0.0
        %3802 = vmatprep.subr.mxu0 0.0
        %3803 = vmatpush2.msra.mxu0 0.0
        %3804 = vmatprep.subr.mxu0 0.0
        %3805 = vmatpush2.msra.mxu0 0.0
        %3806 = vmatprep.subr.mxu0 0.0
        %3807 = vmatpush2.msra.mxu0 0.0
        %3808 = vmatprep.subr.mxu0 0.0
        %3809 = vmatpush2.msra.mxu0 0.0
        %3810 = vmatprep.subr.mxu0 0.0
        %3811 = vmatpush2.msra.mxu0 0.0
        %3812 = vmatprep.subr.mxu0 0.0
        %3813 = vmatpush2.msra.mxu0 0.0
        %3814 = vmatprep.subr.mxu0 0.0
        %3815 = vmatpush2.msra.mxu0 0.0
        %3816 = vmatprep.subr.mxu0 0.0
        %3817 = vmatpush2.msra.mxu0 0.0
        %3818 = vmatprep.mubr.f32.mxu0 0.0
        %3819 = vmatmul.mubr.f32.gmra.mxu0 %v3743
        %v3820 = vpop.f32.mrf.mxu0
        %v3821 = vadd.f32 %v3740, %v3820
        %v3822 = vpop.f32.mrf.mxu0
        %3823 = vmatprep.mubr.f32.mxu0 0.0
        %3824 = vmatmul.mubr.f32.gmra.mxu0 %v3746
        %v3825 = vpop.f32.mrf.mxu0
        %v3826 = vadd.f32 %v3740, %v3825
        %v3827 = vpop.f32.mrf.mxu0
        %3828 = vmatprep.mubr.f32.mxu0 0.0
        %3829 = vmatmul.mubr.f32.gmra.mxu0 %v3749
        %v3830 = vpop.f32.mrf.mxu0
        %v3831 = vadd.f32 %v3740, %v3830
        %v3832 = vpop.f32.mrf.mxu0
        %3833 = vmatprep.mubr.f32.mxu0 0.0
        %3834 = vmatmul.mubr.f32.gmra.mxu0 %v3752
        %v3835 = vpop.f32.mrf.mxu0
        %v3836 = vadd.f32 %v3740, %v3835
        %v3837 = vpop.f32.mrf.mxu0
        %3838 = vdwg.mxu0
        %v3839 = vmax.f32 %v3821, 0.0
        %v3840 = vmax.f32 %v3826, 0.0
        %v3841 = vmax.f32 %v3831, 0.0
        %v3842 = vmax.f32 %v3836, 0.0
        %v3843 = vld [vmem:[%s695] sm:$0xff]
        %v3844 = vld [vmem:[%s695 + $0x8] sm:$0xff]
        %v3845 = vld [vmem:[%s695 + $0x10] sm:$0xff]
        %v3846 = vld [vmem:[%s695 + $0x18] sm:$0xff]
        %v3847 = vld [vmem:[%s695 + $0x20] sm:$0xff]
        %v3848 = vld [vmem:[%s695 + $0x28] sm:$0xff]
        %v3849 = vld [vmem:[%s695 + $0x30] sm:$0xff]
        %v3850 = vld [vmem:[%s695 + $0x38] sm:$0xff]
        %v3851 = vld [vmem:[%s698] sm:$0x1]
        %v3853 = vlaneseq
        %v3854 = vshrl.u32 %v3853, 7
        %v3855 = vsub.s32 0, %v3854
        %v3856 = vrot.slane %v3851, %v3855
        %vm3858 = vcmask 523264
        %v3860 = vsel %vm3858, %v3839, 0
        %v3863 = vsel %vm3858, %v3840, 0
        %v3866 = vsel %vm3858, %v3841, 0
        %v3869 = vsel %vm3858, %v3842, 0
        %3871 = vmatprep.subr.mxu0 0.0
        %3872 = vmatpush1.msra.mxu0 0.0
        %3873 = vmatprep.subr.mxu0 0.0
        %3874 = vmatpush1.msra.mxu0 0.0
        %3875 = vmatprep.subr.mxu0 0.0
        %3876 = vmatpush1.msra.mxu0 0.0
        %3877 = vmatprep.subr.mxu0 0.0
        %3878 = vmatpush1.msra.mxu0 0.0
        %3879 = vmatprep.subr.mxu0 0.0
        %3880 = vmatpush1.msra.mxu0 0.0
        %3881 = vmatprep.subr.mxu0 0.0
        %3882 = vmatpush1.msra.mxu0 0.0
        %3883 = vmatprep.subr.mxu0 0.0
        %3884 = vmatpush1.msra.mxu0 0.0
        %3885 = vmatprep.subr.mxu0 0.0
        %3886 = vmatpush1.msra.mxu0 0.0
        %3887 = vmatprep.subr.mxu0 0.0
        %3888 = vmatpush1.msra.mxu0 %v3850
        %3889 = vmatprep.subr.mxu0 0.0
        %3890 = vmatpush1.msra.mxu0 %v3849
        %3891 = vmatprep.subr.mxu0 0.0
        %3892 = vmatpush1.msra.mxu0 %v3848
        %3893 = vmatprep.subr.mxu0 0.0
        %3894 = vmatpush1.msra.mxu0 %v3847
        %3895 = vmatprep.subr.mxu0 0.0
        %3896 = vmatpush1.msra.mxu0 %v3846
        %3897 = vmatprep.subr.mxu0 0.0
        %3898 = vmatpush1.msra.mxu0 %v3845
        %3899 = vmatprep.subr.mxu0 0.0
        %3900 = vmatpush1.msra.mxu0 %v3844
        %3901 = vmatprep.subr.mxu0 0.0
        %3902 = vmatpush1.msra.mxu0 %v3843
        %3903 = vmatprep.subr.mxu0 0.0
        %3904 = vmatpush2.msra.mxu0 0.0
        %3905 = vmatprep.subr.mxu0 0.0
        %3906 = vmatpush2.msra.mxu0 0.0
        %3907 = vmatprep.subr.mxu0 0.0
        %3908 = vmatpush2.msra.mxu0 0.0
        %3909 = vmatprep.subr.mxu0 0.0
        %3910 = vmatpush2.msra.mxu0 0.0
        %3911 = vmatprep.subr.mxu0 0.0
        %3912 = vmatpush2.msra.mxu0 0.0
        %3913 = vmatprep.subr.mxu0 0.0
        %3914 = vmatpush2.msra.mxu0 0.0
        %3915 = vmatprep.subr.mxu0 0.0
        %3916 = vmatpush2.msra.mxu0 0.0
        %3917 = vmatprep.subr.mxu0 0.0
        %3918 = vmatpush2.msra.mxu0 0.0
        %3919 = vmatprep.subr.mxu0 0.0
        %3920 = vmatpush2.msra.mxu0 0.0
        %3921 = vmatprep.subr.mxu0 0.0
        %3922 = vmatpush2.msra.mxu0 0.0
        %3923 = vmatprep.subr.mxu0 0.0
        %3924 = vmatpush2.msra.mxu0 0.0
        %3925 = vmatprep.subr.mxu0 0.0
        %3926 = vmatpush2.msra.mxu0 0.0
        %3927 = vmatprep.subr.mxu0 0.0
        %3928 = vmatpush2.msra.mxu0 0.0
        %3929 = vmatprep.subr.mxu0 0.0
        %3930 = vmatpush2.msra.mxu0 0.0
        %3931 = vmatprep.subr.mxu0 0.0
        %3932 = vmatpush2.msra.mxu0 0.0
        %3933 = vmatprep.subr.mxu0 0.0
        %3934 = vmatpush2.msra.mxu0 0.0
        %3935 = vmatprep.mubr.f32.mxu0 0.0
        %3936 = vmatmul.mubr.f32.gmra.mxu0 %v3860
        %v3937 = vpop.f32.mrf.mxu0
        %v3938 = vadd.f32 %v3856, %v3937
        %v3939 = vpop.f32.mrf.mxu0
        %3940 = vmatprep.mubr.f32.mxu0 0.0
        %3941 = vmatmul.mubr.f32.gmra.mxu0 %v3863
        %v3942 = vpop.f32.mrf.mxu0
        %v3943 = vadd.f32 %v3856, %v3942
        %v3944 = vpop.f32.mrf.mxu0
        %3945 = vmatprep.mubr.f32.mxu0 0.0
        %3946 = vmatmul.mubr.f32.gmra.mxu0 %v3866
        %v3947 = vpop.f32.mrf.mxu0
        %v3948 = vadd.f32 %v3856, %v3947
        %v3949 = vpop.f32.mrf.mxu0
        %3950 = vmatprep.mubr.f32.mxu0 0.0
        %3951 = vmatmul.mubr.f32.gmra.mxu0 %v3869
        %v3952 = vpop.f32.mrf.mxu0
        %v3953 = vadd.f32 %v3856, %v3952
        %v3954 = vpop.f32.mrf.mxu0
        %3955 = vdwg.mxu0
        %v3956 = vadd.f32 %v3727, %v3938
        %v3957 = vadd.f32 %v3728, %v3943
        %v3958 = vadd.f32 %v3729, %v3948
        %v3959 = vadd.f32 %v3730, %v3953
        %v3960 = vsel %vm739, %v3956, 0.0
        %3961 = vadd.xlane.f32.xlu0 %v3960
        %v3962 = vpop.xlane.xlu0 %3961
        %v3963 = vsel %vm739, %v3957, 0.0
        %3964 = vadd.xlane.f32.xlu0 %v3963
        %v3965 = vpop.xlane.xlu0 %3964
        %v3966 = vsel %vm739, %v3958, 0.0
        %3967 = vadd.xlane.f32.xlu0 %v3966
        %v3968 = vpop.xlane.xlu0 %3967
        %v3969 = vsel %vm739, %v3959, 0.0
        %3970 = vadd.xlane.f32.xlu0 %v3969
        %v3971 = vpop.xlane.xlu0 %3970
        %v3972 = vmul.f32 %v3962, %v3660
        %v3973 = vmul.f32 %v3965, %v3660
        %v3974 = vmul.f32 %v3968, %v3660
        %v3975 = vmul.f32 %v3971, %v3660
        %v3976 = vmul.f32 %v3956, %v3956
        %v3977 = vmul.f32 %v3957, %v3957
        %v3978 = vmul.f32 %v3958, %v3958
        %v3979 = vmul.f32 %v3959, %v3959
        %v3980 = vsel %vm739, %v3976, 0.0
        %3981 = vadd.xlane.f32.xlu0 %v3980
        %v3982 = vpop.xlane.xlu0 %3981
        %v3983 = vsel %vm739, %v3977, 0.0
        %3984 = vadd.xlane.f32.xlu0 %v3983
        %v3985 = vpop.xlane.xlu0 %3984
        %v3986 = vsel %vm739, %v3978, 0.0
        %3987 = vadd.xlane.f32.xlu0 %v3986
        %v3988 = vpop.xlane.xlu0 %3987
        %v3989 = vsel %vm739, %v3979, 0.0
        %3990 = vadd.xlane.f32.xlu0 %v3989
        %v3991 = vpop.xlane.xlu0 %3990
        %v3992 = vmul.f32 %v3982, %v3660
        %v3993 = vmul.f32 %v3985, %v3660
        %v3994 = vmul.f32 %v3988, %v3660
        %v3995 = vmul.f32 %v3991, %v3660
        %v3996 = vmul.f32 %v3972, %v3972
        %v3997 = vmul.f32 %v3973, %v3973
        %v3998 = vmul.f32 %v3974, %v3974
        %v3999 = vmul.f32 %v3975, %v3975
        %v4000 = vsub.f32 %v3992, %v3996
        %v4001 = vsub.f32 %v3993, %v3997
        %v4002 = vsub.f32 %v3994, %v3998
        %v4003 = vsub.f32 %v3995, %v3999
        %v4004 = vsub.f32 %v3956, %v3972
        %v4005 = vsub.f32 %v3957, %v3973
        %v4006 = vsub.f32 %v3958, %v3974
        %v4007 = vsub.f32 %v3959, %v3975
        %v4008 = vadd.f32 %v4000, 1e-05
        %v4009 = vadd.f32 %v4001, 1e-05
        %v4010 = vadd.f32 %v4002, 1e-05
        %v4011 = vadd.f32 %v4003, 1e-05
        %v4012 = vrsqrt.pop %v4008
        %v4013 = vrsqrt.pop %v4009
        %v4014 = vrsqrt.pop %v4010
        %v4015 = vrsqrt.pop %v4011
        %v4016 = vmul.f32 %v4004, %v4012
        %v4017 = vmul.f32 %v4005, %v4013
        %v4018 = vmul.f32 %v4006, %v4014
        %v4019 = vmul.f32 %v4007, %v4015
        %v4020 = vld [vmem:[%s701] sm:$0x1]
        %v4022 = vlaneseq
        %v4023 = vshrl.u32 %v4022, 7
        %v4024 = vsub.s32 0, %v4023
        %v4025 = vrot.slane %v4020, %v4024
        %v4027 = vmul.f32 %v4016, %v4025
        %v4028 = vmul.f32 %v4017, %v4025
        %v4029 = vmul.f32 %v4018, %v4025
        %v4030 = vmul.f32 %v4019, %v4025
        %v4031 = vld [vmem:[%s704] sm:$0x1]
        %v4033 = vlaneseq
        %v4034 = vshrl.u32 %v4033, 7
        %v4035 = vsub.s32 0, %v4034
        %v4036 = vrot.slane %v4031, %v4035
        %v4038 = vadd.f32 %v4027, %v4036
        %v4039 = vadd.f32 %v4028, %v4036
        %v4040 = vadd.f32 %v4029, %v4036
        %v4041 = vadd.f32 %v4030, %v4036
        %4042 = vst.msk [vmem:[%s659] sm:$0xff] %vm739, %v4038
        %4043 = vst.msk [vmem:[%s659 + $0x8] sm:$0xff] %vm739, %v4039
        %4044 = vst.msk [vmem:[%s659 + $0x10] sm:$0xff] %vm739, %v4040
        %4045 = vst.msk [vmem:[%s659 + $0x18] sm:$0xff] %vm739, %v4041
        %s4046 = sand.u32 %s411, 1
        %s4047 = scalar_lea.sflag [#allocation4], %s4046
        %s4048 = sand.u32 %s411, 1
        %s4049 = smul.addr %s4048, 32
        %s4050 = scalar_lea.vmem [#allocation7], %s4049
        // Predicated region
        $region89: #{tpu_custom_call.1} parent=75 // pred_check
          %p4051 = pneg %p421
        $region90: #{tpu_custom_call.1} parent=75 // pred_check_branch
          %4053 = sbr.rel (%p4051) target = $region92
        $region91: #{tpu_custom_call.1} parent=75 // pred_region
          %s4054 = smul.u32 4, %s36
          %s4056 = ssub.s32 512, 512
          %4057 = vsyncadd %s4047, %s4056
          %s4058 = smul.addr %s4054, 128
          %s4059 = scalar_lea.hbm %s14, %s4058
          %s4060 = sshll.u32 %s4050, 4
          %s4061 = int_to_ptr.vmem [resolvable:$true] %s4060
          %4066 = dma.vmem_to_hbm [thread:$0]  %s4061, 512, %s4059, %s4047, 128, 128, 8
        $region92: #{tpu_custom_call.1} parent=75 // pred_fallthru
          _
      $region76: #{tpu_custom_call.1} parent=5 // pred_fallthru
        _
      %p4067 = scmp.le.s32.totalorder 2, %s27
      // Predicated region
      $region93: #{tpu_custom_call.1} parent=5 // pred_check
        %p4068 = pneg %p4067
      $region94: #{tpu_custom_call.1} parent=5 // pred_check_branch
        %4070 = sbr.rel (%p4068) target = $region96
      $region95: #{tpu_custom_call.1} parent=5 // pred_region
        %s4071 = ssub.s32 %s27, 2
        // Predicated region
        $region97: #{tpu_custom_call.1} parent=95 // pred_check
          %p4072 = pneg %p427
        $region98: #{tpu_custom_call.1} parent=95 // pred_check_branch
          %4074 = sbr.rel (%p4072) target = $region100
        $region99: #{tpu_custom_call.1} parent=95 // pred_region
          %s4075 = sand.u32 %s412, 1
          %s4076 = scalar_lea.sflag [#allocation4], %s4075
          %s4077 = sand.u32 %s412, 1
          %s4078 = smul.addr %s4077, 32
          %s4079 = scalar_lea.vmem [#allocation7], %s4078
          %4080 = dma.done %s4076, 512
        $region100: #{tpu_custom_call.1} parent=95 // pred_fallthru
          _
      $region96: #{tpu_custom_call.1} parent=5 // pred_fallthru
        _
    $region6: #{tpu_custom_call.1} parent=1 // loop_footer
      %s31 = sadd.s32 1, %s27
    $region7: #{tpu_custom_call.1} parent=1 // loop_footer_branch
      %26 = sbr.rel target = $region3
    $region8: #{tpu_custom_call.1} parent=1 // loop_exit
      _
    %4081 = vsyncpa [#allocation3], 1
    %s4082 = scalar_lea.sflag [#allocation3], 1
    %4083 = vsyncpa %s4082, 1
    %4084 = vsyncpa [#allocation6], 1
    %s4085 = scalar_lea.sflag [#allocation6], 1
    %4086 = vsyncpa %s4085, 1
    %4087 = vsyncpa [#allocation4], 1
    %s4088 = scalar_lea.sflag [#allocation4], 1
    %4089 = vsyncpa %s4088, 1

</llo_original>
